<compile_context>
chip_gen: v5e
topology: v5e:2x2
jax: 0.10.0
libtpu: 0.0.40
codegen_flags: <defaults>
</compile_context>

<pallas_src>
import functools
from math import log2

import numpy as np

import jax
import jax.numpy as jnp
from jax import lax
from jax.experimental import pallas as pl
from jax.experimental.pallas import tpu as pltpu


_VMEM_LIMIT = 32 * 1024 * 1024     # safe on v5e/v6e (128 MiB) and v7x (64 MiB/TC)
_BN_EPS = 1e-5
_LRELU_SLOPE = 0.2
_TM_CAP = 512


# ----------------------------------------------------------------------------
# Pallas kernels
# ----------------------------------------------------------------------------
def _gemm_bias_act_kernel(x_ref, w_ref, b_ref, o_ref, *, act, n_keep):
    # One (TM, TN) output tile:  act(X_tile @ W_tile + b)   (f32 epilogue)
    y = jnp.dot(x_ref[...], w_ref[...], preferred_element_type=jnp.float32)
    y = y + b_ref[...]                       # (1, TN) broadcast
    if act == "tanh":
        y = jnp.tanh(y)
    if n_keep is not None:                   # narrow store: real channels only
        y = y[:, :n_keep]
    o_ref[...] = y.astype(o_ref.dtype)


def _gemm_colstats_kernel(x_ref, w_ref, y_ref, s_ref, q_ref):
    # BN pass 1: GEMM tile + per-channel partial sum / sum-of-squares.
    # Stats come from the f32 accumulator; the tile itself is stored bf16
    # (halves the HBM round trip to BN pass 2).
    y = jnp.dot(x_ref[...], w_ref[...], preferred_element_type=jnp.float32)
    s_ref[0:1, :] = jnp.sum(y, axis=0, keepdims=True)       # row 0 only
    q_ref[0:1, :] = jnp.sum(y * y, axis=0, keepdims=True)   # row 0 only
    y_ref[...] = y.astype(y_ref.dtype)


def _bn_lrelu_kernel(y_ref, ss_ref, o_ref, *, slope):
    # BN pass 2: y * scale + shift -> LeakyReLU.  y arrives bf16 and is
    # up-cast in-register; scale/shift are packed into one (2, TN) block.
    y = y_ref[...].astype(jnp.float32)
    y = y * ss_ref[0:1, :] + ss_ref[1:2, :]
    o_ref[...] = jnp.where(y >= 0.0, y, slope * y).astype(o_ref.dtype)


# ----------------------------------------------------------------------------
# Tiling helpers
# ----------------------------------------------------------------------------
def _round_up(x, m):
    return (x + m - 1) // m * m


def _pick_tm(m, cap=_TM_CAP):
    """Largest multiple-of-8 tile <= cap that divides m (=> no M padding when
    possible); otherwise the smallest padded tiling."""
    start = (min(m, cap) // 8) * 8
    for t in range(start, 0, -8):
        if m % t == 0:
            return t, m
    tm = min(_round_up(m, 8), _round_up(cap, 8))
    return tm, _round_up(m, tm)


def _pick_tn(n):
    """Pad N to lane multiples; use 256-wide tiles (full v6e/v7x MXU width)
    only when the padded width is already a multiple of 256, so the
    memory-bound small-channel layers are not inflated."""
    n_pad = _round_up(n, 128)
    tn = 256 if n_pad % 256 == 0 else 128
    return n_pad, tn


def _compiler_params(num_axes):
    return pltpu.CompilerParams(
        dimension_semantics=("parallel",) * num_axes,
        vmem_limit_bytes=_VMEM_LIMIT)


# ----------------------------------------------------------------------------
# pallas_call wrappers
# ----------------------------------------------------------------------------
def pallas_gemm_bias_act(patches, wmat, bias, *, act, out_dtype, narrow_out=False):
    """(M, K) @ (K, N) + bias[, tanh].  Returns (M, N) in out_dtype.
    With narrow_out=True (and a single N tile) the output tensor itself is
    only N lanes wide (masked narrow stores) instead of 128-padded."""
    M, K = patches.shape
    N = wmat.shape[1]
    tm, m_pad = _pick_tm(M)
    n_pad, tn = _pick_tn(N)

    x = jnp.pad(patches, ((0, m_pad - M), (0, 0))).astype(jnp.bfloat16)
    w = jnp.pad(wmat, ((0, 0), (0, n_pad - N))).astype(jnp.bfloat16)
    b = jnp.pad(bias, (0, n_pad - N)).astype(jnp.float32).reshape(1, n_pad)

    grid = (m_pad // tm, n_pad // tn)
    narrow = narrow_out and (n_pad == tn)

    if narrow:
        out_shape = jax.ShapeDtypeStruct((m_pad, N), out_dtype)
        out_spec = pl.BlockSpec((tm, N), lambda i, j: (i, 0))
        kernel = functools.partial(_gemm_bias_act_kernel, act=act, n_keep=N)
        out_bytes = m_pad * N * jnp.dtype(out_dtype).itemsize
    else:
        out_shape = jax.ShapeDtypeStruct((m_pad, n_pad), out_dtype)
        out_spec = pl.BlockSpec((tm, tn), lambda i, j: (i, j))
        kernel = functools.partial(_gemm_bias_act_kernel, act=act, n_keep=None)
        out_bytes = m_pad * n_pad * jnp.dtype(out_dtype).itemsize

    cost = pl.CostEstimate(
        flops=int(2 * m_pad * K * n_pad),
        transcendentals=int(m_pad * n_pad) if act == "tanh" else 0,
        bytes_accessed=int(x.size * 2 + w.size * 2 + b.size * 4 + out_bytes))

    y = pl.pallas_call(
        kernel,
        out_shape=out_shape,
        grid=grid,
        in_specs=[pl.BlockSpec((tm, K), lambda i, j: (i, 0)),
                  pl.BlockSpec((K, tn), lambda i, j: (0, j)),
                  pl.BlockSpec((1, tn), lambda i, j: (0, j))],
        out_specs=out_spec,
        compiler_params=_compiler_params(2),
        cost_estimate=cost,
    )(x, w, b)
    return y[:M, :N]


def pallas_phase_gemm_stats(patches4, w4):
    """Batched over the 4 sub-pixel phases: Y = X @ W (bf16 store) plus
    per-tile column sum / sum-of-squares.  patches4: (4, M, K), w4: (4, K, N)."""
    P, M, K = patches4.shape
    N = w4.shape[2]
    tm, m_pad = _pick_tm(M)
    n_pad, tn = _pick_tn(N)

    x = jnp.pad(patches4, ((0, 0), (0, m_pad - M), (0, 0))).astype(jnp.bfloat16)
    w = jnp.pad(w4, ((0, 0), (0, 0), (0, n_pad - N))).astype(jnp.bfloat16)

    gm, gn = m_pad // tm, n_pad // tn
    grid = (P, gm, gn)
    cost = pl.CostEstimate(
        flops=int(2 * P * m_pad * K * n_pad),
        transcendentals=0,
        bytes_accessed=int(x.size * 2 + w.size * 2 + P * m_pad * n_pad * 2
                           + 2 * P * gm * 8 * n_pad * 4))

    y, s, q = pl.pallas_call(
        _gemm_colstats_kernel,
        out_shape=(jax.ShapeDtypeStruct((P, m_pad, n_pad), jnp.bfloat16),
                   jax.ShapeDtypeStruct((P, gm * 8, n_pad), jnp.float32),
                   jax.ShapeDtypeStruct((P, gm * 8, n_pad), jnp.float32)),
        grid=grid,
        in_specs=[pl.BlockSpec((None, tm, K), lambda p, i, j: (p, i, 0)),
                  pl.BlockSpec((None, K, tn), lambda p, i, j: (p, 0, j))],
        out_specs=(pl.BlockSpec((None, tm, tn), lambda p, i, j: (p, i, j)),
                   pl.BlockSpec((None, 8, tn), lambda p, i, j: (p, i, j)),
                   pl.BlockSpec((None, 8, tn), lambda p, i, j: (p, i, j))),
        compiler_params=_compiler_params(3),
        cost_estimate=cost,
    )(x, w)

    col_sum = s.reshape(P, gm, 8, n_pad)[:, :, 0, :].sum(axis=(0, 1))
    col_ssq = q.reshape(P, gm, 8, n_pad)[:, :, 0, :].sum(axis=(0, 1))
    return y, col_sum, col_ssq, (M, n_pad, tm, tn)


def pallas_bn_lrelu(y_all, scale, shift, tm, tn, *, slope=_LRELU_SLOPE):
    """Elementwise pass 2: (y * scale + shift) -> LeakyReLU -> bf16.
    Grid ordered (phase, n_tile, m_tile) so the packed scale/shift block is
    resident across the inner m loop."""
    P, m_pad, n_pad = y_all.shape
    gm, gn = m_pad // tm, n_pad // tn
    ss = jnp.stack([scale, shift], axis=0).astype(jnp.float32)   # (2, n_pad)
    grid = (P, gn, gm)
    cost = pl.CostEstimate(
        flops=int(3 * P * m_pad * n_pad),
        transcendentals=0,
        bytes_accessed=int(P * m_pad * n_pad * 4 + n_pad * 8))
    return pl.pallas_call(
        functools.partial(_bn_lrelu_kernel, slope=slope),
        out_shape=jax.ShapeDtypeStruct((P, m_pad, n_pad), jnp.bfloat16),
        grid=grid,
        in_specs=[pl.BlockSpec((None, tm, tn), lambda p, j, i: (p, i, j)),
                  pl.BlockSpec((2, tn), lambda p, j, i: (0, j))],
        out_specs=pl.BlockSpec((None, tm, tn), lambda p, j, i: (p, i, j)),
        compiler_params=_compiler_params(3),
        cost_estimate=cost,
    )(y_all, ss)


# ----------------------------------------------------------------------------
# Layer lowering (NHWC glue: patch building, phase decomposition)
# ----------------------------------------------------------------------------
def _im2col3_nhwc(x):
    """3x3, stride 1, pad 1 patches.  K ordering: (kh, kw, cin)."""
    # TODO(synk): build these taps in-kernel from a halo'd row slab
    # (memory_space=pl.ANY + make_async_copy) to avoid the 9x HBM blowup.
    B, H, W, C = x.shape
    xp = jnp.pad(x, ((0, 0), (1, 1), (1, 1), (0, 0)))
    wins = [xp[:, r:r + H, s:s + W, :] for r in range(3) for s in range(3)]
    p = jnp.stack(wins, axis=3)                       # (B, H, W, 9, C)
    return p.reshape(B * H * W, 9 * C)


def _conv3_wmat(w_oihw):
    """(O, I, 3, 3) -> (9*I, O) with K ordering (kh, kw, cin)."""
    O = w_oihw.shape[0]
    return w_oihw.transpose(2, 3, 1, 0).reshape(-1, O)


def _phase_patches(x, pr, pc):
    """Sub-pixel phase (pr, pc) of ConvTranspose2d(k=4, s=2, p=1):
    2x2 input window per output pixel.  K ordering: (dy, dx, cin)."""
    B, H, W, C = x.shape
    xp = jnp.pad(x, ((0, 0), (1 - pr, pr), (1 - pc, pc), (0, 0)))
    wins = [xp[:, dy:dy + H, dx:dx + W, :] for dy in (0, 1) for dx in (0, 1)]
    p = jnp.stack(wins, axis=3)                       # (B, H, W, 4, C)
    return p.reshape(B * H * W, 4 * C)


def _phase_wmat(wt, pr, pc):
    """Select the 2x2 kernel taps of ConvTranspose2d weight (Cin, Cout, 4, 4)
    used by output phase (pr, pc); K ordering (dy, dx, cin)."""
    Cin, Cout = wt.shape[0], wt.shape[1]
    kh = [3 - pr, 1 - pr]          # dy = 0, 1
    kw = [3 - pc, 1 - pc]          # dx = 0, 1
    wsel = wt[:, :, kh, :][:, :, :, kw]               # (Cin, Cout, 2, 2)
    return wsel.transpose(2, 3, 0, 1).reshape(4 * Cin, Cout)


def _gen_block(x, wt, gamma, beta):
    """ConvTranspose2d(k=4, s=2, p=1, no bias) + BatchNorm2d + LeakyReLU(0.2)
    on an NHWC bf16 activation; returns NHWC bf16 at 2x resolution."""
    B, H, W, Cin = x.shape
    Cout = wt.shape[1]

    # TODO(synk): replace the XLA-side phase-patch materialization (4x HBM
    # read amplification of x) with in-kernel halo DMA (pl.ANY + make_async_copy).
    patches4 = jnp.stack([_phase_patches(x, pr, pc)
                          for pr in (0, 1) for pc in (0, 1)], axis=0)
    w4 = jnp.stack([_phase_wmat(wt, pr, pc)
                    for pr in (0, 1) for pc in (0, 1)], axis=0)

    y, col_sum, col_ssq, (M, n_pad, tm, tn) = pallas_phase_gemm_stats(patches4, w4)

    # Training-mode BatchNorm statistics (biased variance, eps=1e-5), matching
    # nn.BatchNorm2d in train mode.  Padded output channels / padded M rows
    # (if any) contribute exact zeros to the partial sums; `count` is the true
    # element count.  NOTE: E[y^2]-E[y]^2 in f32 is fine here (|mean| << std);
    # clamped at 0 for safety.
    count = 4.0 * M                                    # = B * 2H * 2W
    mean = col_sum / count
    var = jnp.maximum(col_ssq / count - mean * mean, 0.0)
    gamma_p = jnp.pad(gamma, (0, n_pad - Cout))
    beta_p = jnp.pad(beta, (0, n_pad - Cout))
    scale = gamma_p * lax.rsqrt(var + _BN_EPS)
    shift = beta_p - mean * scale

    a = pallas_bn_lrelu(y, scale, shift, tm, tn)       # (4, m_pad, n_pad) bf16
    # TODO(synk): fold this phase->NHWC interleave into the bn_lrelu output
    # (saves one bf16 activation round trip per block).
    a = a[:, :M, :Cout].reshape(2, 2, B, H, W, Cout)
    out = a.transpose(2, 3, 0, 4, 1, 5).reshape(B, 2 * H, 2 * W, Cout)
    return out


# ----------------------------------------------------------------------------
# Generator parameters / forward (mirrors the PyTorch __init__ / forward)
# ----------------------------------------------------------------------------
def init_generator_params(key, latent_dims, n_channels, max_resolution,
                          max_channels, min_channels):
    assert latent_dims > 16
    num_blocks = int(log2(max_resolution)) - 2
    keys = list(jax.random.split(key, 2 + num_blocks + 2))

    def normal(k, shape, scale=0.05):
        return scale * jax.random.normal(k, shape, dtype=jnp.float32)

    idx = 0
    head_w = normal(keys[idx], (latent_dims // 16, max_channels, 3, 3)); idx += 1
    head_b = normal(keys[idx], (max_channels,)); idx += 1

    blocks = []
    out_c = -1
    for i in range(num_blocks):
        in_c = max(min_channels, max_channels // 2 ** i)
        o_c = max(min_channels, in_c // 2)
        w = normal(keys[idx], (in_c, o_c, 4, 4)); idx += 1      # no bias
        blocks.append((w, jnp.ones((o_c,), jnp.float32), jnp.zeros((o_c,), jnp.float32)))
        out_c = o_c

    tail_w = normal(keys[idx], (n_channels, out_c, 3, 3)); idx += 1
    tail_b = normal(keys[idx], (n_channels,)); idx += 1
    return {"head": (head_w, head_b), "blocks": blocks, "tail": (tail_w, tail_b)}


def generator_forward(latent, params, cfg):
    n_z = cfg["latent_dims"]
    B = latent.shape[0]
    # PyTorch: latent.view(-1, n_z//16, 4, 4)  (NCHW) -> internal NHWC
    x = latent.reshape(B, n_z // 16, 4, 4).transpose(0, 2, 3, 1)

    # Head: ConvTranspose2d(n_z//16, max_channels, 3, 1, 1) with bias.
    wt, b = params["head"]
    wc = jnp.flip(wt, axis=(2, 3)).transpose(1, 0, 2, 3)        # OIHW conv weight
    cout = wc.shape[0]
    y = pallas_gemm_bias_act(_im2col3_nhwc(x), _conv3_wmat(wc), b,
                             act="none", out_dtype=jnp.bfloat16)
    x = y.reshape(B, 4, 4, cout)

    # Upsampling blocks: ConvTranspose2d(4, 2, 1, no bias) + BN + LeakyReLU(0.2)
    for wt, gamma, beta in params["blocks"]:
        x = _gen_block(x, wt, gamma, beta)

    # Tail: Conv2d(out_channels, n_channels, 3, 1, 1) + bias + Tanh
    # Narrow (M, 3) output -> no 128-padded f32 tensor at max resolution.
    w, b = params["tail"]
    _, H, W, _ = x.shape
    n_ch = w.shape[0]
    y = pallas_gemm_bias_act(_im2col3_nhwc(x), _conv3_wmat(w), b,
                             act="tanh", out_dtype=jnp.float32, narrow_out=True)
    return y.reshape(B, H, W, n_ch).transpose(0, 3, 1, 2)       # back to NCHW


# ----------------------------------------------------------------------------
# Pure-JAX reference (lax convolutions, same bf16 matmul inputs) for checking
# ----------------------------------------------------------------------------
def generator_forward_ref(latent, params, cfg):
    n_z = cfg["latent_dims"]
    B = latent.shape[0]
    x = latent.reshape(B, n_z // 16, 4, 4)

    def conv(x, w_oihw, pad, lhs_dil):
        dn = lax.conv_dimension_numbers(x.shape, w_oihw.shape, ("NCHW", "OIHW", "NCHW"))
        return lax.conv_general_dilated(
            x.astype(jnp.bfloat16), w_oihw.astype(jnp.bfloat16), (1, 1),
            [(pad, pad)] * 2, lhs_dilation=(lhs_dil, lhs_dil),
            dimension_numbers=dn, preferred_element_type=jnp.float32)

    wt, b = params["head"]
    wc = jnp.flip(wt, axis=(2, 3)).transpose(1, 0, 2, 3)
    x = conv(x, wc, 1, 1) + b.reshape(1, -1, 1, 1)
    for wt, gamma, beta in params["blocks"]:
        wc = jnp.flip(wt, axis=(2, 3)).transpose(1, 0, 2, 3)
        y = conv(x, wc, 2, 2)
        mean = jnp.mean(y, axis=(0, 2, 3), keepdims=True)
        var = jnp.mean(jnp.square(y - mean), axis=(0, 2, 3), keepdims=True)
        y = (y - mean) * lax.rsqrt(var + _BN_EPS)
        y = y * gamma.reshape(1, -1, 1, 1) + beta.reshape(1, -1, 1, 1)
        x = jnp.where(y >= 0, y, _LRELU_SLOPE * y)
    w, b = params["tail"]
    x = conv(x, w, 1, 1) + b.reshape(1, -1, 1, 1)
    return jnp.tanh(x)


# ----------------------------------------------------------------------------
if __name__ == "__main__":
    # Small but structurally identical configuration:
    #   latent 32 -> view (B, 2, 4, 4); 2 upsampling blocks -> 16x16 output.
    cfg = dict(latent_dims=32, n_channels=3, max_resolution=16,
               max_channels=32, min_channels=8)
    batch = 2

    key = jax.random.PRNGKey(0)
    pkey, zkey = jax.random.split(key)
    params = init_generator_params(pkey, **cfg)
    latent = jax.random.normal(zkey, (batch, cfg["latent_dims"]), dtype=jnp.float32)

    fwd = jax.jit(functools.partial(generator_forward, cfg=cfg))
    out = jax.block_until_ready(fwd(latent, params))

    expected = (batch, cfg["n_channels"], cfg["max_resolution"], cfg["max_resolution"])
    assert out.shape == expected, (out.shape, expected)

    ref = jax.block_until_ready(generator_forward_ref(latent, params, cfg))
    # Tolerance accounts for the bf16 BN intermediate (the only extra rounding
    # step relative to the bf16-input / f32-accumulate reference).
    np.testing.assert_allclose(np.asarray(out), np.asarray(ref), rtol=2e-2, atol=2e-2)

    print("KERNEL_OK")
</pallas_src>

<mosaic_0001>
module attributes {stable_mosaic.version = 11 : i64} {
  func.func @_gemm_bias_act_kernel(%arg0: i32, %arg1: i32, %arg2: memref<32x18xbf16, #tpu.memory_space<vmem>>, %arg3: memref<18x128xbf16, #tpu.memory_space<vmem>>, %arg4: memref<1x128xf32, #tpu.memory_space<vmem>>, %arg5: memref<32x128xbf16, #tpu.memory_space<vmem>>) attributes {dimension_semantics = [#tpu.dimension_semantics<parallel>, #tpu.dimension_semantics<parallel>], iteration_bounds = array<i64: 1, 1>, scalar_prefetch = 0 : i64, scratch_operands = 0 : i64, tpu.core_type = #tpu.core_type<tc>, window_params = [{transform_indices = @transform_0, window_bounds = array<i64: 32, 18>}, {transform_indices = @transform_1, window_bounds = array<i64: 18, 128>}, {transform_indices = @transform_2, window_bounds = array<i64: 1, 128>}, {transform_indices = @transform_3, window_bounds = array<i64: 32, 128>}]} {
    %c0 = arith.constant 0 : index
    %c0_0 = arith.constant 0 : index
    %0 = vector.load %arg2[%c0, %c0_0] : memref<32x18xbf16, #tpu.memory_space<vmem>>, vector<32x18xbf16>
    %c0_1 = arith.constant 0 : index
    %c0_2 = arith.constant 0 : index
    %1 = vector.load %arg3[%c0_1, %c0_2] : memref<18x128xbf16, #tpu.memory_space<vmem>>, vector<18x128xbf16>
    %cst = arith.constant dense<0.000000e+00> : vector<32x128xf32>
    %2 = tpu.matmul %0, %1, %cst {dimension_numbers = #tpu.dot_dimension_numbers<[1], [0], [0], [1], [0, 0, 1, 1], [], []>} : vector<32x18xbf16>, vector<18x128xbf16>, vector<32x128xf32> -> vector<32x128xf32>
    %c0_3 = arith.constant 0 : index
    %c0_4 = arith.constant 0 : index
    %3 = vector.load %arg4[%c0_3, %c0_4] : memref<1x128xf32, #tpu.memory_space<vmem>>, vector<1x128xf32>
    %4 = vector.broadcast %3 : vector<1x128xf32> to vector<32x128xf32>
    %5 = arith.addf %2, %4 : vector<32x128xf32>
    %6 = arith.truncf %5 : vector<32x128xf32> to vector<32x128xbf16>
    %c0_5 = arith.constant 0 : index
    %c0_6 = arith.constant 0 : index
    %7 = vector.load %arg5[%c0_5, %c0_6] : memref<32x128xbf16, #tpu.memory_space<vmem>>, vector<32x128xbf16>
    tpu.vector_store %arg5[%c0_5, %c0_6], %6 {strides = array<i32>} : memref<32x128xbf16, #tpu.memory_space<vmem>>, vector<32x128xbf16>,
    return
  }
  func.func @transform_0(%arg0: i32, %arg1: i32) -> (i32, i32) {
    %c0_i32 = arith.constant 0 : i32
    %c0_i32_0 = arith.constant 0 : i32
    return %arg0, %c0_i32 : i32, i32
  }
  func.func @transform_1(%arg0: i32, %arg1: i32) -> (i32, i32) {
    %c0_i32 = arith.constant 0 : i32
    %c0_i32_0 = arith.constant 0 : i32
    return %c0_i32, %arg1 : i32, i32
  }
  func.func @transform_2(%arg0: i32, %arg1: i32) -> (i32, i32) {
    %c0_i32 = arith.constant 0 : i32
    %c0_i32_0 = arith.constant 0 : i32
    return %c0_i32, %arg1 : i32, i32
  }
  func.func @transform_3(%arg0: i32, %arg1: i32) -> (i32, i32) {
    %c0_i32 = arith.constant 0 : i32
    return %arg0, %arg1 : i32, i32
  }
}

module attributes {stable_mosaic.version = 11 : i64} {
  func.func @_gemm_colstats_kernel(%arg0: i32, %arg1: i32, %arg2: i32, %arg3: memref<1x32x128xbf16, #tpu.memory_space<vmem>>, %arg4: memref<1x128x128xbf16, #tpu.memory_space<vmem>>, %arg5: memref<1x32x128xbf16, #tpu.memory_space<vmem>>, %arg6: memref<1x8x128xf32, #tpu.memory_space<vmem>>, %arg7: memref<1x8x128xf32, #tpu.memory_space<vmem>>) attributes {dimension_semantics = [#tpu.dimension_semantics<parallel>, #tpu.dimension_semantics<parallel>, #tpu.dimension_semantics<parallel>], iteration_bounds = array<i64: 4, 1, 1>, scalar_prefetch = 0 : i64, scratch_operands = 0 : i64, tpu.core_type = #tpu.core_type<tc>, window_params = [{transform_indices = @transform_0, window_bounds = array<i64: 1, 32, 128>}, {transform_indices = @transform_1, window_bounds = array<i64: 1, 128, 128>}, {transform_indices = @transform_2, window_bounds = array<i64: 1, 32, 128>}, {transform_indices = @transform_3, window_bounds = array<i64: 1, 8, 128>}, {transform_indices = @transform_4, window_bounds = array<i64: 1, 8, 128>}]} {
    %c0 = arith.constant 0 : index
    %c0_0 = arith.constant 0 : index
    %c0_1 = arith.constant 0 : index
    %0 = vector.load %arg3[%c0, %c0_0, %c0_1] : memref<1x32x128xbf16, #tpu.memory_space<vmem>>, vector<1x32x128xbf16>
    %1 = vector.shape_cast %0 : vector<1x32x128xbf16> to vector<32x128xbf16>
    %c0_2 = arith.constant 0 : index
    %c0_3 = arith.constant 0 : index
    %c0_4 = arith.constant 0 : index
    %2 = vector.load %arg4[%c0_2, %c0_3, %c0_4] : memref<1x128x128xbf16, #tpu.memory_space<vmem>>, vector<1x128x128xbf16>
    %3 = vector.shape_cast %2 : vector<1x128x128xbf16> to vector<128x128xbf16>
    %cst = arith.constant dense<0.000000e+00> : vector<32x128xf32>
    %4 = tpu.matmul %1, %3, %cst {dimension_numbers = #tpu.dot_dimension_numbers<[1], [0], [0], [1], [0, 0, 1, 1], [], []>} : vector<32x128xbf16>, vector<128x128xbf16>, vector<32x128xf32> -> vector<32x128xf32>
    %cst_5 = arith.constant dense<0.000000e+00> : vector<128xf32>
    %5 = vector.multi_reduction <add>, %4, %cst_5 [0] : vector<32x128xf32> to vector<128xf32>
    %6 = vector.shape_cast %5 : vector<128xf32> to vector<1x128xf32>
    %c0_6 = arith.constant 0 : index
    %c0_7 = arith.constant 0 : index
    %c0_8 = arith.constant 0 : index
    %7 = vector.load %arg6[%c0_6, %c0_7, %c0_8] : memref<1x8x128xf32, #tpu.memory_space<vmem>>, vector<1x1x128xf32>
    %8 = vector.shape_cast %7 : vector<1x1x128xf32> to vector<1x128xf32>
    %9 = vector.shape_cast %6 : vector<1x128xf32> to vector<1x1x128xf32>
    tpu.vector_store %arg6[%c0_6, %c0_7, %c0_8], %9 {strides = array<i32>} : memref<1x8x128xf32, #tpu.memory_space<vmem>>, vector<1x1x128xf32>,
    %10 = arith.mulf %4, %4 : vector<32x128xf32>
    %cst_9 = arith.constant dense<0.000000e+00> : vector<128xf32>
    %11 = vector.multi_reduction <add>, %10, %cst_9 [0] : vector<32x128xf32> to vector<128xf32>
    %12 = vector.shape_cast %11 : vector<128xf32> to vector<1x128xf32>
    %c0_10 = arith.constant 0 : index
    %c0_11 = arith.constant 0 : index
    %c0_12 = arith.constant 0 : index
    %13 = vector.load %arg7[%c0_10, %c0_11, %c0_12] : memref<1x8x128xf32, #tpu.memory_space<vmem>>, vector<1x1x128xf32>
    %14 = vector.shape_cast %13 : vector<1x1x128xf32> to vector<1x128xf32>
    %15 = vector.shape_cast %12 : vector<1x128xf32> to vector<1x1x128xf32>
    tpu.vector_store %arg7[%c0_10, %c0_11, %c0_12], %15 {strides = array<i32>} : memref<1x8x128xf32, #tpu.memory_space<vmem>>, vector<1x1x128xf32>,
    %16 = arith.truncf %4 : vector<32x128xf32> to vector<32x128xbf16>
    %c0_13 = arith.constant 0 : index
    %c0_14 = arith.constant 0 : index
    %c0_15 = arith.constant 0 : index
    %17 = vector.load %arg5[%c0_13, %c0_14, %c0_15] : memref<1x32x128xbf16, #tpu.memory_space<vmem>>, vector<1x32x128xbf16>
    %18 = vector.shape_cast %17 : vector<1x32x128xbf16> to vector<32x128xbf16>
    %19 = vector.shape_cast %16 : vector<32x128xbf16> to vector<1x32x128xbf16>
    tpu.vector_store %arg5[%c0_13, %c0_14, %c0_15], %19 {strides = array<i32>} : memref<1x32x128xbf16, #tpu.memory_space<vmem>>, vector<1x32x128xbf16>,
    return
  }
  func.func @transform_0(%arg0: i32, %arg1: i32, %arg2: i32) -> (i32, i32, i32) {
    %c0_i32 = arith.constant 0 : i32
    %c0_i32_0 = arith.constant 0 : i32
    return %arg0, %arg1, %c0_i32 : i32, i32, i32
  }
  func.func @transform_1(%arg0: i32, %arg1: i32, %arg2: i32) -> (i32, i32, i32) {
    %c0_i32 = arith.constant 0 : i32
    %c0_i32_0 = arith.constant 0 : i32
    return %arg0, %c0_i32, %arg2 : i32, i32, i32
  }
  func.func @transform_2(%arg0: i32, %arg1: i32, %arg2: i32) -> (i32, i32, i32) {
    %c0_i32 = arith.constant 0 : i32
    return %arg0, %arg1, %arg2 : i32, i32, i32
  }
  func.func @transform_3(%arg0: i32, %arg1: i32, %arg2: i32) -> (i32, i32, i32) {
    %c0_i32 = arith.constant 0 : i32
    return %arg0, %arg1, %arg2 : i32, i32, i32
  }
  func.func @transform_4(%arg0: i32, %arg1: i32, %arg2: i32) -> (i32, i32, i32) {
    %c0_i32 = arith.constant 0 : i32
    return %arg0, %arg1, %arg2 : i32, i32, i32
  }
}

module attributes {stable_mosaic.version = 11 : i64} {
  func.func @_bn_lrelu_kernel(%arg0: i32, %arg1: i32, %arg2: i32, %arg3: memref<1x32x128xbf16, #tpu.memory_space<vmem>>, %arg4: memref<2x128xf32, #tpu.memory_space<vmem>>, %arg5: memref<1x32x128xbf16, #tpu.memory_space<vmem>>) attributes {dimension_semantics = [#tpu.dimension_semantics<parallel>, #tpu.dimension_semantics<parallel>, #tpu.dimension_semantics<parallel>], iteration_bounds = array<i64: 4, 1, 1>, scalar_prefetch = 0 : i64, scratch_operands = 0 : i64, tpu.core_type = #tpu.core_type<tc>, window_params = [{transform_indices = @transform_0, window_bounds = array<i64: 1, 32, 128>}, {transform_indices = @transform_1, window_bounds = array<i64: 2, 128>}, {transform_indices = @transform_2, window_bounds = array<i64: 1, 32, 128>}]} {
    %c0 = arith.constant 0 : index
    %c0_0 = arith.constant 0 : index
    %c0_1 = arith.constant 0 : index
    %0 = vector.load %arg3[%c0, %c0_0, %c0_1] : memref<1x32x128xbf16, #tpu.memory_space<vmem>>, vector<1x32x128xbf16>
    %1 = vector.shape_cast %0 : vector<1x32x128xbf16> to vector<32x128xbf16>
    %2 = arith.extf %1 : vector<32x128xbf16> to vector<32x128xf32>
    %c0_2 = arith.constant 0 : index
    %c0_3 = arith.constant 0 : index
    %3 = vector.load %arg4[%c0_2, %c0_3] : memref<2x128xf32, #tpu.memory_space<vmem>>, vector<1x128xf32>
    %4 = vector.broadcast %3 : vector<1x128xf32> to vector<32x128xf32>
    %5 = arith.mulf %2, %4 : vector<32x128xf32>
    %c1 = arith.constant 1 : index
    %c0_4 = arith.constant 0 : index
    %6 = vector.load %arg4[%c1, %c0_4] : memref<2x128xf32, #tpu.memory_space<vmem>>, vector<1x128xf32>
    %7 = vector.broadcast %6 : vector<1x128xf32> to vector<32x128xf32>
    %8 = arith.addf %5, %7 : vector<32x128xf32>
    %cst = arith.constant 0.000000e+00 : f32
    %9 = vector.broadcast %cst : f32 to vector<32x128xf32>
    %10 = arith.cmpf oge, %8, %9 : vector<32x128xf32>
    %cst_5 = arith.constant 2.000000e-01 : f32
    %11 = vector.broadcast %cst_5 : f32 to vector<32x128xf32>
    %12 = arith.mulf %11, %8 : vector<32x128xf32>
    %13 = arith.select %10, %8, %12 : vector<32x128xi1>, vector<32x128xf32>
    %14 = arith.truncf %13 : vector<32x128xf32> to vector<32x128xbf16>
    %c0_6 = arith.constant 0 : index
    %c0_7 = arith.constant 0 : index
    %c0_8 = arith.constant 0 : index
    %15 = vector.load %arg5[%c0_6, %c0_7, %c0_8] : memref<1x32x128xbf16, #tpu.memory_space<vmem>>, vector<1x32x128xbf16>
    %16 = vector.shape_cast %15 : vector<1x32x128xbf16> to vector<32x128xbf16>
    %17 = vector.shape_cast %14 : vector<32x128xbf16> to vector<1x32x128xbf16>
    tpu.vector_store %arg5[%c0_6, %c0_7, %c0_8], %17 {strides = array<i32>} : memref<1x32x128xbf16, #tpu.memory_space<vmem>>, vector<1x32x128xbf16>,
    return
  }
  func.func @transform_0(%arg0: i32, %arg1: i32, %arg2: i32) -> (i32, i32, i32) {
    %c0_i32 = arith.constant 0 : i32
    return %arg0, %arg2, %arg1 : i32, i32, i32
  }
  func.func @transform_1(%arg0: i32, %arg1: i32, %arg2: i32) -> (i32, i32) {
    %c0_i32 = arith.constant 0 : i32
    %c0_i32_0 = arith.constant 0 : i32
    return %c0_i32, %arg1 : i32, i32
  }
  func.func @transform_2(%arg0: i32, %arg1: i32, %arg2: i32) -> (i32, i32, i32) {
    %c0_i32 = arith.constant 0 : i32
    return %arg0, %arg2, %arg1 : i32, i32, i32
  }
}

module attributes {stable_mosaic.version = 11 : i64} {
  func.func @_gemm_colstats_kernel(%arg0: i32, %arg1: i32, %arg2: i32, %arg3: memref<1x128x64xbf16, #tpu.memory_space<vmem>>, %arg4: memref<1x64x128xbf16, #tpu.memory_space<vmem>>, %arg5: memref<1x128x128xbf16, #tpu.memory_space<vmem>>, %arg6: memref<1x8x128xf32, #tpu.memory_space<vmem>>, %arg7: memref<1x8x128xf32, #tpu.memory_space<vmem>>) attributes {dimension_semantics = [#tpu.dimension_semantics<parallel>, #tpu.dimension_semantics<parallel>, #tpu.dimension_semantics<parallel>], iteration_bounds = array<i64: 4, 1, 1>, scalar_prefetch = 0 : i64, scratch_operands = 0 : i64, tpu.core_type = #tpu.core_type<tc>, window_params = [{transform_indices = @transform_0, window_bounds = array<i64: 1, 128, 64>}, {transform_indices = @transform_1, window_bounds = array<i64: 1, 64, 128>}, {transform_indices = @transform_2, window_bounds = array<i64: 1, 128, 128>}, {transform_indices = @transform_3, window_bounds = array<i64: 1, 8, 128>}, {transform_indices = @transform_4, window_bounds = array<i64: 1, 8, 128>}]} {
    %c0 = arith.constant 0 : index
    %c0_0 = arith.constant 0 : index
    %c0_1 = arith.constant 0 : index
    %0 = vector.load %arg3[%c0, %c0_0, %c0_1] : memref<1x128x64xbf16, #tpu.memory_space<vmem>>, vector<1x128x64xbf16>
    %1 = vector.shape_cast %0 : vector<1x128x64xbf16> to vector<128x64xbf16>
    %c0_2 = arith.constant 0 : index
    %c0_3 = arith.constant 0 : index
    %c0_4 = arith.constant 0 : index
    %2 = vector.load %arg4[%c0_2, %c0_3, %c0_4] : memref<1x64x128xbf16, #tpu.memory_space<vmem>>, vector<1x64x128xbf16>
    %3 = vector.shape_cast %2 : vector<1x64x128xbf16> to vector<64x128xbf16>
    %cst = arith.constant dense<0.000000e+00> : vector<128x128xf32>
    %4 = tpu.matmul %1, %3, %cst {dimension_numbers = #tpu.dot_dimension_numbers<[1], [0], [0], [1], [0, 0, 1, 1], [], []>} : vector<128x64xbf16>, vector<64x128xbf16>, vector<128x128xf32> -> vector<128x128xf32>
    %cst_5 = arith.constant dense<0.000000e+00> : vector<128xf32>
    %5 = vector.multi_reduction <add>, %4, %cst_5 [0] : vector<128x128xf32> to vector<128xf32>
    %6 = vector.shape_cast %5 : vector<128xf32> to vector<1x128xf32>
    %c0_6 = arith.constant 0 : index
    %c0_7 = arith.constant 0 : index
    %c0_8 = arith.constant 0 : index
    %7 = vector.load %arg6[%c0_6, %c0_7, %c0_8] : memref<1x8x128xf32, #tpu.memory_space<vmem>>, vector<1x1x128xf32>
    %8 = vector.shape_cast %7 : vector<1x1x128xf32> to vector<1x128xf32>
    %9 = vector.shape_cast %6 : vector<1x128xf32> to vector<1x1x128xf32>
    tpu.vector_store %arg6[%c0_6, %c0_7, %c0_8], %9 {strides = array<i32>} : memref<1x8x128xf32, #tpu.memory_space<vmem>>, vector<1x1x128xf32>,
    %10 = arith.mulf %4, %4 : vector<128x128xf32>
    %cst_9 = arith.constant dense<0.000000e+00> : vector<128xf32>
    %11 = vector.multi_reduction <add>, %10, %cst_9 [0] : vector<128x128xf32> to vector<128xf32>
    %12 = vector.shape_cast %11 : vector<128xf32> to vector<1x128xf32>
    %c0_10 = arith.constant 0 : index
    %c0_11 = arith.constant 0 : index
    %c0_12 = arith.constant 0 : index
    %13 = vector.load %arg7[%c0_10, %c0_11, %c0_12] : memref<1x8x128xf32, #tpu.memory_space<vmem>>, vector<1x1x128xf32>
    %14 = vector.shape_cast %13 : vector<1x1x128xf32> to vector<1x128xf32>
    %15 = vector.shape_cast %12 : vector<1x128xf32> to vector<1x1x128xf32>
    tpu.vector_store %arg7[%c0_10, %c0_11, %c0_12], %15 {strides = array<i32>} : memref<1x8x128xf32, #tpu.memory_space<vmem>>, vector<1x1x128xf32>,
    %16 = arith.truncf %4 : vector<128x128xf32> to vector<128x128xbf16>
    %c0_13 = arith.constant 0 : index
    %c0_14 = arith.constant 0 : index
    %c0_15 = arith.constant 0 : index
    %17 = vector.load %arg5[%c0_13, %c0_14, %c0_15] : memref<1x128x128xbf16, #tpu.memory_space<vmem>>, vector<1x128x128xbf16>
    %18 = vector.shape_cast %17 : vector<1x128x128xbf16> to vector<128x128xbf16>
    %19 = vector.shape_cast %16 : vector<128x128xbf16> to vector<1x128x128xbf16>
    tpu.vector_store %arg5[%c0_13, %c0_14, %c0_15], %19 {strides = array<i32>} : memref<1x128x128xbf16, #tpu.memory_space<vmem>>, vector<1x128x128xbf16>,
    return
  }
  func.func @transform_0(%arg0: i32, %arg1: i32, %arg2: i32) -> (i32, i32, i32) {
    %c0_i32 = arith.constant 0 : i32
    %c0_i32_0 = arith.constant 0 : i32
    return %arg0, %arg1, %c0_i32 : i32, i32, i32
  }
  func.func @transform_1(%arg0: i32, %arg1: i32, %arg2: i32) -> (i32, i32, i32) {
    %c0_i32 = arith.constant 0 : i32
    %c0_i32_0 = arith.constant 0 : i32
    return %arg0, %c0_i32, %arg2 : i32, i32, i32
  }
  func.func @transform_2(%arg0: i32, %arg1: i32, %arg2: i32) -> (i32, i32, i32) {
    %c0_i32 = arith.constant 0 : i32
    return %arg0, %arg1, %arg2 : i32, i32, i32
  }
  func.func @transform_3(%arg0: i32, %arg1: i32, %arg2: i32) -> (i32, i32, i32) {
    %c0_i32 = arith.constant 0 : i32
    return %arg0, %arg1, %arg2 : i32, i32, i32
  }
  func.func @transform_4(%arg0: i32, %arg1: i32, %arg2: i32) -> (i32, i32, i32) {
    %c0_i32 = arith.constant 0 : i32
    return %arg0, %arg1, %arg2 : i32, i32, i32
  }
}

module attributes {stable_mosaic.version = 11 : i64} {
  func.func @_bn_lrelu_kernel(%arg0: i32, %arg1: i32, %arg2: i32, %arg3: memref<1x128x128xbf16, #tpu.memory_space<vmem>>, %arg4: memref<2x128xf32, #tpu.memory_space<vmem>>, %arg5: memref<1x128x128xbf16, #tpu.memory_space<vmem>>) attributes {dimension_semantics = [#tpu.dimension_semantics<parallel>, #tpu.dimension_semantics<parallel>, #tpu.dimension_semantics<parallel>], iteration_bounds = array<i64: 4, 1, 1>, scalar_prefetch = 0 : i64, scratch_operands = 0 : i64, tpu.core_type = #tpu.core_type<tc>, window_params = [{transform_indices = @transform_0, window_bounds = array<i64: 1, 128, 128>}, {transform_indices = @transform_1, window_bounds = array<i64: 2, 128>}, {transform_indices = @transform_2, window_bounds = array<i64: 1, 128, 128>}]} {
    %c0 = arith.constant 0 : index
    %c0_0 = arith.constant 0 : index
    %c0_1 = arith.constant 0 : index
    %0 = vector.load %arg3[%c0, %c0_0, %c0_1] : memref<1x128x128xbf16, #tpu.memory_space<vmem>>, vector<1x128x128xbf16>
    %1 = vector.shape_cast %0 : vector<1x128x128xbf16> to vector<128x128xbf16>
    %2 = arith.extf %1 : vector<128x128xbf16> to vector<128x128xf32>
    %c0_2 = arith.constant 0 : index
    %c0_3 = arith.constant 0 : index
    %3 = vector.load %arg4[%c0_2, %c0_3] : memref<2x128xf32, #tpu.memory_space<vmem>>, vector<1x128xf32>
    %4 = vector.broadcast %3 : vector<1x128xf32> to vector<128x128xf32>
    %5 = arith.mulf %2, %4 : vector<128x128xf32>
    %c1 = arith.constant 1 : index
    %c0_4 = arith.constant 0 : index
    %6 = vector.load %arg4[%c1, %c0_4] : memref<2x128xf32, #tpu.memory_space<vmem>>, vector<1x128xf32>
    %7 = vector.broadcast %6 : vector<1x128xf32> to vector<128x128xf32>
    %8 = arith.addf %5, %7 : vector<128x128xf32>
    %cst = arith.constant 0.000000e+00 : f32
    %9 = vector.broadcast %cst : f32 to vector<128x128xf32>
    %10 = arith.cmpf oge, %8, %9 : vector<128x128xf32>
    %cst_5 = arith.constant 2.000000e-01 : f32
    %11 = vector.broadcast %cst_5 : f32 to vector<128x128xf32>
    %12 = arith.mulf %11, %8 : vector<128x128xf32>
    %13 = arith.select %10, %8, %12 : vector<128x128xi1>, vector<128x128xf32>
    %14 = arith.truncf %13 : vector<128x128xf32> to vector<128x128xbf16>
    %c0_6 = arith.constant 0 : index
    %c0_7 = arith.constant 0 : index
    %c0_8 = arith.constant 0 : index
    %15 = vector.load %arg5[%c0_6, %c0_7, %c0_8] : memref<1x128x128xbf16, #tpu.memory_space<vmem>>, vector<1x128x128xbf16>
    %16 = vector.shape_cast %15 : vector<1x128x128xbf16> to vector<128x128xbf16>
    %17 = vector.shape_cast %14 : vector<128x128xbf16> to vector<1x128x128xbf16>
    tpu.vector_store %arg5[%c0_6, %c0_7, %c0_8], %17 {strides = array<i32>} : memref<1x128x128xbf16, #tpu.memory_space<vmem>>, vector<1x128x128xbf16>,
    return
  }
  func.func @transform_0(%arg0: i32, %arg1: i32, %arg2: i32) -> (i32, i32, i32) {
    %c0_i32 = arith.constant 0 : i32
    return %arg0, %arg2, %arg1 : i32, i32, i32
  }
  func.func @transform_1(%arg0: i32, %arg1: i32, %arg2: i32) -> (i32, i32) {
    %c0_i32 = arith.constant 0 : i32
    %c0_i32_0 = arith.constant 0 : i32
    return %c0_i32, %arg1 : i32, i32
  }
  func.func @transform_2(%arg0: i32, %arg1: i32, %arg2: i32) -> (i32, i32, i32) {
    %c0_i32 = arith.constant 0 : i32
    return %arg0, %arg2, %arg1 : i32, i32, i32
  }
}

module attributes {stable_mosaic.version = 11 : i64} {
  func.func @_gemm_bias_act_kernel(%arg0: i32, %arg1: i32, %arg2: memref<512x72xbf16, #tpu.memory_space<vmem>>, %arg3: memref<72x128xbf16, #tpu.memory_space<vmem>>, %arg4: memref<1x128xf32, #tpu.memory_space<vmem>>, %arg5: memref<512x3xf32, #tpu.memory_space<vmem>>) attributes {dimension_semantics = [#tpu.dimension_semantics<parallel>, #tpu.dimension_semantics<parallel>], iteration_bounds = array<i64: 1, 1>, scalar_prefetch = 0 : i64, scratch_operands = 0 : i64, tpu.core_type = #tpu.core_type<tc>, window_params = [{transform_indices = @transform_0, window_bounds = array<i64: 512, 72>}, {transform_indices = @transform_1, window_bounds = array<i64: 72, 128>}, {transform_indices = @transform_2, window_bounds = array<i64: 1, 128>}, {transform_indices = @transform_3, window_bounds = array<i64: 512, 3>}]} {
    %c0 = arith.constant 0 : index
    %c0_0 = arith.constant 0 : index
    %0 = vector.load %arg2[%c0, %c0_0] : memref<512x72xbf16, #tpu.memory_space<vmem>>, vector<512x72xbf16>
    %c0_1 = arith.constant 0 : index
    %c0_2 = arith.constant 0 : index
    %1 = vector.load %arg3[%c0_1, %c0_2] : memref<72x128xbf16, #tpu.memory_space<vmem>>, vector<72x128xbf16>
    %cst = arith.constant dense<0.000000e+00> : vector<512x128xf32>
    %2 = tpu.matmul %0, %1, %cst {dimension_numbers = #tpu.dot_dimension_numbers<[1], [0], [0], [1], [0, 0, 1, 1], [], []>} : vector<512x72xbf16>, vector<72x128xbf16>, vector<512x128xf32> -> vector<512x128xf32>
    %c0_3 = arith.constant 0 : index
    %c0_4 = arith.constant 0 : index
    %3 = vector.load %arg4[%c0_3, %c0_4] : memref<1x128xf32, #tpu.memory_space<vmem>>, vector<1x128xf32>
    %4 = vector.broadcast %3 : vector<1x128xf32> to vector<512x128xf32>
    %5 = arith.addf %2, %4 : vector<512x128xf32>
    %6 = math.tanh %5 : vector<512x128xf32>
    %7 = vector.extract_strided_slice %6 {offsets = [0, 0], sizes = [512, 3], strides = [1, 1]} : vector<512x128xf32> to vector<512x3xf32>
    %c0_5 = arith.constant 0 : index
    %c0_6 = arith.constant 0 : index
    %8 = vector.load %arg5[%c0_5, %c0_6] : memref<512x3xf32, #tpu.memory_space<vmem>>, vector<512x3xf32>
    tpu.vector_store %arg5[%c0_5, %c0_6], %7 {strides = array<i32>} : memref<512x3xf32, #tpu.memory_space<vmem>>, vector<512x3xf32>,
    return
  }
  func.func @transform_0(%arg0: i32, %arg1: i32) -> (i32, i32) {
    %c0_i32 = arith.constant 0 : i32
    %c0_i32_0 = arith.constant 0 : i32
    return %arg0, %c0_i32 : i32, i32
  }
  func.func @transform_1(%arg0: i32, %arg1: i32) -> (i32, i32) {
    %c0_i32 = arith.constant 0 : i32
    %c0_i32_0 = arith.constant 0 : i32
    return %c0_i32, %arg1 : i32, i32
  }
  func.func @transform_2(%arg0: i32, %arg1: i32) -> (i32, i32) {
    %c0_i32 = arith.constant 0 : i32
    %c0_i32_0 = arith.constant 0 : i32
    return %c0_i32, %arg1 : i32, i32
  }
  func.func @transform_3(%arg0: i32, %arg1: i32) -> (i32, i32) {
    %c0_i32 = arith.constant 0 : i32
    %c0_i32_0 = arith.constant 0 : i32
    return %arg0, %c0_i32 : i32, i32
  }
}

</mosaic_0001>

<llo_original>
// kernel: generator_forward.6
$region0: #{generator_forward.6}
  #allocation0 [shape = 'u32[]', space=smem, size = 0x4, offset = 0x4, fixed_abs, tag = 'smem constant byte address 0x4 - core index']
  #allocation1 [shape = 'u32[72,128]{1,0:T(1,128)}', space=vmem, size = 0x9000, scoped, tag = 'internal scratch']
  %s0 = inlined_call_operand.vmem [shape: bf16[32,18], index: 0, kind: input, shape index: {}]
  %s1 = inlined_call_operand.vmem [shape: bf16[18,128], index: 1, kind: input, shape index: {}]
  %s2 = inlined_call_operand.vmem [shape: f32[1,128], index: 2, kind: input, shape index: {}]
  %s3 = inlined_call_operand.vmem [shape: bf16[32,128], index: 3, kind: output, shape index: {}]
  %s4 = sld [smem:[#allocation0]]
  $region22: #{generator_forward.6} parent=0
    _
  %s6 = ssub.s32 1, %s4
  %s7 = scalar_select 0, %s6, %s4
  // Predicated region
  $region2: #{generator_forward.6} parent=0 // pred_check
    _
  $region3: #{generator_forward.6} parent=0 // pred_check_branch
    %9 = sbr.rel (0) target = $region5
  $region4: #{generator_forward.6} parent=0 // pred_region
    _
  $region5: #{generator_forward.6} parent=0 // pred_fallthru
    _
  // Predicated region
  $region6: #{generator_forward.6} parent=0 // pred_check
    _
  $region7: #{generator_forward.6} parent=0 // pred_check_branch
    %11 = sbr.rel (0) target = $region9
  $region8: #{generator_forward.6} parent=0 // pred_region
    _
  $region9: #{generator_forward.6} parent=0 // pred_fallthru
    _
  // Predicated region
  $region10: #{generator_forward.6} parent=0 // pred_check
    _
  $region11: #{generator_forward.6} parent=0 // pred_check_branch
    %13 = sbr.rel (0) target = $region13
  $region12: #{generator_forward.6} parent=0 // pred_region
    _
  $region13: #{generator_forward.6} parent=0 // pred_fallthru
    _
  %v15 = vld [vmem:[%s0] sm:$0xf]
  %v16 = vld [vmem:[%s0 + $0x4] sm:$0xf]
  %v17 = vld [vmem:[%s0 + $0x8] sm:$0xf]
  %v18 = vld [vmem:[%s0 + $0xc] sm:$0xf]
  %v19 = vld [vmem:[%s1] sm:$0xf]
  %v20 = vld [vmem:[%s1 + $0x4] sm:$0xf]
  %v21 = vld [vmem:[%s1 + $0x8] sm:$0x1]
  %v22 = vld [vmem:[%s2] sm:$0x1]
  %v24 = vperm.slane %v22, 0
  %v30 = vunpack.c.l.b16 %v15
  %v31 = vunpack.c.l.b16 %v16
  %v32 = vunpack.c.l.b16 %v17
  %v33 = vunpack.c.l.b16 %v18
  %v34 = vpack.c.b16 %v31, %v30
  %v35 = vpack.c.b16 %v33, %v32
  %v39 = vunpack.c.l.b16 %v19
  %v40 = vunpack.c.l.b16 %v20
  %v41 = vunpack.c.l.b16 %v21
  %v42 = vpack.c.b16 %v40, %v39
  %v43 = vpack.c.b16 %v41, %v41
  %vm45 = vcmask 146432
  %v47 = vsel %vm45, %v34, 0
  %v50 = vsel %vm45, %v35, 0
  %vm52 = vcmask 1040384
  %v54 = vsel %vm52, %v43, 0
  %56 = vmatpush.bf16.msra.mxu0 0
  %57 = vmatpush.bf16.msra.mxu0 0
  %58 = vmatpush.bf16.msra.mxu0 0
  %59 = vmatpush.bf16.msra.mxu0 0
  %60 = vmatpush.bf16.msra.mxu0 0
  %61 = vmatpush.bf16.msra.mxu0 0
  %62 = vmatpush.bf16.msra.mxu0 %v54
  %63 = vmatpush.bf16.msra.mxu0 %v42
  %64 = vmatmul.bf16.gmra.mxu0 %v47
  %v65 = vpop.f32.mrf.mxu0
  %v66 = vadd.f32 %v24, %v65
  %v67 = vpop.f32.mrf.mxu0
  %v68 = vadd.f32 %v24, %v67
  %69 = vmatmul.bf16.gmra.mxu0 %v50
  %v70 = vpop.f32.mrf.mxu0
  %v71 = vadd.f32 %v24, %v70
  %v72 = vpop.f32.mrf.mxu0
  %v73 = vadd.f32 %v24, %v72
  %74 = vdwg.mxu0
  %v75 = vpack.c.bf16 %v66, %v66
  %v76 = vpack.c.bf16 %v68, %v68
  %v77 = vpack.c.bf16 %v71, %v71
  %v78 = vpack.c.bf16 %v73, %v73
  %79 = vst [vmem:[%s3] sm:$0xf] %v75
  %80 = vst [vmem:[%s3 + $0x4] sm:$0xf] %v76
  %81 = vst [vmem:[%s3 + $0x8] sm:$0xf] %v77
  %82 = vst [vmem:[%s3 + $0xc] sm:$0xf] %v78
  // Predicated region
  $region14: #{generator_forward.6} parent=0 // pred_check
    _
  $region15: #{generator_forward.6} parent=0 // pred_check_branch
    %84 = sbr.rel (0) target = $region17
  $region16: #{generator_forward.6} parent=0 // pred_region
    _
  $region17: #{generator_forward.6} parent=0 // pred_fallthru
    _
  // Predicated region
  $region18: #{generator_forward.6} parent=0 // pred_check
    _
  $region19: #{generator_forward.6} parent=0 // pred_check_branch
    %86 = sbr.rel (0) target = $region21
  $region20: #{generator_forward.6} parent=0 // pred_region
    _
  $region21: #{generator_forward.6} parent=0 // pred_fallthru
    _

// kernel: generator_forward.7
$region0: #{generator_forward.7}
  #allocation0 [shape = 'u32[]', space=smem, size = 0x4, offset = 0x4, fixed_abs, tag = 'smem constant byte address 0x4 - core index']
  #allocation1 [shape = 'u32[72,128]{1,0:T(1,128)}', space=vmem, size = 0x9000, scoped, tag = 'internal scratch']
  %s0 = inlined_call_operand.vmem [shape: bf16[4,32,128], index: 0, kind: input, shape index: {}]
  %s1 = inlined_call_operand.vmem [shape: bf16[4,128,128], index: 1, kind: input, shape index: {}]
  %s2 = inlined_call_operand.vmem [shape: bf16[4,32,128], index: 2, kind: output, shape index: {0}]
  %s3 = inlined_call_operand.vmem [shape: f32[4,8,128], index: 3, kind: output, shape index: {1}]
  %s4 = inlined_call_operand.vmem [shape: f32[4,8,128], index: 4, kind: output, shape index: {2}]
  %5 = xla_tuple %s2, %s3, %s4
  %s6 = sld [smem:[#allocation0]]
  $region57: #{generator_forward.7} parent=0
    _
  %s8 = ssub.s32 1, %s6
  %s9 = scalar_select 0, %s8, %s6
  loop: start=0, step=1, limit=6
  $region2: #{generator_forward.7} parent=0 // loop_pre_header
    _
  $region3: #{generator_forward.7} parent=0 // loop_header
    %s11 = sphi 0, %s15
    %p12 = scmp.ge.s32.totalorder %s11, 6
    %s18 = sphi 0, %s37
    %s19 = sphi 0, %s33
    %s20 = sphi 0, %s29
    %s21 = sphi 0, %s18
    %s22 = sphi 0, %s19
    %s23 = sphi 0, %s20
    %s24 = sphi 0, %s21
    %s25 = sphi 0, %s22
    %s26 = sphi 0, %s23
    %s42 = sphi 0, %s44
    %s45 = sphi 0, %s42
    %s46 = sphi 0, %s45
    %s62 = sphi 0, %s46
    %s70 = sphi 0, %s72
    %s73 = sphi 0, %s70
    %s74 = sphi 0, %s73
    %s90 = sphi 0, %s74
    %s100 = sphi 0, %s102
    %s103 = sphi 0, %s100
    %s104 = sphi 0, %s103
    %s120 = sphi 0, %s104
    %s130 = sphi 0, %s132
    %s133 = sphi 0, %s130
    %s134 = sphi 0, %s133
    %s150 = sphi 0, %s134
    %s160 = sphi 0, %s162
    %s163 = sphi 0, %s160
    %s164 = sphi 0, %s163
    %s180 = sphi 0, %s164
  $region4: #{generator_forward.7} parent=0 // loop_header_branch
    %14 = sbr.rel (%p12) target = $region8
  $region5: #{generator_forward.7} parent=0 // loop_body
    %s16 = ssub.s32 %s11, 1
    %s17 = ssub.s32 %s11, 2
    %s27 = sadd.s32 1, %s20
    %p28 = scmp.ge.s32.totalorder %s27, 1
    %s29 = scalar_select %p28, 0, %s27
    %s30 = sadd.s32 1, %s19
    %s31 = scalar_select %p28, %s30, %s19
    %p32 = scmp.ge.s32.totalorder %s31, 1
    %s33 = scalar_select %p32, 0, %s31
    %s34 = sadd.s32 1, %s18
    %s35 = scalar_select %p32, %s34, %s18
    %p36 = scmp.ge.s32.totalorder %s35, 4
    %s37 = scalar_select %p36, 0, %s35
    %s38 = ssub.s32 %s18, %s37
    %s39 = ssub.s32 %s19, %s33
    %s40 = sor.u32 %s38, %s39
    %p41 = scmp.eq.s32.totalorder %s40, 0
    %s43 = sadd.s32 %s42, 1
    %s44 = scalar_select %p41, %s42, %s43
    %p47 = pneg %p41
    %p48 = scmp.eq.s32.totalorder %s11, 3
    %p49 = por %p47, %p48
    %p50 = scmp.ne.s32.totalorder %s42, %s45
    %p51 = scmp.eq.s32.totalorder %s11, 0
    %p52 = por %p50, %p51
    %p53 = scmp.ne.s32.totalorder %s42, %s45
    %p54 = scmp.eq.s32.totalorder %s16, 3
    %p55 = por %p53, %p54
    %p56 = scmp.ne.s32.totalorder %s45, %s46
    %p57 = scmp.eq.s32.totalorder %s16, 0
    %p58 = por %p56, %p57
    %p59 = scmp.ne.s32.totalorder %s45, %s46
    %p60 = scmp.eq.s32.totalorder %s17, 3
    %p61 = por %p59, %p60
    %p63 = scmp.ne.s32.totalorder %s46, %s62
    %p64 = scmp.eq.s32.totalorder %s17, 0
    %p65 = por %p63, %p64
    %s66 = ssub.s32 %s18, %s37
    %s67 = ssub.s32 %s20, %s29
    %s68 = sor.u32 %s66, %s67
    %p69 = scmp.eq.s32.totalorder %s68, 0
    %s71 = sadd.s32 %s70, 1
    %s72 = scalar_select %p69, %s70, %s71
    %p75 = pneg %p69
    %p76 = scmp.eq.s32.totalorder %s11, 3
    %p77 = por %p75, %p76
    %p78 = scmp.ne.s32.totalorder %s70, %s73
    %p79 = scmp.eq.s32.totalorder %s11, 0
    %p80 = por %p78, %p79
    %p81 = scmp.ne.s32.totalorder %s70, %s73
    %p82 = scmp.eq.s32.totalorder %s16, 3
    %p83 = por %p81, %p82
    %p84 = scmp.ne.s32.totalorder %s73, %s74
    %p85 = scmp.eq.s32.totalorder %s16, 0
    %p86 = por %p84, %p85
    %p87 = scmp.ne.s32.totalorder %s73, %s74
    %p88 = scmp.eq.s32.totalorder %s17, 3
    %p89 = por %p87, %p88
    %p91 = scmp.ne.s32.totalorder %s74, %s90
    %p92 = scmp.eq.s32.totalorder %s17, 0
    %p93 = por %p91, %p92
    %s94 = ssub.s32 %s18, %s37
    %s95 = ssub.s32 %s19, %s33
    %s96 = sor.u32 %s94, %s95
    %s97 = ssub.s32 %s20, %s29
    %s98 = sor.u32 %s96, %s97
    %p99 = scmp.eq.s32.totalorder %s98, 0
    %s101 = sadd.s32 %s100, 1
    %s102 = scalar_select %p99, %s100, %s101
    %p105 = pneg %p99
    %p106 = scmp.eq.s32.totalorder %s11, 3
    %p107 = por %p105, %p106
    %p108 = scmp.ne.s32.totalorder %s100, %s103
    %p109 = scmp.eq.s32.totalorder %s11, 0
    %p110 = por %p108, %p109
    %p111 = scmp.ne.s32.totalorder %s100, %s103
    %p112 = scmp.eq.s32.totalorder %s16, 3
    %p113 = por %p111, %p112
    %p114 = scmp.ne.s32.totalorder %s103, %s104
    %p115 = scmp.eq.s32.totalorder %s16, 0
    %p116 = por %p114, %p115
    %p117 = scmp.ne.s32.totalorder %s103, %s104
    %p118 = scmp.eq.s32.totalorder %s17, 3
    %p119 = por %p117, %p118
    %p121 = scmp.ne.s32.totalorder %s104, %s120
    %p122 = scmp.eq.s32.totalorder %s17, 0
    %p123 = por %p121, %p122
    %s124 = ssub.s32 %s18, %s37
    %s125 = ssub.s32 %s19, %s33
    %s126 = sor.u32 %s124, %s125
    %s127 = ssub.s32 %s20, %s29
    %s128 = sor.u32 %s126, %s127
    %p129 = scmp.eq.s32.totalorder %s128, 0
    %s131 = sadd.s32 %s130, 1
    %s132 = scalar_select %p129, %s130, %s131
    %p135 = pneg %p129
    %p136 = scmp.eq.s32.totalorder %s11, 3
    %p137 = por %p135, %p136
    %p138 = scmp.ne.s32.totalorder %s130, %s133
    %p139 = scmp.eq.s32.totalorder %s11, 0
    %p140 = por %p138, %p139
    %p141 = scmp.ne.s32.totalorder %s130, %s133
    %p142 = scmp.eq.s32.totalorder %s16, 3
    %p143 = por %p141, %p142
    %p144 = scmp.ne.s32.totalorder %s133, %s134
    %p145 = scmp.eq.s32.totalorder %s16, 0
    %p146 = por %p144, %p145
    %p147 = scmp.ne.s32.totalorder %s133, %s134
    %p148 = scmp.eq.s32.totalorder %s17, 3
    %p149 = por %p147, %p148
    %p151 = scmp.ne.s32.totalorder %s134, %s150
    %p152 = scmp.eq.s32.totalorder %s17, 0
    %p153 = por %p151, %p152
    %s154 = ssub.s32 %s18, %s37
    %s155 = ssub.s32 %s19, %s33
    %s156 = sor.u32 %s154, %s155
    %s157 = ssub.s32 %s20, %s29
    %s158 = sor.u32 %s156, %s157
    %p159 = scmp.eq.s32.totalorder %s158, 0
    %s161 = sadd.s32 %s160, 1
    %s162 = scalar_select %p159, %s160, %s161
    %p165 = pneg %p159
    %p166 = scmp.eq.s32.totalorder %s11, 3
    %p167 = por %p165, %p166
    %p168 = scmp.ne.s32.totalorder %s160, %s163
    %p169 = scmp.eq.s32.totalorder %s11, 0
    %p170 = por %p168, %p169
    %p171 = scmp.ne.s32.totalorder %s160, %s163
    %p172 = scmp.eq.s32.totalorder %s16, 3
    %p173 = por %p171, %p172
    %p174 = scmp.ne.s32.totalorder %s163, %s164
    %p175 = scmp.eq.s32.totalorder %s16, 0
    %p176 = por %p174, %p175
    %p177 = scmp.ne.s32.totalorder %s163, %s164
    %p178 = scmp.eq.s32.totalorder %s17, 3
    %p179 = por %p177, %p178
    %p181 = scmp.ne.s32.totalorder %s164, %s180
    %p182 = scmp.eq.s32.totalorder %s17, 0
    %p183 = por %p181, %p182
    %p184 = scmp.le.s32.totalorder 1, %s11
    %p185 = scmp.lt.s32.totalorder %s11, 5
    %p186 = pnand %p184, %p185
    %p187 = pneg %p186
    // Predicated region
    $region9: #{generator_forward.7} parent=5 // pred_check
      _
    $region10: #{generator_forward.7} parent=5 // pred_check_branch
      %189 = sbr.rel (%p186) target = $region12
    $region11: #{generator_forward.7} parent=5 // pred_region
      %s190 = ssub.s32 %s11, 1
    $region12: #{generator_forward.7} parent=5 // pred_fallthru
      _
    %p191 = scmp.lt.s32.totalorder %s11, 4
    // Predicated region
    $region13: #{generator_forward.7} parent=5 // pred_check
      %p192 = pneg %p191
    $region14: #{generator_forward.7} parent=5 // pred_check_branch
      %194 = sbr.rel (%p192) target = $region16
    $region15: #{generator_forward.7} parent=5 // pred_region
      // Predicated region
      $region17: #{generator_forward.7} parent=15 // pred_check
        %p195 = pneg %p52
      $region18: #{generator_forward.7} parent=15 // pred_check_branch
        %197 = sbr.rel (%p195) target = $region20
      $region19: #{generator_forward.7} parent=15 // pred_region
        %s198 = smul.u32 4, %s19
        %p199 = scmp.lt.s32.totalorder %s18, 3
        %s200 = scalar_select %p199, %s18, 3
        %p201 = scmp.lt.s32.totalorder %s198, 3
        %s202 = scalar_select %p201, %s198, 3
        %s203 = smul.addr %s200, 4
        %s204 = sadd.s32 %s202, %s203
        %s205 = smul.addr %s204, 4
        %s206 = scalar_lea.vmem %s0, %s205
        %s207 = smul.u32 4, %s19
      $region20: #{generator_forward.7} parent=15 // pred_fallthru
        _
      // Predicated region
      $region21: #{generator_forward.7} parent=15 // pred_check
        %p208 = pneg %p80
      $region22: #{generator_forward.7} parent=15 // pred_check_branch
        %210 = sbr.rel (%p208) target = $region24
      $region23: #{generator_forward.7} parent=15 // pred_region
        %p211 = scmp.lt.s32.totalorder %s18, 3
        %s212 = scalar_select %p211, %s18, 3
        %p213 = scmp.lt.s32.totalorder %s20, 0
        %s214 = scalar_select %p213, %s20, 0
        %s215 = smul.addr %s212, 16
        %s216 = sadd.s32 %s214, %s215
        %s217 = smul.addr %s216, 4
        %s218 = scalar_lea.vmem %s1, %s217
      $region24: #{generator_forward.7} parent=15 // pred_fallthru
        _
    $region16: #{generator_forward.7} parent=5 // pred_fallthru
      _
    %p219 = scmp.le.s32.totalorder 1, %s11
    %p220 = scmp.lt.s32.totalorder %s11, 5
    %p221 = pnand %p219, %p220
    %p222 = pneg %p221
    // Predicated region
    $region25: #{generator_forward.7} parent=5 // pred_check
      _
    $region26: #{generator_forward.7} parent=5 // pred_check_branch
      %224 = sbr.rel (%p221) target = $region28
    $region27: #{generator_forward.7} parent=5 // pred_region
      %s225 = ssub.s32 %s11, 1
      %s226 = smul.u32 4, %s22
      %p227 = scmp.lt.s32.totalorder %s21, 3
      %s228 = scalar_select %p227, %s21, 3
      %p229 = scmp.lt.s32.totalorder %s226, 3
      %s230 = scalar_select %p229, %s226, 3
      %s231 = smul.addr %s228, 4
      %s232 = sadd.s32 %s230, %s231
      %s233 = smul.addr %s232, 4
      %s234 = scalar_lea.vmem %s0, %s233
      %p235 = pneg %p58
      %p236 = pneg %p55
      %p237 = scmp.lt.s32.totalorder %s21, 3
      %s238 = scalar_select %p237, %s21, 3
      %p239 = scmp.lt.s32.totalorder %s23, 0
      %s240 = scalar_select %p239, %s23, 0
      %s241 = smul.addr %s238, 16
      %s242 = sadd.s32 %s240, %s241
      %s243 = smul.addr %s242, 4
      %s244 = scalar_lea.vmem %s1, %s243
      %p245 = pneg %p86
      %p246 = pneg %p83
      %p247 = pneg %p116
      %p248 = pneg %p113
      %s249 = smul.u32 4, %s22
      %p250 = scmp.lt.s32.totalorder %s21, 3
      %s251 = scalar_select %p250, %s21, 3
      %p252 = scmp.lt.s32.totalorder %s249, 3
      %s253 = scalar_select %p252, %s249, 3
      %p254 = scmp.lt.s32.totalorder %s23, 0
      %s255 = scalar_select %p254, %s23, 0
      %s256 = sadd.s32 %s255, %s253
      %s257 = smul.addr %s251, 4
      %s258 = sadd.s32 %s256, %s257
      %s259 = smul.addr %s258, 4
      %s260 = scalar_lea.vmem %s2, %s259
      %p261 = pneg %p146
      %p262 = pneg %p143
      %p263 = scmp.lt.s32.totalorder %s21, 3
      %s264 = scalar_select %p263, %s21, 3
      %p265 = scmp.lt.s32.totalorder %s22, 0
      %s266 = scalar_select %p265, %s22, 0
      %p267 = scmp.lt.s32.totalorder %s23, 0
      %s268 = scalar_select %p267, %s23, 0
      %s269 = sadd.s32 %s268, %s266
      %s270 = sadd.s32 %s269, %s264
      %s271 = smul.addr %s270, 8
      %s272 = scalar_lea.vmem %s3, %s271
      %p273 = pneg %p176
      %p274 = pneg %p173
      %p275 = scmp.lt.s32.totalorder %s21, 3
      %s276 = scalar_select %p275, %s21, 3
      %p277 = scmp.lt.s32.totalorder %s22, 0
      %s278 = scalar_select %p277, %s22, 0
      %p279 = scmp.lt.s32.totalorder %s23, 0
      %s280 = scalar_select %p279, %s23, 0
      %s281 = sadd.s32 %s280, %s278
      %s282 = sadd.s32 %s281, %s276
      %s283 = smul.addr %s282, 8
      %s284 = scalar_lea.vmem %s4, %s283
      %s285 = smul.u32 4, %s22
      %p286 = scmp.lt.s32.totalorder %s21, 3
      %s287 = scalar_select %p286, %s21, 3
      %p288 = scmp.lt.s32.totalorder %s285, 3
      %s289 = scalar_select %p288, %s285, 3
      %s290 = smul.addr %s287, 4
      %s291 = sadd.s32 %s289, %s290
      %s292 = smul.addr %s291, 4
      %s293 = scalar_lea.vmem %s0, %s292
      %s294 = smul.u32 4, %s22
      %p295 = scmp.lt.s32.totalorder %s21, 3
      %s296 = scalar_select %p295, %s21, 3
      %p297 = scmp.lt.s32.totalorder %s23, 0
      %s298 = scalar_select %p297, %s23, 0
      %s299 = smul.addr %s296, 16
      %s300 = sadd.s32 %s298, %s299
      %s301 = smul.addr %s300, 4
      %s302 = scalar_lea.vmem %s1, %s301
      %s303 = smul.u32 4, %s22
      %p304 = scmp.lt.s32.totalorder %s21, 3
      %s305 = scalar_select %p304, %s21, 3
      %p306 = scmp.lt.s32.totalorder %s303, 3
      %s307 = scalar_select %p306, %s303, 3
      %p308 = scmp.lt.s32.totalorder %s23, 0
      %s309 = scalar_select %p308, %s23, 0
      %s310 = sadd.s32 %s309, %s307
      %s311 = smul.addr %s305, 4
      %s312 = sadd.s32 %s310, %s311
      %s313 = smul.addr %s312, 4
      %s314 = scalar_lea.vmem %s2, %s313
      %s315 = smul.u32 4, %s22
      %p316 = scmp.lt.s32.totalorder %s21, 3
      %s317 = scalar_select %p316, %s21, 3
      %p318 = scmp.lt.s32.totalorder %s22, 0
      %s319 = scalar_select %p318, %s22, 0
      %p320 = scmp.lt.s32.totalorder %s23, 0
      %s321 = scalar_select %p320, %s23, 0
      %s322 = sadd.s32 %s321, %s319
      %s323 = sadd.s32 %s322, %s317
      %s324 = smul.addr %s323, 8
      %s325 = scalar_lea.vmem %s3, %s324
      %p326 = scmp.lt.s32.totalorder %s21, 3
      %s327 = scalar_select %p326, %s21, 3
      %p328 = scmp.lt.s32.totalorder %s22, 0
      %s329 = scalar_select %p328, %s22, 0
      %p330 = scmp.lt.s32.totalorder %s23, 0
      %s331 = scalar_select %p330, %s23, 0
      %s332 = sadd.s32 %s331, %s329
      %s333 = sadd.s32 %s332, %s327
      %s334 = smul.addr %s333, 8
      %s335 = scalar_lea.vmem %s4, %s334
      %v336 = vld [vmem:[%s293] sm:$0xf]
      %v337 = vld [vmem:[%s293 + $0x4] sm:$0xf]
      %v338 = vld [vmem:[%s293 + $0x8] sm:$0xf]
      %v339 = vld [vmem:[%s293 + $0xc] sm:$0xf]
      %v340 = vld [vmem:[%s302] sm:$0xf]
      %v341 = vld [vmem:[%s302 + $0x4] sm:$0xf]
      %v342 = vld [vmem:[%s302 + $0x8] sm:$0xf]
      %v343 = vld [vmem:[%s302 + $0xc] sm:$0xf]
      %v344 = vld [vmem:[%s302 + $0x10] sm:$0xf]
      %v345 = vld [vmem:[%s302 + $0x14] sm:$0xf]
      %v346 = vld [vmem:[%s302 + $0x18] sm:$0xf]
      %v347 = vld [vmem:[%s302 + $0x1c] sm:$0xf]
      %v348 = vld [vmem:[%s302 + $0x20] sm:$0xf]
      %v349 = vld [vmem:[%s302 + $0x24] sm:$0xf]
      %v350 = vld [vmem:[%s302 + $0x28] sm:$0xf]
      %v351 = vld [vmem:[%s302 + $0x2c] sm:$0xf]
      %v352 = vld [vmem:[%s302 + $0x30] sm:$0xf]
      %v353 = vld [vmem:[%s302 + $0x34] sm:$0xf]
      %v354 = vld [vmem:[%s302 + $0x38] sm:$0xf]
      %v355 = vld [vmem:[%s302 + $0x3c] sm:$0xf]
      %v360 = vunpack.c.l.b16 %v336
      %v361 = vunpack.c.l.b16 %v337
      %v362 = vunpack.c.l.b16 %v338
      %v363 = vunpack.c.l.b16 %v339
      %v364 = vpack.c.b16 %v361, %v360
      %v365 = vpack.c.b16 %v363, %v362
      %v384 = vunpack.c.l.b16 %v340
      %v385 = vunpack.c.l.b16 %v341
      %v386 = vunpack.c.l.b16 %v342
      %v387 = vunpack.c.l.b16 %v343
      %v388 = vunpack.c.l.b16 %v344
      %v389 = vunpack.c.l.b16 %v345
      %v390 = vunpack.c.l.b16 %v346
      %v391 = vunpack.c.l.b16 %v347
      %v392 = vunpack.c.l.b16 %v348
      %v393 = vunpack.c.l.b16 %v349
      %v394 = vunpack.c.l.b16 %v350
      %v395 = vunpack.c.l.b16 %v351
      %v396 = vunpack.c.l.b16 %v352
      %v397 = vunpack.c.l.b16 %v353
      %v398 = vunpack.c.l.b16 %v354
      %v399 = vunpack.c.l.b16 %v355
      %v400 = vpack.c.b16 %v385, %v384
      %v401 = vpack.c.b16 %v387, %v386
      %v402 = vpack.c.b16 %v389, %v388
      %v403 = vpack.c.b16 %v391, %v390
      %v404 = vpack.c.b16 %v393, %v392
      %v405 = vpack.c.b16 %v395, %v394
      %v406 = vpack.c.b16 %v397, %v396
      %v407 = vpack.c.b16 %v399, %v398
      %416 = vmatpush.bf16.msra.mxu0 %v407
      %417 = vmatpush.bf16.msra.mxu0 %v406
      %418 = vmatpush.bf16.msra.mxu0 %v405
      %419 = vmatpush.bf16.msra.mxu0 %v404
      %420 = vmatpush.bf16.msra.mxu0 %v403
      %421 = vmatpush.bf16.msra.mxu0 %v402
      %422 = vmatpush.bf16.msra.mxu0 %v401
      %423 = vmatpush.bf16.msra.mxu0 %v400
      %424 = vmatmul.bf16.gmra.mxu0 %v364
      %v425 = vpop.f32.mrf.mxu0
      %v426 = vadd.f32 0.0, %v425
      %v427 = vpop.f32.mrf.mxu0
      %v428 = vadd.f32 0.0, %v427
      %429 = vmatmul.bf16.gmra.mxu0 %v365
      %v430 = vpop.f32.mrf.mxu0
      %v431 = vadd.f32 0.0, %v430
      %v432 = vpop.f32.mrf.mxu0
      %v433 = vadd.f32 0.0, %v432
      %434 = vdwg.mxu0
      %v435 = vadd.f32 %v426, %v428
      %v436 = vadd.f32 %v435, %v431
      %v437 = vadd.f32 %v436, %v433
      %v438 = vrot.slane %v437, 4
      %v439 = vadd.f32 %v437, %v438
      %v440 = vrot.slane %v439, 2
      %v441 = vadd.f32 %v439, %v440
      %v442 = vrot.slane %v441, 1
      %v443 = vadd.f32 %v441, %v442
      %444 = vst [vmem:[%s325] sm:$0x1] %v443
      %v445 = vmul.f32 %v426, %v426
      %v446 = vmul.f32 %v428, %v428
      %v447 = vmul.f32 %v431, %v431
      %v448 = vmul.f32 %v433, %v433
      %v449 = vadd.f32 %v445, %v446
      %v450 = vadd.f32 %v449, %v447
      %v451 = vadd.f32 %v450, %v448
      %v452 = vrot.slane %v451, 4
      %v453 = vadd.f32 %v451, %v452
      %v454 = vrot.slane %v453, 2
      %v455 = vadd.f32 %v453, %v454
      %v456 = vrot.slane %v455, 1
      %v457 = vadd.f32 %v455, %v456
      %458 = vst [vmem:[%s335] sm:$0x1] %v457
      %v459 = vpack.c.bf16 %v426, %v426
      %v460 = vpack.c.bf16 %v428, %v428
      %v461 = vpack.c.bf16 %v431, %v431
      %v462 = vpack.c.bf16 %v433, %v433
      %463 = vst [vmem:[%s314] sm:$0xf] %v459
      %464 = vst [vmem:[%s314 + $0x4] sm:$0xf] %v460
      %465 = vst [vmem:[%s314 + $0x8] sm:$0xf] %v461
      %466 = vst [vmem:[%s314 + $0xc] sm:$0xf] %v462
      %s467 = smul.u32 4, %s22
      %p468 = scmp.lt.s32.totalorder %s21, 3
      %s469 = scalar_select %p468, %s21, 3
      %p470 = scmp.lt.s32.totalorder %s467, 3
      %s471 = scalar_select %p470, %s467, 3
      %p472 = scmp.lt.s32.totalorder %s23, 0
      %s473 = scalar_select %p472, %s23, 0
      %s474 = sadd.s32 %s473, %s471
      %s475 = smul.addr %s469, 4
      %s476 = sadd.s32 %s474, %s475
      %s477 = smul.addr %s476, 4
      %s478 = scalar_lea.vmem %s2, %s477
      %p479 = scmp.lt.s32.totalorder %s21, 3
      %s480 = scalar_select %p479, %s21, 3
      %p481 = scmp.lt.s32.totalorder %s22, 0
      %s482 = scalar_select %p481, %s22, 0
      %p483 = scmp.lt.s32.totalorder %s23, 0
      %s484 = scalar_select %p483, %s23, 0
      %s485 = sadd.s32 %s484, %s482
      %s486 = sadd.s32 %s485, %s480
      %s487 = smul.addr %s486, 8
      %s488 = scalar_lea.vmem %s3, %s487
      %p489 = scmp.lt.s32.totalorder %s21, 3
      %s490 = scalar_select %p489, %s21, 3
      %p491 = scmp.lt.s32.totalorder %s22, 0
      %s492 = scalar_select %p491, %s22, 0
      %p493 = scmp.lt.s32.totalorder %s23, 0
      %s494 = scalar_select %p493, %s23, 0
      %s495 = sadd.s32 %s494, %s492
      %s496 = sadd.s32 %s495, %s490
      %s497 = smul.addr %s496, 8
      %s498 = scalar_lea.vmem %s4, %s497
      // Predicated region
      $region29: #{generator_forward.7} parent=27 // pred_check
        %p499 = pneg %p113
      $region30: #{generator_forward.7} parent=27 // pred_check_branch
        %501 = sbr.rel (%p499) target = $region32
      $region31: #{generator_forward.7} parent=27 // pred_region
        %s502 = smul.u32 4, %s22
      $region32: #{generator_forward.7} parent=27 // pred_fallthru
        _
      // Predicated region
      $region33: #{generator_forward.7} parent=27 // pred_check
        %p503 = pneg %p143
      $region34: #{generator_forward.7} parent=27 // pred_check_branch
        %505 = sbr.rel (%p503) target = $region36
      $region35: #{generator_forward.7} parent=27 // pred_region
        _
      $region36: #{generator_forward.7} parent=27 // pred_fallthru
        _
      // Predicated region
      $region37: #{generator_forward.7} parent=27 // pred_check
        %p506 = pneg %p173
      $region38: #{generator_forward.7} parent=27 // pred_check_branch
        %508 = sbr.rel (%p506) target = $region40
      $region39: #{generator_forward.7} parent=27 // pred_region
        _
      $region40: #{generator_forward.7} parent=27 // pred_fallthru
        _
    $region28: #{generator_forward.7} parent=5 // pred_fallthru
      _
    %p509 = scmp.le.s32.totalorder 2, %s11
    // Predicated region
    $region41: #{generator_forward.7} parent=5 // pred_check
      %p510 = pneg %p509
    $region42: #{generator_forward.7} parent=5 // pred_check_branch
      %512 = sbr.rel (%p510) target = $region44
    $region43: #{generator_forward.7} parent=5 // pred_region
      %s513 = ssub.s32 %s11, 2
      // Predicated region
      $region45: #{generator_forward.7} parent=43 // pred_check
        %p514 = pneg %p119
      $region46: #{generator_forward.7} parent=43 // pred_check_branch
        %516 = sbr.rel (%p514) target = $region48
      $region47: #{generator_forward.7} parent=43 // pred_region
        %s517 = smul.u32 4, %s25
        %p518 = scmp.lt.s32.totalorder %s24, 3
        %s519 = scalar_select %p518, %s24, 3
        %p520 = scmp.lt.s32.totalorder %s517, 3
        %s521 = scalar_select %p520, %s517, 3
        %p522 = scmp.lt.s32.totalorder %s26, 0
        %s523 = scalar_select %p522, %s26, 0
        %s524 = sadd.s32 %s523, %s521
        %s525 = smul.addr %s519, 4
        %s526 = sadd.s32 %s524, %s525
        %s527 = smul.addr %s526, 4
        %s528 = scalar_lea.vmem %s2, %s527
      $region48: #{generator_forward.7} parent=43 // pred_fallthru
        _
      // Predicated region
      $region49: #{generator_forward.7} parent=43 // pred_check
        %p529 = pneg %p149
      $region50: #{generator_forward.7} parent=43 // pred_check_branch
        %531 = sbr.rel (%p529) target = $region52
      $region51: #{generator_forward.7} parent=43 // pred_region
        %p532 = scmp.lt.s32.totalorder %s24, 3
        %s533 = scalar_select %p532, %s24, 3
        %p534 = scmp.lt.s32.totalorder %s25, 0
        %s535 = scalar_select %p534, %s25, 0
        %p536 = scmp.lt.s32.totalorder %s26, 0
        %s537 = scalar_select %p536, %s26, 0
        %s538 = sadd.s32 %s537, %s535
        %s539 = sadd.s32 %s538, %s533
        %s540 = smul.addr %s539, 8
        %s541 = scalar_lea.vmem %s3, %s540
      $region52: #{generator_forward.7} parent=43 // pred_fallthru
        _
      // Predicated region
      $region53: #{generator_forward.7} parent=43 // pred_check
        %p542 = pneg %p179
      $region54: #{generator_forward.7} parent=43 // pred_check_branch
        %544 = sbr.rel (%p542) target = $region56
      $region55: #{generator_forward.7} parent=43 // pred_region
        %p545 = scmp.lt.s32.totalorder %s24, 3
        %s546 = scalar_select %p545, %s24, 3
        %p547 = scmp.lt.s32.totalorder %s25, 0
        %s548 = scalar_select %p547, %s25, 0
        %p549 = scmp.lt.s32.totalorder %s26, 0
        %s550 = scalar_select %p549, %s26, 0
        %s551 = sadd.s32 %s550, %s548
        %s552 = sadd.s32 %s551, %s546
        %s553 = smul.addr %s552, 8
        %s554 = scalar_lea.vmem %s4, %s553
      $region56: #{generator_forward.7} parent=43 // pred_fallthru
        _
    $region44: #{generator_forward.7} parent=5 // pred_fallthru
      _
  $region6: #{generator_forward.7} parent=0 // loop_footer
    %s15 = sadd.s32 1, %s11
  $region7: #{generator_forward.7} parent=0 // loop_footer_branch
    %10 = sbr.rel target = $region3
  $region8: #{generator_forward.7} parent=0 // loop_exit
    _

// kernel: generator_forward.8
$region0: #{generator_forward.8}
  #allocation0 [shape = 'u32[]', space=smem, size = 0x4, offset = 0x4, fixed_abs, tag = 'smem constant byte address 0x4 - core index']
  #allocation1 [shape = 'u32[72,128]{1,0:T(1,128)}', space=vmem, size = 0x9000, scoped, tag = 'internal scratch']
  %s0 = inlined_call_operand.vmem [shape: bf16[4,32,128], index: 0, kind: input, shape index: {}]
  %s1 = inlined_call_operand.vmem [shape: f32[2,128], index: 1, kind: input, shape index: {}]
  %s2 = inlined_call_operand.vmem [shape: bf16[4,32,128], index: 2, kind: output, shape index: {}]
  %s3 = sld [smem:[#allocation0]]
  $region41: #{generator_forward.8} parent=0
    _
  %s5 = ssub.s32 1, %s3
  %s6 = scalar_select 0, %s5, %s3
  loop: start=0, step=1, limit=6
  $region2: #{generator_forward.8} parent=0 // loop_pre_header
    _
  $region3: #{generator_forward.8} parent=0 // loop_header
    %s8 = sphi 0, %s12
    %p9 = scmp.ge.s32.totalorder %s8, 6
    %s15 = sphi 0, %s34
    %s16 = sphi 0, %s30
    %s17 = sphi 0, %s26
    %s18 = sphi 0, %s15
    %s19 = sphi 0, %s16
    %s20 = sphi 0, %s17
    %s21 = sphi 0, %s18
    %s22 = sphi 0, %s19
    %s23 = sphi 0, %s20
    %s41 = sphi 0, %s43
    %s44 = sphi 0, %s41
    %s45 = sphi 0, %s44
    %s61 = sphi 0, %s45
    %s67 = sphi 0, %s69
    %s70 = sphi 0, %s67
    %s71 = sphi 0, %s70
    %s87 = sphi 0, %s71
    %s97 = sphi 0, %s99
    %s100 = sphi 0, %s97
    %s101 = sphi 0, %s100
    %s117 = sphi 0, %s101
  $region4: #{generator_forward.8} parent=0 // loop_header_branch
    %11 = sbr.rel (%p9) target = $region8
  $region5: #{generator_forward.8} parent=0 // loop_body
    %s13 = ssub.s32 %s8, 1
    %s14 = ssub.s32 %s8, 2
    %s24 = sadd.s32 1, %s17
    %p25 = scmp.ge.s32.totalorder %s24, 1
    %s26 = scalar_select %p25, 0, %s24
    %s27 = sadd.s32 1, %s16
    %s28 = scalar_select %p25, %s27, %s16
    %p29 = scmp.ge.s32.totalorder %s28, 1
    %s30 = scalar_select %p29, 0, %s28
    %s31 = sadd.s32 1, %s15
    %s32 = scalar_select %p29, %s31, %s15
    %p33 = scmp.ge.s32.totalorder %s32, 4
    %s34 = scalar_select %p33, 0, %s32
    %s35 = ssub.s32 %s15, %s34
    %s36 = ssub.s32 %s17, %s26
    %s37 = sor.u32 %s35, %s36
    %s38 = ssub.s32 %s16, %s30
    %s39 = sor.u32 %s37, %s38
    %p40 = scmp.eq.s32.totalorder %s39, 0
    %s42 = sadd.s32 %s41, 1
    %s43 = scalar_select %p40, %s41, %s42
    %p46 = pneg %p40
    %p47 = scmp.eq.s32.totalorder %s8, 3
    %p48 = por %p46, %p47
    %p49 = scmp.ne.s32.totalorder %s41, %s44
    %p50 = scmp.eq.s32.totalorder %s8, 0
    %p51 = por %p49, %p50
    %p52 = scmp.ne.s32.totalorder %s41, %s44
    %p53 = scmp.eq.s32.totalorder %s13, 3
    %p54 = por %p52, %p53
    %p55 = scmp.ne.s32.totalorder %s44, %s45
    %p56 = scmp.eq.s32.totalorder %s13, 0
    %p57 = por %p55, %p56
    %p58 = scmp.ne.s32.totalorder %s44, %s45
    %p59 = scmp.eq.s32.totalorder %s14, 3
    %p60 = por %p58, %p59
    %p62 = scmp.ne.s32.totalorder %s45, %s61
    %p63 = scmp.eq.s32.totalorder %s14, 0
    %p64 = por %p62, %p63
    %s65 = ssub.s32 %s16, %s30
    %p66 = scmp.eq.s32.totalorder %s65, 0
    %s68 = sadd.s32 %s67, 1
    %s69 = scalar_select %p66, %s67, %s68
    %p72 = pneg %p66
    %p73 = scmp.eq.s32.totalorder %s8, 3
    %p74 = por %p72, %p73
    %p75 = scmp.ne.s32.totalorder %s67, %s70
    %p76 = scmp.eq.s32.totalorder %s8, 0
    %p77 = por %p75, %p76
    %p78 = scmp.ne.s32.totalorder %s67, %s70
    %p79 = scmp.eq.s32.totalorder %s13, 3
    %p80 = por %p78, %p79
    %p81 = scmp.ne.s32.totalorder %s70, %s71
    %p82 = scmp.eq.s32.totalorder %s13, 0
    %p83 = por %p81, %p82
    %p84 = scmp.ne.s32.totalorder %s70, %s71
    %p85 = scmp.eq.s32.totalorder %s14, 3
    %p86 = por %p84, %p85
    %p88 = scmp.ne.s32.totalorder %s71, %s87
    %p89 = scmp.eq.s32.totalorder %s14, 0
    %p90 = por %p88, %p89
    %s91 = ssub.s32 %s15, %s34
    %s92 = ssub.s32 %s17, %s26
    %s93 = sor.u32 %s91, %s92
    %s94 = ssub.s32 %s16, %s30
    %s95 = sor.u32 %s93, %s94
    %p96 = scmp.eq.s32.totalorder %s95, 0
    %s98 = sadd.s32 %s97, 1
    %s99 = scalar_select %p96, %s97, %s98
    %p102 = pneg %p96
    %p103 = scmp.eq.s32.totalorder %s8, 3
    %p104 = por %p102, %p103
    %p105 = scmp.ne.s32.totalorder %s97, %s100
    %p106 = scmp.eq.s32.totalorder %s8, 0
    %p107 = por %p105, %p106
    %p108 = scmp.ne.s32.totalorder %s97, %s100
    %p109 = scmp.eq.s32.totalorder %s13, 3
    %p110 = por %p108, %p109
    %p111 = scmp.ne.s32.totalorder %s100, %s101
    %p112 = scmp.eq.s32.totalorder %s13, 0
    %p113 = por %p111, %p112
    %p114 = scmp.ne.s32.totalorder %s100, %s101
    %p115 = scmp.eq.s32.totalorder %s14, 3
    %p116 = por %p114, %p115
    %p118 = scmp.ne.s32.totalorder %s101, %s117
    %p119 = scmp.eq.s32.totalorder %s14, 0
    %p120 = por %p118, %p119
    %p121 = scmp.le.s32.totalorder 1, %s8
    %p122 = scmp.lt.s32.totalorder %s8, 5
    %p123 = pnand %p121, %p122
    %p124 = pneg %p123
    // Predicated region
    $region9: #{generator_forward.8} parent=5 // pred_check
      _
    $region10: #{generator_forward.8} parent=5 // pred_check_branch
      %126 = sbr.rel (%p123) target = $region12
    $region11: #{generator_forward.8} parent=5 // pred_region
      %s127 = ssub.s32 %s8, 1
      // Predicated region
      $region13: #{generator_forward.8} parent=11 // pred_check
        %p128 = pneg %p83
      $region14: #{generator_forward.8} parent=11 // pred_check_branch
        %130 = sbr.rel (%p128) target = $region16
      $region15: #{generator_forward.8} parent=11 // pred_region
        %p131 = scmp.lt.s32.totalorder %s19, 0
        %s132 = scalar_select %p131, %s19, 0
        %s133 = smul.addr %s132, 2
        %s134 = scalar_lea.vmem %s1, %s133
      $region16: #{generator_forward.8} parent=11 // pred_fallthru
        _
    $region12: #{generator_forward.8} parent=5 // pred_fallthru
      _
    %p135 = scmp.lt.s32.totalorder %s8, 4
    // Predicated region
    $region17: #{generator_forward.8} parent=5 // pred_check
      %p136 = pneg %p135
    $region18: #{generator_forward.8} parent=5 // pred_check_branch
      %138 = sbr.rel (%p136) target = $region20
    $region19: #{generator_forward.8} parent=5 // pred_region
      // Predicated region
      $region21: #{generator_forward.8} parent=19 // pred_check
        %p139 = pneg %p51
      $region22: #{generator_forward.8} parent=19 // pred_check_branch
        %141 = sbr.rel (%p139) target = $region24
      $region23: #{generator_forward.8} parent=19 // pred_region
        %s142 = smul.u32 4, %s17
        %p143 = scmp.lt.s32.totalorder %s15, 3
        %s144 = scalar_select %p143, %s15, 3
        %p145 = scmp.lt.s32.totalorder %s142, 3
        %s146 = scalar_select %p145, %s142, 3
        %p147 = scmp.lt.s32.totalorder %s16, 0
        %s148 = scalar_select %p147, %s16, 0
        %s149 = sadd.s32 %s148, %s146
        %s150 = smul.addr %s144, 4
        %s151 = sadd.s32 %s149, %s150
        %s152 = smul.addr %s151, 4
        %s153 = scalar_lea.vmem %s0, %s152
        %s154 = smul.u32 4, %s17
      $region24: #{generator_forward.8} parent=19 // pred_fallthru
        _
    $region20: #{generator_forward.8} parent=5 // pred_fallthru
      _
    %p155 = scmp.le.s32.totalorder 1, %s8
    %p156 = scmp.lt.s32.totalorder %s8, 5
    %p157 = pnand %p155, %p156
    %p158 = pneg %p157
    // Predicated region
    $region25: #{generator_forward.8} parent=5 // pred_check
      _
    $region26: #{generator_forward.8} parent=5 // pred_check_branch
      %160 = sbr.rel (%p157) target = $region28
    $region27: #{generator_forward.8} parent=5 // pred_region
      %s161 = ssub.s32 %s8, 1
      %s162 = smul.u32 4, %s20
      %p163 = scmp.lt.s32.totalorder %s18, 3
      %s164 = scalar_select %p163, %s18, 3
      %p165 = scmp.lt.s32.totalorder %s162, 3
      %s166 = scalar_select %p165, %s162, 3
      %p167 = scmp.lt.s32.totalorder %s19, 0
      %s168 = scalar_select %p167, %s19, 0
      %s169 = sadd.s32 %s168, %s166
      %s170 = smul.addr %s164, 4
      %s171 = sadd.s32 %s169, %s170
      %s172 = smul.addr %s171, 4
      %s173 = scalar_lea.vmem %s0, %s172
      %p174 = pneg %p57
      %p175 = pneg %p54
      %p176 = scmp.lt.s32.totalorder %s19, 0
      %s177 = scalar_select %p176, %s19, 0
      %s178 = smul.addr %s177, 2
      %s179 = scalar_lea.vmem %s1, %s178
      %p180 = pneg %p83
      %p181 = pneg %p80
      %p182 = pneg %p113
      %p183 = pneg %p110
      %s184 = smul.u32 4, %s20
      %p185 = scmp.lt.s32.totalorder %s18, 3
      %s186 = scalar_select %p185, %s18, 3
      %p187 = scmp.lt.s32.totalorder %s184, 3
      %s188 = scalar_select %p187, %s184, 3
      %p189 = scmp.lt.s32.totalorder %s19, 0
      %s190 = scalar_select %p189, %s19, 0
      %s191 = sadd.s32 %s190, %s188
      %s192 = smul.addr %s186, 4
      %s193 = sadd.s32 %s191, %s192
      %s194 = smul.addr %s193, 4
      %s195 = scalar_lea.vmem %s2, %s194
      %s196 = smul.u32 4, %s20
      %p197 = scmp.lt.s32.totalorder %s18, 3
      %s198 = scalar_select %p197, %s18, 3
      %p199 = scmp.lt.s32.totalorder %s196, 3
      %s200 = scalar_select %p199, %s196, 3
      %p201 = scmp.lt.s32.totalorder %s19, 0
      %s202 = scalar_select %p201, %s19, 0
      %s203 = sadd.s32 %s202, %s200
      %s204 = smul.addr %s198, 4
      %s205 = sadd.s32 %s203, %s204
      %s206 = smul.addr %s205, 4
      %s207 = scalar_lea.vmem %s0, %s206
      %s208 = smul.u32 4, %s20
      %p209 = scmp.lt.s32.totalorder %s19, 0
      %s210 = scalar_select %p209, %s19, 0
      %s211 = smul.addr %s210, 2
      %s212 = scalar_lea.vmem %s1, %s211
      %s213 = smul.u32 4, %s20
      %p214 = scmp.lt.s32.totalorder %s18, 3
      %s215 = scalar_select %p214, %s18, 3
      %p216 = scmp.lt.s32.totalorder %s213, 3
      %s217 = scalar_select %p216, %s213, 3
      %p218 = scmp.lt.s32.totalorder %s19, 0
      %s219 = scalar_select %p218, %s19, 0
      %s220 = sadd.s32 %s219, %s217
      %s221 = smul.addr %s215, 4
      %s222 = sadd.s32 %s220, %s221
      %s223 = smul.addr %s222, 4
      %s224 = scalar_lea.vmem %s2, %s223
      %s225 = smul.u32 4, %s20
      %v226 = vld [vmem:[%s207] sm:$0xf]
      %v227 = vld [vmem:[%s207 + $0x4] sm:$0xf]
      %v228 = vld [vmem:[%s207 + $0x8] sm:$0xf]
      %v229 = vld [vmem:[%s207 + $0xc] sm:$0xf]
      %v230 = vunpack.c.l.bf16 %v226
      %v231 = vunpack.c.l.bf16 %v227
      %v232 = vunpack.c.l.bf16 %v228
      %v233 = vunpack.c.l.bf16 %v229
      %v234 = vld [vmem:[%s212] sm:$0x1]
      %v235 = vperm.slane %v234, 0
      %v236 = vmul.f32 %v230, %v235
      %v237 = vmul.f32 %v231, %v235
      %v238 = vmul.f32 %v232, %v235
      %v239 = vmul.f32 %v233, %v235
      %v240 = vld [vmem:[%s212 + $0x1] sm:$0x1]
      %v241 = vperm.slane %v240, 0
      %v242 = vadd.f32 %v236, %v241
      %v243 = vadd.f32 %v237, %v241
      %v244 = vadd.f32 %v238, %v241
      %v245 = vadd.f32 %v239, %v241
      %vm246 = vcmp.ge.f32.partialorder %v242, 0.0
      %vm247 = vcmp.ge.f32.partialorder %v243, 0.0
      %vm248 = vcmp.ge.f32.partialorder %v244, 0.0
      %vm249 = vcmp.ge.f32.partialorder %v245, 0.0
      %v250 = vmul.f32 %v242, 0.2
      %v251 = vmul.f32 %v243, 0.2
      %v252 = vmul.f32 %v244, 0.2
      %v253 = vmul.f32 %v245, 0.2
      %v254 = vsel %vm246, %v242, %v250
      %v255 = vsel %vm247, %v243, %v251
      %v256 = vsel %vm248, %v244, %v252
      %v257 = vsel %vm249, %v245, %v253
      %v258 = vpack.c.bf16 %v254, %v254
      %v259 = vpack.c.bf16 %v255, %v255
      %v260 = vpack.c.bf16 %v256, %v256
      %v261 = vpack.c.bf16 %v257, %v257
      %262 = vst [vmem:[%s224] sm:$0xf] %v258
      %263 = vst [vmem:[%s224 + $0x4] sm:$0xf] %v259
      %264 = vst [vmem:[%s224 + $0x8] sm:$0xf] %v260
      %265 = vst [vmem:[%s224 + $0xc] sm:$0xf] %v261
      %s266 = smul.u32 4, %s20
      %p267 = scmp.lt.s32.totalorder %s18, 3
      %s268 = scalar_select %p267, %s18, 3
      %p269 = scmp.lt.s32.totalorder %s266, 3
      %s270 = scalar_select %p269, %s266, 3
      %p271 = scmp.lt.s32.totalorder %s19, 0
      %s272 = scalar_select %p271, %s19, 0
      %s273 = sadd.s32 %s272, %s270
      %s274 = smul.addr %s268, 4
      %s275 = sadd.s32 %s273, %s274
      %s276 = smul.addr %s275, 4
      %s277 = scalar_lea.vmem %s2, %s276
      // Predicated region
      $region29: #{generator_forward.8} parent=27 // pred_check
        %p278 = pneg %p110
      $region30: #{generator_forward.8} parent=27 // pred_check_branch
        %280 = sbr.rel (%p278) target = $region32
      $region31: #{generator_forward.8} parent=27 // pred_region
        %s281 = smul.u32 4, %s20
      $region32: #{generator_forward.8} parent=27 // pred_fallthru
        _
    $region28: #{generator_forward.8} parent=5 // pred_fallthru
      _
    %p282 = scmp.le.s32.totalorder 2, %s8
    // Predicated region
    $region33: #{generator_forward.8} parent=5 // pred_check
      %p283 = pneg %p282
    $region34: #{generator_forward.8} parent=5 // pred_check_branch
      %285 = sbr.rel (%p283) target = $region36
    $region35: #{generator_forward.8} parent=5 // pred_region
      %s286 = ssub.s32 %s8, 2
      // Predicated region
      $region37: #{generator_forward.8} parent=35 // pred_check
        %p287 = pneg %p116
      $region38: #{generator_forward.8} parent=35 // pred_check_branch
        %289 = sbr.rel (%p287) target = $region40
      $region39: #{generator_forward.8} parent=35 // pred_region
        %s290 = smul.u32 4, %s23
        %p291 = scmp.lt.s32.totalorder %s21, 3
        %s292 = scalar_select %p291, %s21, 3
        %p293 = scmp.lt.s32.totalorder %s290, 3
        %s294 = scalar_select %p293, %s290, 3
        %p295 = scmp.lt.s32.totalorder %s22, 0
        %s296 = scalar_select %p295, %s22, 0
        %s297 = sadd.s32 %s296, %s294
        %s298 = smul.addr %s292, 4
        %s299 = sadd.s32 %s297, %s298
        %s300 = smul.addr %s299, 4
        %s301 = scalar_lea.vmem %s2, %s300
      $region40: #{generator_forward.8} parent=35 // pred_fallthru
        _
    $region36: #{generator_forward.8} parent=5 // pred_fallthru
      _
  $region6: #{generator_forward.8} parent=0 // loop_footer
    %s12 = sadd.s32 1, %s8
  $region7: #{generator_forward.8} parent=0 // loop_footer_branch
    %7 = sbr.rel target = $region3
  $region8: #{generator_forward.8} parent=0 // loop_exit
    _

// kernel: generator_forward.10
$region0: #{generator_forward.10}
  #allocation0 [shape = 'u32[]', space=smem, size = 0x4, offset = 0x4, fixed_abs, tag = 'smem constant byte address 0x4 - core index']
  #allocation1 [shape = 'u32[72,128]{1,0:T(1,128)}', space=vmem, size = 0x9000, scoped, tag = 'internal scratch']
  %s0 = inlined_call_operand.vmem [shape: bf16[4,128,128], index: 0, kind: input, shape index: {}]
  %s1 = inlined_call_operand.vmem [shape: f32[2,128], index: 1, kind: input, shape index: {}]
  %s2 = inlined_call_operand.vmem [shape: bf16[4,128,128], index: 2, kind: output, shape index: {}]
  %s3 = sld [smem:[#allocation0]]
  $region41: #{generator_forward.10} parent=0
    _
  %s5 = ssub.s32 1, %s3
  %s6 = scalar_select 0, %s5, %s3
  loop: start=0, step=1, limit=6
  $region2: #{generator_forward.10} parent=0 // loop_pre_header
    _
  $region3: #{generator_forward.10} parent=0 // loop_header
    %s8 = sphi 0, %s12
    %p9 = scmp.ge.s32.totalorder %s8, 6
    %s15 = sphi 0, %s34
    %s16 = sphi 0, %s30
    %s17 = sphi 0, %s26
    %s18 = sphi 0, %s15
    %s19 = sphi 0, %s16
    %s20 = sphi 0, %s17
    %s21 = sphi 0, %s18
    %s22 = sphi 0, %s19
    %s23 = sphi 0, %s20
    %s41 = sphi 0, %s43
    %s44 = sphi 0, %s41
    %s45 = sphi 0, %s44
    %s61 = sphi 0, %s45
    %s67 = sphi 0, %s69
    %s70 = sphi 0, %s67
    %s71 = sphi 0, %s70
    %s87 = sphi 0, %s71
    %s97 = sphi 0, %s99
    %s100 = sphi 0, %s97
    %s101 = sphi 0, %s100
    %s117 = sphi 0, %s101
  $region4: #{generator_forward.10} parent=0 // loop_header_branch
    %11 = sbr.rel (%p9) target = $region8
  $region5: #{generator_forward.10} parent=0 // loop_body
    %s13 = ssub.s32 %s8, 1
    %s14 = ssub.s32 %s8, 2
    %s24 = sadd.s32 1, %s17
    %p25 = scmp.ge.s32.totalorder %s24, 1
    %s26 = scalar_select %p25, 0, %s24
    %s27 = sadd.s32 1, %s16
    %s28 = scalar_select %p25, %s27, %s16
    %p29 = scmp.ge.s32.totalorder %s28, 1
    %s30 = scalar_select %p29, 0, %s28
    %s31 = sadd.s32 1, %s15
    %s32 = scalar_select %p29, %s31, %s15
    %p33 = scmp.ge.s32.totalorder %s32, 4
    %s34 = scalar_select %p33, 0, %s32
    %s35 = ssub.s32 %s15, %s34
    %s36 = ssub.s32 %s17, %s26
    %s37 = sor.u32 %s35, %s36
    %s38 = ssub.s32 %s16, %s30
    %s39 = sor.u32 %s37, %s38
    %p40 = scmp.eq.s32.totalorder %s39, 0
    %s42 = sadd.s32 %s41, 1
    %s43 = scalar_select %p40, %s41, %s42
    %p46 = pneg %p40
    %p47 = scmp.eq.s32.totalorder %s8, 3
    %p48 = por %p46, %p47
    %p49 = scmp.ne.s32.totalorder %s41, %s44
    %p50 = scmp.eq.s32.totalorder %s8, 0
    %p51 = por %p49, %p50
    %p52 = scmp.ne.s32.totalorder %s41, %s44
    %p53 = scmp.eq.s32.totalorder %s13, 3
    %p54 = por %p52, %p53
    %p55 = scmp.ne.s32.totalorder %s44, %s45
    %p56 = scmp.eq.s32.totalorder %s13, 0
    %p57 = por %p55, %p56
    %p58 = scmp.ne.s32.totalorder %s44, %s45
    %p59 = scmp.eq.s32.totalorder %s14, 3
    %p60 = por %p58, %p59
    %p62 = scmp.ne.s32.totalorder %s45, %s61
    %p63 = scmp.eq.s32.totalorder %s14, 0
    %p64 = por %p62, %p63
    %s65 = ssub.s32 %s16, %s30
    %p66 = scmp.eq.s32.totalorder %s65, 0
    %s68 = sadd.s32 %s67, 1
    %s69 = scalar_select %p66, %s67, %s68
    %p72 = pneg %p66
    %p73 = scmp.eq.s32.totalorder %s8, 3
    %p74 = por %p72, %p73
    %p75 = scmp.ne.s32.totalorder %s67, %s70
    %p76 = scmp.eq.s32.totalorder %s8, 0
    %p77 = por %p75, %p76
    %p78 = scmp.ne.s32.totalorder %s67, %s70
    %p79 = scmp.eq.s32.totalorder %s13, 3
    %p80 = por %p78, %p79
    %p81 = scmp.ne.s32.totalorder %s70, %s71
    %p82 = scmp.eq.s32.totalorder %s13, 0
    %p83 = por %p81, %p82
    %p84 = scmp.ne.s32.totalorder %s70, %s71
    %p85 = scmp.eq.s32.totalorder %s14, 3
    %p86 = por %p84, %p85
    %p88 = scmp.ne.s32.totalorder %s71, %s87
    %p89 = scmp.eq.s32.totalorder %s14, 0
    %p90 = por %p88, %p89
    %s91 = ssub.s32 %s15, %s34
    %s92 = ssub.s32 %s17, %s26
    %s93 = sor.u32 %s91, %s92
    %s94 = ssub.s32 %s16, %s30
    %s95 = sor.u32 %s93, %s94
    %p96 = scmp.eq.s32.totalorder %s95, 0
    %s98 = sadd.s32 %s97, 1
    %s99 = scalar_select %p96, %s97, %s98
    %p102 = pneg %p96
    %p103 = scmp.eq.s32.totalorder %s8, 3
    %p104 = por %p102, %p103
    %p105 = scmp.ne.s32.totalorder %s97, %s100
    %p106 = scmp.eq.s32.totalorder %s8, 0
    %p107 = por %p105, %p106
    %p108 = scmp.ne.s32.totalorder %s97, %s100
    %p109 = scmp.eq.s32.totalorder %s13, 3
    %p110 = por %p108, %p109
    %p111 = scmp.ne.s32.totalorder %s100, %s101
    %p112 = scmp.eq.s32.totalorder %s13, 0
    %p113 = por %p111, %p112
    %p114 = scmp.ne.s32.totalorder %s100, %s101
    %p115 = scmp.eq.s32.totalorder %s14, 3
    %p116 = por %p114, %p115
    %p118 = scmp.ne.s32.totalorder %s101, %s117
    %p119 = scmp.eq.s32.totalorder %s14, 0
    %p120 = por %p118, %p119
    %p121 = scmp.le.s32.totalorder 1, %s8
    %p122 = scmp.lt.s32.totalorder %s8, 5
    %p123 = pnand %p121, %p122
    %p124 = pneg %p123
    // Predicated region
    $region9: #{generator_forward.10} parent=5 // pred_check
      _
    $region10: #{generator_forward.10} parent=5 // pred_check_branch
      %126 = sbr.rel (%p123) target = $region12
    $region11: #{generator_forward.10} parent=5 // pred_region
      %s127 = ssub.s32 %s8, 1
      // Predicated region
      $region13: #{generator_forward.10} parent=11 // pred_check
        %p128 = pneg %p83
      $region14: #{generator_forward.10} parent=11 // pred_check_branch
        %130 = sbr.rel (%p128) target = $region16
      $region15: #{generator_forward.10} parent=11 // pred_region
        %p131 = scmp.lt.s32.totalorder %s19, 0
        %s132 = scalar_select %p131, %s19, 0
        %s133 = smul.addr %s132, 2
        %s134 = scalar_lea.vmem %s1, %s133
      $region16: #{generator_forward.10} parent=11 // pred_fallthru
        _
    $region12: #{generator_forward.10} parent=5 // pred_fallthru
      _
    %p135 = scmp.lt.s32.totalorder %s8, 4
    // Predicated region
    $region17: #{generator_forward.10} parent=5 // pred_check
      %p136 = pneg %p135
    $region18: #{generator_forward.10} parent=5 // pred_check_branch
      %138 = sbr.rel (%p136) target = $region20
    $region19: #{generator_forward.10} parent=5 // pred_region
      // Predicated region
      $region21: #{generator_forward.10} parent=19 // pred_check
        %p139 = pneg %p51
      $region22: #{generator_forward.10} parent=19 // pred_check_branch
        %141 = sbr.rel (%p139) target = $region24
      $region23: #{generator_forward.10} parent=19 // pred_region
        %s142 = smul.u32 16, %s17
        %p143 = scmp.lt.s32.totalorder %s15, 3
        %s144 = scalar_select %p143, %s15, 3
        %p145 = scmp.lt.s32.totalorder %s142, 15
        %s146 = scalar_select %p145, %s142, 15
        %p147 = scmp.lt.s32.totalorder %s16, 0
        %s148 = scalar_select %p147, %s16, 0
        %s149 = sadd.s32 %s148, %s146
        %s150 = smul.addr %s144, 16
        %s151 = sadd.s32 %s149, %s150
        %s152 = smul.addr %s151, 4
        %s153 = scalar_lea.vmem %s0, %s152
        %s154 = smul.u32 16, %s17
      $region24: #{generator_forward.10} parent=19 // pred_fallthru
        _
    $region20: #{generator_forward.10} parent=5 // pred_fallthru
      _
    %p155 = scmp.le.s32.totalorder 1, %s8
    %p156 = scmp.lt.s32.totalorder %s8, 5
    %p157 = pnand %p155, %p156
    %p158 = pneg %p157
    // Predicated region
    $region25: #{generator_forward.10} parent=5 // pred_check
      _
    $region26: #{generator_forward.10} parent=5 // pred_check_branch
      %160 = sbr.rel (%p157) target = $region28
    $region27: #{generator_forward.10} parent=5 // pred_region
      %s161 = ssub.s32 %s8, 1
      %s162 = smul.u32 16, %s20
      %p163 = scmp.lt.s32.totalorder %s18, 3
      %s164 = scalar_select %p163, %s18, 3
      %p165 = scmp.lt.s32.totalorder %s162, 15
      %s166 = scalar_select %p165, %s162, 15
      %p167 = scmp.lt.s32.totalorder %s19, 0
      %s168 = scalar_select %p167, %s19, 0
      %s169 = sadd.s32 %s168, %s166
      %s170 = smul.addr %s164, 16
      %s171 = sadd.s32 %s169, %s170
      %s172 = smul.addr %s171, 4
      %s173 = scalar_lea.vmem %s0, %s172
      %p174 = pneg %p57
      %p175 = pneg %p54
      %p176 = scmp.lt.s32.totalorder %s19, 0
      %s177 = scalar_select %p176, %s19, 0
      %s178 = smul.addr %s177, 2
      %s179 = scalar_lea.vmem %s1, %s178
      %p180 = pneg %p83
      %p181 = pneg %p80
      %p182 = pneg %p113
      %p183 = pneg %p110
      %s184 = smul.u32 16, %s20
      %p185 = scmp.lt.s32.totalorder %s18, 3
      %s186 = scalar_select %p185, %s18, 3
      %p187 = scmp.lt.s32.totalorder %s184, 15
      %s188 = scalar_select %p187, %s184, 15
      %p189 = scmp.lt.s32.totalorder %s19, 0
      %s190 = scalar_select %p189, %s19, 0
      %s191 = sadd.s32 %s190, %s188
      %s192 = smul.addr %s186, 16
      %s193 = sadd.s32 %s191, %s192
      %s194 = smul.addr %s193, 4
      %s195 = scalar_lea.vmem %s2, %s194
      %s196 = smul.u32 16, %s20
      %p197 = scmp.lt.s32.totalorder %s18, 3
      %s198 = scalar_select %p197, %s18, 3
      %p199 = scmp.lt.s32.totalorder %s196, 15
      %s200 = scalar_select %p199, %s196, 15
      %p201 = scmp.lt.s32.totalorder %s19, 0
      %s202 = scalar_select %p201, %s19, 0
      %s203 = sadd.s32 %s202, %s200
      %s204 = smul.addr %s198, 16
      %s205 = sadd.s32 %s203, %s204
      %s206 = smul.addr %s205, 4
      %s207 = scalar_lea.vmem %s0, %s206
      %s208 = smul.u32 16, %s20
      %p209 = scmp.lt.s32.totalorder %s19, 0
      %s210 = scalar_select %p209, %s19, 0
      %s211 = smul.addr %s210, 2
      %s212 = scalar_lea.vmem %s1, %s211
      %s213 = smul.u32 16, %s20
      %p214 = scmp.lt.s32.totalorder %s18, 3
      %s215 = scalar_select %p214, %s18, 3
      %p216 = scmp.lt.s32.totalorder %s213, 15
      %s217 = scalar_select %p216, %s213, 15
      %p218 = scmp.lt.s32.totalorder %s19, 0
      %s219 = scalar_select %p218, %s19, 0
      %s220 = sadd.s32 %s219, %s217
      %s221 = smul.addr %s215, 16
      %s222 = sadd.s32 %s220, %s221
      %s223 = smul.addr %s222, 4
      %s224 = scalar_lea.vmem %s2, %s223
      %s225 = smul.u32 16, %s20
      %v226 = vld [vmem:[%s207] sm:$0xf]
      %v227 = vld [vmem:[%s207 + $0x4] sm:$0xf]
      %v228 = vld [vmem:[%s207 + $0x8] sm:$0xf]
      %v229 = vld [vmem:[%s207 + $0xc] sm:$0xf]
      %v230 = vld [vmem:[%s207 + $0x10] sm:$0xf]
      %v231 = vld [vmem:[%s207 + $0x14] sm:$0xf]
      %v232 = vld [vmem:[%s207 + $0x18] sm:$0xf]
      %v233 = vld [vmem:[%s207 + $0x1c] sm:$0xf]
      %v234 = vld [vmem:[%s207 + $0x20] sm:$0xf]
      %v235 = vld [vmem:[%s207 + $0x24] sm:$0xf]
      %v236 = vld [vmem:[%s207 + $0x28] sm:$0xf]
      %v237 = vld [vmem:[%s207 + $0x2c] sm:$0xf]
      %v238 = vld [vmem:[%s207 + $0x30] sm:$0xf]
      %v239 = vld [vmem:[%s207 + $0x34] sm:$0xf]
      %v240 = vld [vmem:[%s207 + $0x38] sm:$0xf]
      %v241 = vld [vmem:[%s207 + $0x3c] sm:$0xf]
      %v242 = vunpack.c.l.bf16 %v226
      %v243 = vunpack.c.l.bf16 %v227
      %v244 = vunpack.c.l.bf16 %v228
      %v245 = vunpack.c.l.bf16 %v229
      %v246 = vunpack.c.l.bf16 %v230
      %v247 = vunpack.c.l.bf16 %v231
      %v248 = vunpack.c.l.bf16 %v232
      %v249 = vunpack.c.l.bf16 %v233
      %v250 = vunpack.c.l.bf16 %v234
      %v251 = vunpack.c.l.bf16 %v235
      %v252 = vunpack.c.l.bf16 %v236
      %v253 = vunpack.c.l.bf16 %v237
      %v254 = vunpack.c.l.bf16 %v238
      %v255 = vunpack.c.l.bf16 %v239
      %v256 = vunpack.c.l.bf16 %v240
      %v257 = vunpack.c.l.bf16 %v241
      %v258 = vld [vmem:[%s212] sm:$0x1]
      %v259 = vperm.slane %v258, 0
      %v260 = vmul.f32 %v242, %v259
      %v261 = vmul.f32 %v243, %v259
      %v262 = vmul.f32 %v244, %v259
      %v263 = vmul.f32 %v245, %v259
      %v264 = vmul.f32 %v246, %v259
      %v265 = vmul.f32 %v247, %v259
      %v266 = vmul.f32 %v248, %v259
      %v267 = vmul.f32 %v249, %v259
      %v268 = vmul.f32 %v250, %v259
      %v269 = vmul.f32 %v251, %v259
      %v270 = vmul.f32 %v252, %v259
      %v271 = vmul.f32 %v253, %v259
      %v272 = vmul.f32 %v254, %v259
      %v273 = vmul.f32 %v255, %v259
      %v274 = vmul.f32 %v256, %v259
      %v275 = vmul.f32 %v257, %v259
      %v276 = vld [vmem:[%s212 + $0x1] sm:$0x1]
      %v277 = vperm.slane %v276, 0
      %v278 = vadd.f32 %v260, %v277
      %v279 = vadd.f32 %v261, %v277
      %v280 = vadd.f32 %v262, %v277
      %v281 = vadd.f32 %v263, %v277
      %v282 = vadd.f32 %v264, %v277
      %v283 = vadd.f32 %v265, %v277
      %v284 = vadd.f32 %v266, %v277
      %v285 = vadd.f32 %v267, %v277
      %v286 = vadd.f32 %v268, %v277
      %v287 = vadd.f32 %v269, %v277
      %v288 = vadd.f32 %v270, %v277
      %v289 = vadd.f32 %v271, %v277
      %v290 = vadd.f32 %v272, %v277
      %v291 = vadd.f32 %v273, %v277
      %v292 = vadd.f32 %v274, %v277
      %v293 = vadd.f32 %v275, %v277
      %vm294 = vcmp.ge.f32.partialorder %v278, 0.0
      %vm295 = vcmp.ge.f32.partialorder %v279, 0.0
      %vm296 = vcmp.ge.f32.partialorder %v280, 0.0
      %vm297 = vcmp.ge.f32.partialorder %v281, 0.0
      %vm298 = vcmp.ge.f32.partialorder %v282, 0.0
      %vm299 = vcmp.ge.f32.partialorder %v283, 0.0
      %vm300 = vcmp.ge.f32.partialorder %v284, 0.0
      %vm301 = vcmp.ge.f32.partialorder %v285, 0.0
      %vm302 = vcmp.ge.f32.partialorder %v286, 0.0
      %vm303 = vcmp.ge.f32.partialorder %v287, 0.0
      %vm304 = vcmp.ge.f32.partialorder %v288, 0.0
      %vm305 = vcmp.ge.f32.partialorder %v289, 0.0
      %vm306 = vcmp.ge.f32.partialorder %v290, 0.0
      %vm307 = vcmp.ge.f32.partialorder %v291, 0.0
      %vm308 = vcmp.ge.f32.partialorder %v292, 0.0
      %vm309 = vcmp.ge.f32.partialorder %v293, 0.0
      %v310 = vmul.f32 %v278, 0.2
      %v311 = vmul.f32 %v279, 0.2
      %v312 = vmul.f32 %v280, 0.2
      %v313 = vmul.f32 %v281, 0.2
      %v314 = vmul.f32 %v282, 0.2
      %v315 = vmul.f32 %v283, 0.2
      %v316 = vmul.f32 %v284, 0.2
      %v317 = vmul.f32 %v285, 0.2
      %v318 = vmul.f32 %v286, 0.2
      %v319 = vmul.f32 %v287, 0.2
      %v320 = vmul.f32 %v288, 0.2
      %v321 = vmul.f32 %v289, 0.2
      %v322 = vmul.f32 %v290, 0.2
      %v323 = vmul.f32 %v291, 0.2
      %v324 = vmul.f32 %v292, 0.2
      %v325 = vmul.f32 %v293, 0.2
      %v326 = vsel %vm294, %v278, %v310
      %v327 = vsel %vm295, %v279, %v311
      %v328 = vsel %vm296, %v280, %v312
      %v329 = vsel %vm297, %v281, %v313
      %v330 = vsel %vm298, %v282, %v314
      %v331 = vsel %vm299, %v283, %v315
      %v332 = vsel %vm300, %v284, %v316
      %v333 = vsel %vm301, %v285, %v317
      %v334 = vsel %vm302, %v286, %v318
      %v335 = vsel %vm303, %v287, %v319
      %v336 = vsel %vm304, %v288, %v320
      %v337 = vsel %vm305, %v289, %v321
      %v338 = vsel %vm306, %v290, %v322
      %v339 = vsel %vm307, %v291, %v323
      %v340 = vsel %vm308, %v292, %v324
      %v341 = vsel %vm309, %v293, %v325
      %v342 = vpack.c.bf16 %v326, %v326
      %v343 = vpack.c.bf16 %v327, %v327
      %v344 = vpack.c.bf16 %v328, %v328
      %v345 = vpack.c.bf16 %v329, %v329
      %v346 = vpack.c.bf16 %v330, %v330
      %v347 = vpack.c.bf16 %v331, %v331
      %v348 = vpack.c.bf16 %v332, %v332
      %v349 = vpack.c.bf16 %v333, %v333
      %v350 = vpack.c.bf16 %v334, %v334
      %v351 = vpack.c.bf16 %v335, %v335
      %v352 = vpack.c.bf16 %v336, %v336
      %v353 = vpack.c.bf16 %v337, %v337
      %v354 = vpack.c.bf16 %v338, %v338
      %v355 = vpack.c.bf16 %v339, %v339
      %v356 = vpack.c.bf16 %v340, %v340
      %v357 = vpack.c.bf16 %v341, %v341
      %358 = vst [vmem:[%s224] sm:$0xf] %v342
      %359 = vst [vmem:[%s224 + $0x4] sm:$0xf] %v343
      %360 = vst [vmem:[%s224 + $0x8] sm:$0xf] %v344
      %361 = vst [vmem:[%s224 + $0xc] sm:$0xf] %v345
      %362 = vst [vmem:[%s224 + $0x10] sm:$0xf] %v346
      %363 = vst [vmem:[%s224 + $0x14] sm:$0xf] %v347
      %364 = vst [vmem:[%s224 + $0x18] sm:$0xf] %v348
      %365 = vst [vmem:[%s224 + $0x1c] sm:$0xf] %v349
      %366 = vst [vmem:[%s224 + $0x20] sm:$0xf] %v350
      %367 = vst [vmem:[%s224 + $0x24] sm:$0xf] %v351
      %368 = vst [vmem:[%s224 + $0x28] sm:$0xf] %v352
      %369 = vst [vmem:[%s224 + $0x2c] sm:$0xf] %v353
      %370 = vst [vmem:[%s224 + $0x30] sm:$0xf] %v354
      %371 = vst [vmem:[%s224 + $0x34] sm:$0xf] %v355
      %372 = vst [vmem:[%s224 + $0x38] sm:$0xf] %v356
      %373 = vst [vmem:[%s224 + $0x3c] sm:$0xf] %v357
      %s374 = smul.u32 16, %s20
      %p375 = scmp.lt.s32.totalorder %s18, 3
      %s376 = scalar_select %p375, %s18, 3
      %p377 = scmp.lt.s32.totalorder %s374, 15
      %s378 = scalar_select %p377, %s374, 15
      %p379 = scmp.lt.s32.totalorder %s19, 0
      %s380 = scalar_select %p379, %s19, 0
      %s381 = sadd.s32 %s380, %s378
      %s382 = smul.addr %s376, 16
      %s383 = sadd.s32 %s381, %s382
      %s384 = smul.addr %s383, 4
      %s385 = scalar_lea.vmem %s2, %s384
      // Predicated region
      $region29: #{generator_forward.10} parent=27 // pred_check
        %p386 = pneg %p110
      $region30: #{generator_forward.10} parent=27 // pred_check_branch
        %388 = sbr.rel (%p386) target = $region32
      $region31: #{generator_forward.10} parent=27 // pred_region
        %s389 = smul.u32 16, %s20
      $region32: #{generator_forward.10} parent=27 // pred_fallthru
        _
    $region28: #{generator_forward.10} parent=5 // pred_fallthru
      _
    %p390 = scmp.le.s32.totalorder 2, %s8
    // Predicated region
    $region33: #{generator_forward.10} parent=5 // pred_check
      %p391 = pneg %p390
    $region34: #{generator_forward.10} parent=5 // pred_check_branch
      %393 = sbr.rel (%p391) target = $region36
    $region35: #{generator_forward.10} parent=5 // pred_region
      %s394 = ssub.s32 %s8, 2
      // Predicated region
      $region37: #{generator_forward.10} parent=35 // pred_check
        %p395 = pneg %p116
      $region38: #{generator_forward.10} parent=35 // pred_check_branch
        %397 = sbr.rel (%p395) target = $region40
      $region39: #{generator_forward.10} parent=35 // pred_region
        %s398 = smul.u32 16, %s23
        %p399 = scmp.lt.s32.totalorder %s21, 3
        %s400 = scalar_select %p399, %s21, 3
        %p401 = scmp.lt.s32.totalorder %s398, 15
        %s402 = scalar_select %p401, %s398, 15
        %p403 = scmp.lt.s32.totalorder %s22, 0
        %s404 = scalar_select %p403, %s22, 0
        %s405 = sadd.s32 %s404, %s402
        %s406 = smul.addr %s400, 16
        %s407 = sadd.s32 %s405, %s406
        %s408 = smul.addr %s407, 4
        %s409 = scalar_lea.vmem %s2, %s408
      $region40: #{generator_forward.10} parent=35 // pred_fallthru
        _
    $region36: #{generator_forward.10} parent=5 // pred_fallthru
      _
  $region6: #{generator_forward.10} parent=0 // loop_footer
    %s12 = sadd.s32 1, %s8
  $region7: #{generator_forward.10} parent=0 // loop_footer_branch
    %7 = sbr.rel target = $region3
  $region8: #{generator_forward.10} parent=0 // loop_exit
    _

// kernel: generator_forward.9
$region0: #{generator_forward.9}
  #allocation0 [shape = 'u32[]', space=smem, size = 0x4, offset = 0x4, fixed_abs, tag = 'smem constant byte address 0x4 - core index']
  #allocation1 [shape = 'u32[72,128]{1,0:T(1,128)}', space=vmem, size = 0x9000, scoped, tag = 'internal scratch']
  %s0 = inlined_call_operand.vmem [shape: bf16[4,128,64], index: 0, kind: input, shape index: {}]
  %s1 = inlined_call_operand.vmem [shape: bf16[4,64,128], index: 1, kind: input, shape index: {}]
  %s2 = inlined_call_operand.vmem [shape: bf16[4,128,128], index: 2, kind: output, shape index: {0}]
  %s3 = inlined_call_operand.vmem [shape: f32[4,8,128], index: 3, kind: output, shape index: {1}]
  %s4 = inlined_call_operand.vmem [shape: f32[4,8,128], index: 4, kind: output, shape index: {2}]
  %5 = xla_tuple %s2, %s3, %s4
  %s6 = sld [smem:[#allocation0]]
  $region57: #{generator_forward.9} parent=0
    _
  %s8 = ssub.s32 1, %s6
  %s9 = scalar_select 0, %s8, %s6
  loop: start=0, step=1, limit=6
  $region2: #{generator_forward.9} parent=0 // loop_pre_header
    _
  $region3: #{generator_forward.9} parent=0 // loop_header
    %s11 = sphi 0, %s15
    %p12 = scmp.ge.s32.totalorder %s11, 6
    %s18 = sphi 0, %s37
    %s19 = sphi 0, %s33
    %s20 = sphi 0, %s29
    %s21 = sphi 0, %s18
    %s22 = sphi 0, %s19
    %s23 = sphi 0, %s20
    %s24 = sphi 0, %s21
    %s25 = sphi 0, %s22
    %s26 = sphi 0, %s23
    %s42 = sphi 0, %s44
    %s45 = sphi 0, %s42
    %s46 = sphi 0, %s45
    %s62 = sphi 0, %s46
    %s70 = sphi 0, %s72
    %s73 = sphi 0, %s70
    %s74 = sphi 0, %s73
    %s90 = sphi 0, %s74
    %s100 = sphi 0, %s102
    %s103 = sphi 0, %s100
    %s104 = sphi 0, %s103
    %s120 = sphi 0, %s104
    %s130 = sphi 0, %s132
    %s133 = sphi 0, %s130
    %s134 = sphi 0, %s133
    %s150 = sphi 0, %s134
    %s160 = sphi 0, %s162
    %s163 = sphi 0, %s160
    %s164 = sphi 0, %s163
    %s180 = sphi 0, %s164
  $region4: #{generator_forward.9} parent=0 // loop_header_branch
    %14 = sbr.rel (%p12) target = $region8
  $region5: #{generator_forward.9} parent=0 // loop_body
    %s16 = ssub.s32 %s11, 1
    %s17 = ssub.s32 %s11, 2
    %s27 = sadd.s32 1, %s20
    %p28 = scmp.ge.s32.totalorder %s27, 1
    %s29 = scalar_select %p28, 0, %s27
    %s30 = sadd.s32 1, %s19
    %s31 = scalar_select %p28, %s30, %s19
    %p32 = scmp.ge.s32.totalorder %s31, 1
    %s33 = scalar_select %p32, 0, %s31
    %s34 = sadd.s32 1, %s18
    %s35 = scalar_select %p32, %s34, %s18
    %p36 = scmp.ge.s32.totalorder %s35, 4
    %s37 = scalar_select %p36, 0, %s35
    %s38 = ssub.s32 %s18, %s37
    %s39 = ssub.s32 %s19, %s33
    %s40 = sor.u32 %s38, %s39
    %p41 = scmp.eq.s32.totalorder %s40, 0
    %s43 = sadd.s32 %s42, 1
    %s44 = scalar_select %p41, %s42, %s43
    %p47 = pneg %p41
    %p48 = scmp.eq.s32.totalorder %s11, 3
    %p49 = por %p47, %p48
    %p50 = scmp.ne.s32.totalorder %s42, %s45
    %p51 = scmp.eq.s32.totalorder %s11, 0
    %p52 = por %p50, %p51
    %p53 = scmp.ne.s32.totalorder %s42, %s45
    %p54 = scmp.eq.s32.totalorder %s16, 3
    %p55 = por %p53, %p54
    %p56 = scmp.ne.s32.totalorder %s45, %s46
    %p57 = scmp.eq.s32.totalorder %s16, 0
    %p58 = por %p56, %p57
    %p59 = scmp.ne.s32.totalorder %s45, %s46
    %p60 = scmp.eq.s32.totalorder %s17, 3
    %p61 = por %p59, %p60
    %p63 = scmp.ne.s32.totalorder %s46, %s62
    %p64 = scmp.eq.s32.totalorder %s17, 0
    %p65 = por %p63, %p64
    %s66 = ssub.s32 %s18, %s37
    %s67 = ssub.s32 %s20, %s29
    %s68 = sor.u32 %s66, %s67
    %p69 = scmp.eq.s32.totalorder %s68, 0
    %s71 = sadd.s32 %s70, 1
    %s72 = scalar_select %p69, %s70, %s71
    %p75 = pneg %p69
    %p76 = scmp.eq.s32.totalorder %s11, 3
    %p77 = por %p75, %p76
    %p78 = scmp.ne.s32.totalorder %s70, %s73
    %p79 = scmp.eq.s32.totalorder %s11, 0
    %p80 = por %p78, %p79
    %p81 = scmp.ne.s32.totalorder %s70, %s73
    %p82 = scmp.eq.s32.totalorder %s16, 3
    %p83 = por %p81, %p82
    %p84 = scmp.ne.s32.totalorder %s73, %s74
    %p85 = scmp.eq.s32.totalorder %s16, 0
    %p86 = por %p84, %p85
    %p87 = scmp.ne.s32.totalorder %s73, %s74
    %p88 = scmp.eq.s32.totalorder %s17, 3
    %p89 = por %p87, %p88
    %p91 = scmp.ne.s32.totalorder %s74, %s90
    %p92 = scmp.eq.s32.totalorder %s17, 0
    %p93 = por %p91, %p92
    %s94 = ssub.s32 %s18, %s37
    %s95 = ssub.s32 %s19, %s33
    %s96 = sor.u32 %s94, %s95
    %s97 = ssub.s32 %s20, %s29
    %s98 = sor.u32 %s96, %s97
    %p99 = scmp.eq.s32.totalorder %s98, 0
    %s101 = sadd.s32 %s100, 1
    %s102 = scalar_select %p99, %s100, %s101
    %p105 = pneg %p99
    %p106 = scmp.eq.s32.totalorder %s11, 3
    %p107 = por %p105, %p106
    %p108 = scmp.ne.s32.totalorder %s100, %s103
    %p109 = scmp.eq.s32.totalorder %s11, 0
    %p110 = por %p108, %p109
    %p111 = scmp.ne.s32.totalorder %s100, %s103
    %p112 = scmp.eq.s32.totalorder %s16, 3
    %p113 = por %p111, %p112
    %p114 = scmp.ne.s32.totalorder %s103, %s104
    %p115 = scmp.eq.s32.totalorder %s16, 0
    %p116 = por %p114, %p115
    %p117 = scmp.ne.s32.totalorder %s103, %s104
    %p118 = scmp.eq.s32.totalorder %s17, 3
    %p119 = por %p117, %p118
    %p121 = scmp.ne.s32.totalorder %s104, %s120
    %p122 = scmp.eq.s32.totalorder %s17, 0
    %p123 = por %p121, %p122
    %s124 = ssub.s32 %s18, %s37
    %s125 = ssub.s32 %s19, %s33
    %s126 = sor.u32 %s124, %s125
    %s127 = ssub.s32 %s20, %s29
    %s128 = sor.u32 %s126, %s127
    %p129 = scmp.eq.s32.totalorder %s128, 0
    %s131 = sadd.s32 %s130, 1
    %s132 = scalar_select %p129, %s130, %s131
    %p135 = pneg %p129
    %p136 = scmp.eq.s32.totalorder %s11, 3
    %p137 = por %p135, %p136
    %p138 = scmp.ne.s32.totalorder %s130, %s133
    %p139 = scmp.eq.s32.totalorder %s11, 0
    %p140 = por %p138, %p139
    %p141 = scmp.ne.s32.totalorder %s130, %s133
    %p142 = scmp.eq.s32.totalorder %s16, 3
    %p143 = por %p141, %p142
    %p144 = scmp.ne.s32.totalorder %s133, %s134
    %p145 = scmp.eq.s32.totalorder %s16, 0
    %p146 = por %p144, %p145
    %p147 = scmp.ne.s32.totalorder %s133, %s134
    %p148 = scmp.eq.s32.totalorder %s17, 3
    %p149 = por %p147, %p148
    %p151 = scmp.ne.s32.totalorder %s134, %s150
    %p152 = scmp.eq.s32.totalorder %s17, 0
    %p153 = por %p151, %p152
    %s154 = ssub.s32 %s18, %s37
    %s155 = ssub.s32 %s19, %s33
    %s156 = sor.u32 %s154, %s155
    %s157 = ssub.s32 %s20, %s29
    %s158 = sor.u32 %s156, %s157
    %p159 = scmp.eq.s32.totalorder %s158, 0
    %s161 = sadd.s32 %s160, 1
    %s162 = scalar_select %p159, %s160, %s161
    %p165 = pneg %p159
    %p166 = scmp.eq.s32.totalorder %s11, 3
    %p167 = por %p165, %p166
    %p168 = scmp.ne.s32.totalorder %s160, %s163
    %p169 = scmp.eq.s32.totalorder %s11, 0
    %p170 = por %p168, %p169
    %p171 = scmp.ne.s32.totalorder %s160, %s163
    %p172 = scmp.eq.s32.totalorder %s16, 3
    %p173 = por %p171, %p172
    %p174 = scmp.ne.s32.totalorder %s163, %s164
    %p175 = scmp.eq.s32.totalorder %s16, 0
    %p176 = por %p174, %p175
    %p177 = scmp.ne.s32.totalorder %s163, %s164
    %p178 = scmp.eq.s32.totalorder %s17, 3
    %p179 = por %p177, %p178
    %p181 = scmp.ne.s32.totalorder %s164, %s180
    %p182 = scmp.eq.s32.totalorder %s17, 0
    %p183 = por %p181, %p182
    %p184 = scmp.le.s32.totalorder 1, %s11
    %p185 = scmp.lt.s32.totalorder %s11, 5
    %p186 = pnand %p184, %p185
    %p187 = pneg %p186
    // Predicated region
    $region9: #{generator_forward.9} parent=5 // pred_check
      _
    $region10: #{generator_forward.9} parent=5 // pred_check_branch
      %189 = sbr.rel (%p186) target = $region12
    $region11: #{generator_forward.9} parent=5 // pred_region
      %s190 = ssub.s32 %s11, 1
    $region12: #{generator_forward.9} parent=5 // pred_fallthru
      _
    %p191 = scmp.lt.s32.totalorder %s11, 4
    // Predicated region
    $region13: #{generator_forward.9} parent=5 // pred_check
      %p192 = pneg %p191
    $region14: #{generator_forward.9} parent=5 // pred_check_branch
      %194 = sbr.rel (%p192) target = $region16
    $region15: #{generator_forward.9} parent=5 // pred_region
      // Predicated region
      $region17: #{generator_forward.9} parent=15 // pred_check
        %p195 = pneg %p52
      $region18: #{generator_forward.9} parent=15 // pred_check_branch
        %197 = sbr.rel (%p195) target = $region20
      $region19: #{generator_forward.9} parent=15 // pred_region
        %s198 = smul.u32 16, %s19
        %p199 = scmp.lt.s32.totalorder %s18, 3
        %s200 = scalar_select %p199, %s18, 3
        %p201 = scmp.lt.s32.totalorder %s198, 15
        %s202 = scalar_select %p201, %s198, 15
        %s203 = smul.addr %s200, 16
        %s204 = sadd.s32 %s202, %s203
        %s205 = smul.addr %s204, 4
        %s206 = scalar_lea.vmem %s0, %s205
        %s207 = smul.u32 16, %s19
      $region20: #{generator_forward.9} parent=15 // pred_fallthru
        _
      // Predicated region
      $region21: #{generator_forward.9} parent=15 // pred_check
        %p208 = pneg %p80
      $region22: #{generator_forward.9} parent=15 // pred_check_branch
        %210 = sbr.rel (%p208) target = $region24
      $region23: #{generator_forward.9} parent=15 // pred_region
        %p211 = scmp.lt.s32.totalorder %s18, 3
        %s212 = scalar_select %p211, %s18, 3
        %p213 = scmp.lt.s32.totalorder %s20, 0
        %s214 = scalar_select %p213, %s20, 0
        %s215 = smul.addr %s212, 8
        %s216 = sadd.s32 %s214, %s215
        %s217 = smul.addr %s216, 4
        %s218 = scalar_lea.vmem %s1, %s217
      $region24: #{generator_forward.9} parent=15 // pred_fallthru
        _
    $region16: #{generator_forward.9} parent=5 // pred_fallthru
      _
    %p219 = scmp.le.s32.totalorder 1, %s11
    %p220 = scmp.lt.s32.totalorder %s11, 5
    %p221 = pnand %p219, %p220
    %p222 = pneg %p221
    // Predicated region
    $region25: #{generator_forward.9} parent=5 // pred_check
      _
    $region26: #{generator_forward.9} parent=5 // pred_check_branch
      %224 = sbr.rel (%p221) target = $region28
    $region27: #{generator_forward.9} parent=5 // pred_region
      %s225 = ssub.s32 %s11, 1
      %s226 = smul.u32 16, %s22
      %p227 = scmp.lt.s32.totalorder %s21, 3
      %s228 = scalar_select %p227, %s21, 3
      %p229 = scmp.lt.s32.totalorder %s226, 15
      %s230 = scalar_select %p229, %s226, 15
      %s231 = smul.addr %s228, 16
      %s232 = sadd.s32 %s230, %s231
      %s233 = smul.addr %s232, 4
      %s234 = scalar_lea.vmem %s0, %s233
      %p235 = pneg %p58
      %p236 = pneg %p55
      %p237 = scmp.lt.s32.totalorder %s21, 3
      %s238 = scalar_select %p237, %s21, 3
      %p239 = scmp.lt.s32.totalorder %s23, 0
      %s240 = scalar_select %p239, %s23, 0
      %s241 = smul.addr %s238, 8
      %s242 = sadd.s32 %s240, %s241
      %s243 = smul.addr %s242, 4
      %s244 = scalar_lea.vmem %s1, %s243
      %p245 = pneg %p86
      %p246 = pneg %p83
      %p247 = pneg %p116
      %p248 = pneg %p113
      %s249 = smul.u32 16, %s22
      %p250 = scmp.lt.s32.totalorder %s21, 3
      %s251 = scalar_select %p250, %s21, 3
      %p252 = scmp.lt.s32.totalorder %s249, 15
      %s253 = scalar_select %p252, %s249, 15
      %p254 = scmp.lt.s32.totalorder %s23, 0
      %s255 = scalar_select %p254, %s23, 0
      %s256 = sadd.s32 %s255, %s253
      %s257 = smul.addr %s251, 16
      %s258 = sadd.s32 %s256, %s257
      %s259 = smul.addr %s258, 4
      %s260 = scalar_lea.vmem %s2, %s259
      %p261 = pneg %p146
      %p262 = pneg %p143
      %p263 = scmp.lt.s32.totalorder %s21, 3
      %s264 = scalar_select %p263, %s21, 3
      %p265 = scmp.lt.s32.totalorder %s22, 0
      %s266 = scalar_select %p265, %s22, 0
      %p267 = scmp.lt.s32.totalorder %s23, 0
      %s268 = scalar_select %p267, %s23, 0
      %s269 = sadd.s32 %s268, %s266
      %s270 = sadd.s32 %s269, %s264
      %s271 = smul.addr %s270, 8
      %s272 = scalar_lea.vmem %s3, %s271
      %p273 = pneg %p176
      %p274 = pneg %p173
      %p275 = scmp.lt.s32.totalorder %s21, 3
      %s276 = scalar_select %p275, %s21, 3
      %p277 = scmp.lt.s32.totalorder %s22, 0
      %s278 = scalar_select %p277, %s22, 0
      %p279 = scmp.lt.s32.totalorder %s23, 0
      %s280 = scalar_select %p279, %s23, 0
      %s281 = sadd.s32 %s280, %s278
      %s282 = sadd.s32 %s281, %s276
      %s283 = smul.addr %s282, 8
      %s284 = scalar_lea.vmem %s4, %s283
      %s285 = smul.u32 16, %s22
      %p286 = scmp.lt.s32.totalorder %s21, 3
      %s287 = scalar_select %p286, %s21, 3
      %p288 = scmp.lt.s32.totalorder %s285, 15
      %s289 = scalar_select %p288, %s285, 15
      %s290 = smul.addr %s287, 16
      %s291 = sadd.s32 %s289, %s290
      %s292 = smul.addr %s291, 4
      %s293 = scalar_lea.vmem %s0, %s292
      %s294 = smul.u32 16, %s22
      %p295 = scmp.lt.s32.totalorder %s21, 3
      %s296 = scalar_select %p295, %s21, 3
      %p297 = scmp.lt.s32.totalorder %s23, 0
      %s298 = scalar_select %p297, %s23, 0
      %s299 = smul.addr %s296, 8
      %s300 = sadd.s32 %s298, %s299
      %s301 = smul.addr %s300, 4
      %s302 = scalar_lea.vmem %s1, %s301
      %s303 = smul.u32 16, %s22
      %p304 = scmp.lt.s32.totalorder %s21, 3
      %s305 = scalar_select %p304, %s21, 3
      %p306 = scmp.lt.s32.totalorder %s303, 15
      %s307 = scalar_select %p306, %s303, 15
      %p308 = scmp.lt.s32.totalorder %s23, 0
      %s309 = scalar_select %p308, %s23, 0
      %s310 = sadd.s32 %s309, %s307
      %s311 = smul.addr %s305, 16
      %s312 = sadd.s32 %s310, %s311
      %s313 = smul.addr %s312, 4
      %s314 = scalar_lea.vmem %s2, %s313
      %s315 = smul.u32 16, %s22
      %p316 = scmp.lt.s32.totalorder %s21, 3
      %s317 = scalar_select %p316, %s21, 3
      %p318 = scmp.lt.s32.totalorder %s22, 0
      %s319 = scalar_select %p318, %s22, 0
      %p320 = scmp.lt.s32.totalorder %s23, 0
      %s321 = scalar_select %p320, %s23, 0
      %s322 = sadd.s32 %s321, %s319
      %s323 = sadd.s32 %s322, %s317
      %s324 = smul.addr %s323, 8
      %s325 = scalar_lea.vmem %s3, %s324
      %p326 = scmp.lt.s32.totalorder %s21, 3
      %s327 = scalar_select %p326, %s21, 3
      %p328 = scmp.lt.s32.totalorder %s22, 0
      %s329 = scalar_select %p328, %s22, 0
      %p330 = scmp.lt.s32.totalorder %s23, 0
      %s331 = scalar_select %p330, %s23, 0
      %s332 = sadd.s32 %s331, %s329
      %s333 = sadd.s32 %s332, %s327
      %s334 = smul.addr %s333, 8
      %s335 = scalar_lea.vmem %s4, %s334
      %v337 = vld [vmem:[%s293] sm:$0xf]
      %v338 = vld [vmem:[%s293 + $0x4] sm:$0xf]
      %v339 = vld [vmem:[%s293 + $0x8] sm:$0xf]
      %v340 = vld [vmem:[%s293 + $0xc] sm:$0xf]
      %v341 = vld [vmem:[%s293 + $0x10] sm:$0xf]
      %v342 = vld [vmem:[%s293 + $0x14] sm:$0xf]
      %v343 = vld [vmem:[%s293 + $0x18] sm:$0xf]
      %v344 = vld [vmem:[%s293 + $0x1c] sm:$0xf]
      %v345 = vld [vmem:[%s293 + $0x20] sm:$0xf]
      %v346 = vld [vmem:[%s293 + $0x24] sm:$0xf]
      %v347 = vld [vmem:[%s293 + $0x28] sm:$0xf]
      %v348 = vld [vmem:[%s293 + $0x2c] sm:$0xf]
      %v349 = vld [vmem:[%s293 + $0x30] sm:$0xf]
      %v350 = vld [vmem:[%s293 + $0x34] sm:$0xf]
      %v351 = vld [vmem:[%s293 + $0x38] sm:$0xf]
      %v352 = vld [vmem:[%s293 + $0x3c] sm:$0xf]
      %v353 = vld [vmem:[%s302] sm:$0xf]
      %v354 = vld [vmem:[%s302 + $0x4] sm:$0xf]
      %v355 = vld [vmem:[%s302 + $0x8] sm:$0xf]
      %v356 = vld [vmem:[%s302 + $0xc] sm:$0xf]
      %v357 = vld [vmem:[%s302 + $0x10] sm:$0xf]
      %v358 = vld [vmem:[%s302 + $0x14] sm:$0xf]
      %v359 = vld [vmem:[%s302 + $0x18] sm:$0xf]
      %v360 = vld [vmem:[%s302 + $0x1c] sm:$0xf]
      %v377 = vunpack.c.l.b16 %v337
      %v378 = vunpack.c.l.b16 %v338
      %v379 = vunpack.c.l.b16 %v339
      %v380 = vunpack.c.l.b16 %v340
      %v381 = vunpack.c.l.b16 %v341
      %v382 = vunpack.c.l.b16 %v342
      %v383 = vunpack.c.l.b16 %v343
      %v384 = vunpack.c.l.b16 %v344
      %v385 = vunpack.c.l.b16 %v345
      %v386 = vunpack.c.l.b16 %v346
      %v387 = vunpack.c.l.b16 %v347
      %v388 = vunpack.c.l.b16 %v348
      %v389 = vunpack.c.l.b16 %v349
      %v390 = vunpack.c.l.b16 %v350
      %v391 = vunpack.c.l.b16 %v351
      %v392 = vunpack.c.l.b16 %v352
      %v393 = vpack.c.b16 %v378, %v377
      %v394 = vpack.c.b16 %v380, %v379
      %v395 = vpack.c.b16 %v382, %v381
      %v396 = vpack.c.b16 %v384, %v383
      %v397 = vpack.c.b16 %v386, %v385
      %v398 = vpack.c.b16 %v388, %v387
      %v399 = vpack.c.b16 %v390, %v389
      %v400 = vpack.c.b16 %v392, %v391
      %v409 = vunpack.c.l.b16 %v353
      %v410 = vunpack.c.l.b16 %v354
      %v411 = vunpack.c.l.b16 %v355
      %v412 = vunpack.c.l.b16 %v356
      %v413 = vunpack.c.l.b16 %v357
      %v414 = vunpack.c.l.b16 %v358
      %v415 = vunpack.c.l.b16 %v359
      %v416 = vunpack.c.l.b16 %v360
      %v417 = vpack.c.b16 %v410, %v409
      %v418 = vpack.c.b16 %v412, %v411
      %v419 = vpack.c.b16 %v414, %v413
      %v420 = vpack.c.b16 %v416, %v415
      %vm425 = vcmask 523264
      %v427 = vsel %vm425, %v393, 0
      %v430 = vsel %vm425, %v394, 0
      %v433 = vsel %vm425, %v395, 0
      %v436 = vsel %vm425, %v396, 0
      %v439 = vsel %vm425, %v397, 0
      %v442 = vsel %vm425, %v398, 0
      %v445 = vsel %vm425, %v399, 0
      %v448 = vsel %vm425, %v400, 0
      %450 = vmatpush.bf16.msra.mxu0 0
      %451 = vmatpush.bf16.msra.mxu0 0
      %452 = vmatpush.bf16.msra.mxu0 0
      %453 = vmatpush.bf16.msra.mxu0 0
      %454 = vmatpush.bf16.msra.mxu0 %v420
      %455 = vmatpush.bf16.msra.mxu0 %v419
      %456 = vmatpush.bf16.msra.mxu0 %v418
      %457 = vmatpush.bf16.msra.mxu0 %v417
      %458 = vmatmul.bf16.gmra.mxu0 %v427
      %v459 = vpop.f32.mrf.mxu0
      %v460 = vadd.f32 0.0, %v459
      %v461 = vpop.f32.mrf.mxu0
      %v462 = vadd.f32 0.0, %v461
      %463 = vmatmul.bf16.gmra.mxu0 %v430
      %v464 = vpop.f32.mrf.mxu0
      %v465 = vadd.f32 0.0, %v464
      %v466 = vpop.f32.mrf.mxu0
      %v467 = vadd.f32 0.0, %v466
      %468 = vmatmul.bf16.gmra.mxu0 %v433
      %v469 = vpop.f32.mrf.mxu0
      %v470 = vadd.f32 0.0, %v469
      %v471 = vpop.f32.mrf.mxu0
      %v472 = vadd.f32 0.0, %v471
      %473 = vmatmul.bf16.gmra.mxu0 %v436
      %v474 = vpop.f32.mrf.mxu0
      %v475 = vadd.f32 0.0, %v474
      %v476 = vpop.f32.mrf.mxu0
      %v477 = vadd.f32 0.0, %v476
      %478 = vmatmul.bf16.gmra.mxu0 %v439
      %v479 = vpop.f32.mrf.mxu0
      %v480 = vadd.f32 0.0, %v479
      %v481 = vpop.f32.mrf.mxu0
      %v482 = vadd.f32 0.0, %v481
      %483 = vmatmul.bf16.gmra.mxu0 %v442
      %v484 = vpop.f32.mrf.mxu0
      %v485 = vadd.f32 0.0, %v484
      %v486 = vpop.f32.mrf.mxu0
      %v487 = vadd.f32 0.0, %v486
      %488 = vmatmul.bf16.gmra.mxu0 %v445
      %v489 = vpop.f32.mrf.mxu0
      %v490 = vadd.f32 0.0, %v489
      %v491 = vpop.f32.mrf.mxu0
      %v492 = vadd.f32 0.0, %v491
      %493 = vmatmul.bf16.gmra.mxu0 %v448
      %v494 = vpop.f32.mrf.mxu0
      %v495 = vadd.f32 0.0, %v494
      %v496 = vpop.f32.mrf.mxu0
      %v497 = vadd.f32 0.0, %v496
      %498 = vdwg.mxu0
      %v499 = vadd.f32 %v460, %v462
      %v500 = vadd.f32 %v499, %v465
      %v501 = vadd.f32 %v500, %v467
      %v502 = vadd.f32 %v501, %v470
      %v503 = vadd.f32 %v502, %v472
      %v504 = vadd.f32 %v503, %v475
      %v505 = vadd.f32 %v504, %v477
      %v506 = vadd.f32 %v505, %v480
      %v507 = vadd.f32 %v506, %v482
      %v508 = vadd.f32 %v507, %v485
      %v509 = vadd.f32 %v508, %v487
      %v510 = vadd.f32 %v509, %v490
      %v511 = vadd.f32 %v510, %v492
      %v512 = vadd.f32 %v511, %v495
      %v513 = vadd.f32 %v512, %v497
      %v514 = vrot.slane %v513, 4
      %v515 = vadd.f32 %v513, %v514
      %v516 = vrot.slane %v515, 2
      %v517 = vadd.f32 %v515, %v516
      %v518 = vrot.slane %v517, 1
      %v519 = vadd.f32 %v517, %v518
      %520 = vst [vmem:[%s325] sm:$0x1] %v519
      %v521 = vmul.f32 %v460, %v460
      %v522 = vmul.f32 %v462, %v462
      %v523 = vmul.f32 %v465, %v465
      %v524 = vmul.f32 %v467, %v467
      %v525 = vmul.f32 %v470, %v470
      %v526 = vmul.f32 %v472, %v472
      %v527 = vmul.f32 %v475, %v475
      %v528 = vmul.f32 %v477, %v477
      %v529 = vmul.f32 %v480, %v480
      %v530 = vmul.f32 %v482, %v482
      %v531 = vmul.f32 %v485, %v485
      %v532 = vmul.f32 %v487, %v487
      %v533 = vmul.f32 %v490, %v490
      %v534 = vmul.f32 %v492, %v492
      %v535 = vmul.f32 %v495, %v495
      %v536 = vmul.f32 %v497, %v497
      %v537 = vadd.f32 %v521, %v522
      %v538 = vadd.f32 %v537, %v523
      %v539 = vadd.f32 %v538, %v524
      %v540 = vadd.f32 %v539, %v525
      %v541 = vadd.f32 %v540, %v526
      %v542 = vadd.f32 %v541, %v527
      %v543 = vadd.f32 %v542, %v528
      %v544 = vadd.f32 %v543, %v529
      %v545 = vadd.f32 %v544, %v530
      %v546 = vadd.f32 %v545, %v531
      %v547 = vadd.f32 %v546, %v532
      %v548 = vadd.f32 %v547, %v533
      %v549 = vadd.f32 %v548, %v534
      %v550 = vadd.f32 %v549, %v535
      %v551 = vadd.f32 %v550, %v536
      %v552 = vrot.slane %v551, 4
      %v553 = vadd.f32 %v551, %v552
      %v554 = vrot.slane %v553, 2
      %v555 = vadd.f32 %v553, %v554
      %v556 = vrot.slane %v555, 1
      %v557 = vadd.f32 %v555, %v556
      %558 = vst [vmem:[%s335] sm:$0x1] %v557
      %v559 = vpack.c.bf16 %v460, %v460
      %v560 = vpack.c.bf16 %v462, %v462
      %v561 = vpack.c.bf16 %v465, %v465
      %v562 = vpack.c.bf16 %v467, %v467
      %v563 = vpack.c.bf16 %v470, %v470
      %v564 = vpack.c.bf16 %v472, %v472
      %v565 = vpack.c.bf16 %v475, %v475
      %v566 = vpack.c.bf16 %v477, %v477
      %v567 = vpack.c.bf16 %v480, %v480
      %v568 = vpack.c.bf16 %v482, %v482
      %v569 = vpack.c.bf16 %v485, %v485
      %v570 = vpack.c.bf16 %v487, %v487
      %v571 = vpack.c.bf16 %v490, %v490
      %v572 = vpack.c.bf16 %v492, %v492
      %v573 = vpack.c.bf16 %v495, %v495
      %v574 = vpack.c.bf16 %v497, %v497
      %575 = vst [vmem:[%s314] sm:$0xf] %v559
      %576 = vst [vmem:[%s314 + $0x4] sm:$0xf] %v560
      %577 = vst [vmem:[%s314 + $0x8] sm:$0xf] %v561
      %578 = vst [vmem:[%s314 + $0xc] sm:$0xf] %v562
      %579 = vst [vmem:[%s314 + $0x10] sm:$0xf] %v563
      %580 = vst [vmem:[%s314 + $0x14] sm:$0xf] %v564
      %581 = vst [vmem:[%s314 + $0x18] sm:$0xf] %v565
      %582 = vst [vmem:[%s314 + $0x1c] sm:$0xf] %v566
      %583 = vst [vmem:[%s314 + $0x20] sm:$0xf] %v567
      %584 = vst [vmem:[%s314 + $0x24] sm:$0xf] %v568
      %585 = vst [vmem:[%s314 + $0x28] sm:$0xf] %v569
      %586 = vst [vmem:[%s314 + $0x2c] sm:$0xf] %v570
      %587 = vst [vmem:[%s314 + $0x30] sm:$0xf] %v571
      %588 = vst [vmem:[%s314 + $0x34] sm:$0xf] %v572
      %589 = vst [vmem:[%s314 + $0x38] sm:$0xf] %v573
      %590 = vst [vmem:[%s314 + $0x3c] sm:$0xf] %v574
      %s591 = smul.u32 16, %s22
      %p592 = scmp.lt.s32.totalorder %s21, 3
      %s593 = scalar_select %p592, %s21, 3
      %p594 = scmp.lt.s32.totalorder %s591, 15
      %s595 = scalar_select %p594, %s591, 15
      %p596 = scmp.lt.s32.totalorder %s23, 0
      %s597 = scalar_select %p596, %s23, 0
      %s598 = sadd.s32 %s597, %s595
      %s599 = smul.addr %s593, 16
      %s600 = sadd.s32 %s598, %s599
      %s601 = smul.addr %s600, 4
      %s602 = scalar_lea.vmem %s2, %s601
      %p603 = scmp.lt.s32.totalorder %s21, 3
      %s604 = scalar_select %p603, %s21, 3
      %p605 = scmp.lt.s32.totalorder %s22, 0
      %s606 = scalar_select %p605, %s22, 0
      %p607 = scmp.lt.s32.totalorder %s23, 0
      %s608 = scalar_select %p607, %s23, 0
      %s609 = sadd.s32 %s608, %s606
      %s610 = sadd.s32 %s609, %s604
      %s611 = smul.addr %s610, 8
      %s612 = scalar_lea.vmem %s3, %s611
      %p613 = scmp.lt.s32.totalorder %s21, 3
      %s614 = scalar_select %p613, %s21, 3
      %p615 = scmp.lt.s32.totalorder %s22, 0
      %s616 = scalar_select %p615, %s22, 0
      %p617 = scmp.lt.s32.totalorder %s23, 0
      %s618 = scalar_select %p617, %s23, 0
      %s619 = sadd.s32 %s618, %s616
      %s620 = sadd.s32 %s619, %s614
      %s621 = smul.addr %s620, 8
      %s622 = scalar_lea.vmem %s4, %s621
      // Predicated region
      $region29: #{generator_forward.9} parent=27 // pred_check
        %p623 = pneg %p113
      $region30: #{generator_forward.9} parent=27 // pred_check_branch
        %625 = sbr.rel (%p623) target = $region32
      $region31: #{generator_forward.9} parent=27 // pred_region
        %s626 = smul.u32 16, %s22
      $region32: #{generator_forward.9} parent=27 // pred_fallthru
        _
      // Predicated region
      $region33: #{generator_forward.9} parent=27 // pred_check
        %p627 = pneg %p143
      $region34: #{generator_forward.9} parent=27 // pred_check_branch
        %629 = sbr.rel (%p627) target = $region36
      $region35: #{generator_forward.9} parent=27 // pred_region
        _
      $region36: #{generator_forward.9} parent=27 // pred_fallthru
        _
      // Predicated region
      $region37: #{generator_forward.9} parent=27 // pred_check
        %p630 = pneg %p173
      $region38: #{generator_forward.9} parent=27 // pred_check_branch
        %632 = sbr.rel (%p630) target = $region40
      $region39: #{generator_forward.9} parent=27 // pred_region
        _
      $region40: #{generator_forward.9} parent=27 // pred_fallthru
        _
    $region28: #{generator_forward.9} parent=5 // pred_fallthru
      _
    %p633 = scmp.le.s32.totalorder 2, %s11
    // Predicated region
    $region41: #{generator_forward.9} parent=5 // pred_check
      %p634 = pneg %p633
    $region42: #{generator_forward.9} parent=5 // pred_check_branch
      %636 = sbr.rel (%p634) target = $region44
    $region43: #{generator_forward.9} parent=5 // pred_region
      %s637 = ssub.s32 %s11, 2
      // Predicated region
      $region45: #{generator_forward.9} parent=43 // pred_check
        %p638 = pneg %p119
      $region46: #{generator_forward.9} parent=43 // pred_check_branch
        %640 = sbr.rel (%p638) target = $region48
      $region47: #{generator_forward.9} parent=43 // pred_region
        %s641 = smul.u32 16, %s25
        %p642 = scmp.lt.s32.totalorder %s24, 3
        %s643 = scalar_select %p642, %s24, 3
        %p644 = scmp.lt.s32.totalorder %s641, 15
        %s645 = scalar_select %p644, %s641, 15
        %p646 = scmp.lt.s32.totalorder %s26, 0
        %s647 = scalar_select %p646, %s26, 0
        %s648 = sadd.s32 %s647, %s645
        %s649 = smul.addr %s643, 16
        %s650 = sadd.s32 %s648, %s649
        %s651 = smul.addr %s650, 4
        %s652 = scalar_lea.vmem %s2, %s651
      $region48: #{generator_forward.9} parent=43 // pred_fallthru
        _
      // Predicated region
      $region49: #{generator_forward.9} parent=43 // pred_check
        %p653 = pneg %p149
      $region50: #{generator_forward.9} parent=43 // pred_check_branch
        %655 = sbr.rel (%p653) target = $region52
      $region51: #{generator_forward.9} parent=43 // pred_region
        %p656 = scmp.lt.s32.totalorder %s24, 3
        %s657 = scalar_select %p656, %s24, 3
        %p658 = scmp.lt.s32.totalorder %s25, 0
        %s659 = scalar_select %p658, %s25, 0
        %p660 = scmp.lt.s32.totalorder %s26, 0
        %s661 = scalar_select %p660, %s26, 0
        %s662 = sadd.s32 %s661, %s659
        %s663 = sadd.s32 %s662, %s657
        %s664 = smul.addr %s663, 8
        %s665 = scalar_lea.vmem %s3, %s664
      $region52: #{generator_forward.9} parent=43 // pred_fallthru
        _
      // Predicated region
      $region53: #{generator_forward.9} parent=43 // pred_check
        %p666 = pneg %p179
      $region54: #{generator_forward.9} parent=43 // pred_check_branch
        %668 = sbr.rel (%p666) target = $region56
      $region55: #{generator_forward.9} parent=43 // pred_region
        %p669 = scmp.lt.s32.totalorder %s24, 3
        %s670 = scalar_select %p669, %s24, 3
        %p671 = scmp.lt.s32.totalorder %s25, 0
        %s672 = scalar_select %p671, %s25, 0
        %p673 = scmp.lt.s32.totalorder %s26, 0
        %s674 = scalar_select %p673, %s26, 0
        %s675 = sadd.s32 %s674, %s672
        %s676 = sadd.s32 %s675, %s670
        %s677 = smul.addr %s676, 8
        %s678 = scalar_lea.vmem %s4, %s677
      $region56: #{generator_forward.9} parent=43 // pred_fallthru
        _
    $region44: #{generator_forward.9} parent=5 // pred_fallthru
      _
  $region6: #{generator_forward.9} parent=0 // loop_footer
    %s15 = sadd.s32 1, %s11
  $region7: #{generator_forward.9} parent=0 // loop_footer_branch
    %10 = sbr.rel target = $region3
  $region8: #{generator_forward.9} parent=0 // loop_exit
    _

// kernel: generator_forward.11
$region0: #{generator_forward.11}
  #allocation0 [shape = 'u32[]', space=smem, size = 0x4, offset = 0x4, fixed_abs, tag = 'smem constant byte address 0x4 - core index']
  #allocation1 [shape = 'u32[72,128]{1,0:T(1,128)}', space=vmem, size = 0x9000, scoped, tag = 'internal scratch']
  %s0 = inlined_call_operand.vmem [shape: bf16[512,72], index: 0, kind: input, shape index: {}]
  %s1 = inlined_call_operand.vmem [shape: bf16[72,128], index: 1, kind: input, shape index: {}]
  %s2 = inlined_call_operand.vmem [shape: f32[1,128], index: 2, kind: input, shape index: {}]
  %s3 = inlined_call_operand.vmem [shape: f32[512,3], index: 3, kind: output, shape index: {}]
  %s4 = sld [smem:[#allocation0]]
  $region22: #{generator_forward.11} parent=0
    _
  %s6 = ssub.s32 1, %s4
  %s7 = scalar_select 0, %s6, %s4
  // Predicated region
  $region2: #{generator_forward.11} parent=0 // pred_check
    _
  $region3: #{generator_forward.11} parent=0 // pred_check_branch
    %9 = sbr.rel (0) target = $region5
  $region4: #{generator_forward.11} parent=0 // pred_region
    _
  $region5: #{generator_forward.11} parent=0 // pred_fallthru
    _
  // Predicated region
  $region6: #{generator_forward.11} parent=0 // pred_check
    _
  $region7: #{generator_forward.11} parent=0 // pred_check_branch
    %11 = sbr.rel (0) target = $region9
  $region8: #{generator_forward.11} parent=0 // pred_region
    _
  $region9: #{generator_forward.11} parent=0 // pred_fallthru
    _
  // Predicated region
  $region10: #{generator_forward.11} parent=0 // pred_check
    _
  $region11: #{generator_forward.11} parent=0 // pred_check_branch
    %13 = sbr.rel (0) target = $region13
  $region12: #{generator_forward.11} parent=0 // pred_region
    _
  $region13: #{generator_forward.11} parent=0 // pred_fallthru
    _
  %v15 = vld [vmem:[%s0] sm:$0xf]
  %v16 = vld [vmem:[%s0 + $0x4] sm:$0xf]
  %v17 = vld [vmem:[%s0 + $0x8] sm:$0xf]
  %v18 = vld [vmem:[%s0 + $0xc] sm:$0xf]
  %v19 = vld [vmem:[%s0 + $0x10] sm:$0xf]
  %v20 = vld [vmem:[%s0 + $0x14] sm:$0xf]
  %v21 = vld [vmem:[%s0 + $0x18] sm:$0xf]
  %v22 = vld [vmem:[%s0 + $0x1c] sm:$0xf]
  %v23 = vld [vmem:[%s0 + $0x20] sm:$0xf]
  %v24 = vld [vmem:[%s0 + $0x24] sm:$0xf]
  %v25 = vld [vmem:[%s0 + $0x28] sm:$0xf]
  %v26 = vld [vmem:[%s0 + $0x2c] sm:$0xf]
  %v27 = vld [vmem:[%s0 + $0x30] sm:$0xf]
  %v28 = vld [vmem:[%s0 + $0x34] sm:$0xf]
  %v29 = vld [vmem:[%s0 + $0x38] sm:$0xf]
  %v30 = vld [vmem:[%s0 + $0x3c] sm:$0xf]
  %v31 = vld [vmem:[%s0 + $0x40] sm:$0xf]
  %v32 = vld [vmem:[%s0 + $0x44] sm:$0xf]
  %v33 = vld [vmem:[%s0 + $0x48] sm:$0xf]
  %v34 = vld [vmem:[%s0 + $0x4c] sm:$0xf]
  %v35 = vld [vmem:[%s0 + $0x50] sm:$0xf]
  %v36 = vld [vmem:[%s0 + $0x54] sm:$0xf]
  %v37 = vld [vmem:[%s0 + $0x58] sm:$0xf]
  %v38 = vld [vmem:[%s0 + $0x5c] sm:$0xf]
  %v39 = vld [vmem:[%s0 + $0x60] sm:$0xf]
  %v40 = vld [vmem:[%s0 + $0x64] sm:$0xf]
  %v41 = vld [vmem:[%s0 + $0x68] sm:$0xf]
  %v42 = vld [vmem:[%s0 + $0x6c] sm:$0xf]
  %v43 = vld [vmem:[%s0 + $0x70] sm:$0xf]
  %v44 = vld [vmem:[%s0 + $0x74] sm:$0xf]
  %v45 = vld [vmem:[%s0 + $0x78] sm:$0xf]
  %v46 = vld [vmem:[%s0 + $0x7c] sm:$0xf]
  %v47 = vld [vmem:[%s0 + $0x80] sm:$0xf]
  %v48 = vld [vmem:[%s0 + $0x84] sm:$0xf]
  %v49 = vld [vmem:[%s0 + $0x88] sm:$0xf]
  %v50 = vld [vmem:[%s0 + $0x8c] sm:$0xf]
  %v51 = vld [vmem:[%s0 + $0x90] sm:$0xf]
  %v52 = vld [vmem:[%s0 + $0x94] sm:$0xf]
  %v53 = vld [vmem:[%s0 + $0x98] sm:$0xf]
  %v54 = vld [vmem:[%s0 + $0x9c] sm:$0xf]
  %v55 = vld [vmem:[%s0 + $0xa0] sm:$0xf]
  %v56 = vld [vmem:[%s0 + $0xa4] sm:$0xf]
  %v57 = vld [vmem:[%s0 + $0xa8] sm:$0xf]
  %v58 = vld [vmem:[%s0 + $0xac] sm:$0xf]
  %v59 = vld [vmem:[%s0 + $0xb0] sm:$0xf]
  %v60 = vld [vmem:[%s0 + $0xb4] sm:$0xf]
  %v61 = vld [vmem:[%s0 + $0xb8] sm:$0xf]
  %v62 = vld [vmem:[%s0 + $0xbc] sm:$0xf]
  %v63 = vld [vmem:[%s0 + $0xc0] sm:$0xf]
  %v64 = vld [vmem:[%s0 + $0xc4] sm:$0xf]
  %v65 = vld [vmem:[%s0 + $0xc8] sm:$0xf]
  %v66 = vld [vmem:[%s0 + $0xcc] sm:$0xf]
  %v67 = vld [vmem:[%s0 + $0xd0] sm:$0xf]
  %v68 = vld [vmem:[%s0 + $0xd4] sm:$0xf]
  %v69 = vld [vmem:[%s0 + $0xd8] sm:$0xf]
  %v70 = vld [vmem:[%s0 + $0xdc] sm:$0xf]
  %v71 = vld [vmem:[%s0 + $0xe0] sm:$0xf]
  %v72 = vld [vmem:[%s0 + $0xe4] sm:$0xf]
  %v73 = vld [vmem:[%s0 + $0xe8] sm:$0xf]
  %v74 = vld [vmem:[%s0 + $0xec] sm:$0xf]
  %v75 = vld [vmem:[%s0 + $0xf0] sm:$0xf]
  %v76 = vld [vmem:[%s0 + $0xf4] sm:$0xf]
  %v77 = vld [vmem:[%s0 + $0xf8] sm:$0xf]
  %v78 = vld [vmem:[%s0 + $0xfc] sm:$0xf]
  %v79 = vld [vmem:[%s1] sm:$0xf]
  %v80 = vld [vmem:[%s1 + $0x4] sm:$0xf]
  %v81 = vld [vmem:[%s1 + $0x8] sm:$0xf]
  %v82 = vld [vmem:[%s1 + $0xc] sm:$0xf]
  %v83 = vld [vmem:[%s1 + $0x10] sm:$0xf]
  %v84 = vld [vmem:[%s1 + $0x14] sm:$0xf]
  %v85 = vld [vmem:[%s1 + $0x18] sm:$0xf]
  %v86 = vld [vmem:[%s1 + $0x1c] sm:$0xf]
  %v87 = vld [vmem:[%s1 + $0x20] sm:$0xf]
  %v88 = vld [vmem:[%s2] sm:$0x1]
  %v90 = vperm.slane %v88, 0
  %v156 = vunpack.c.l.b16 %v15
  %v157 = vunpack.c.l.b16 %v16
  %v158 = vunpack.c.l.b16 %v17
  %v159 = vunpack.c.l.b16 %v18
  %v160 = vunpack.c.l.b16 %v19
  %v161 = vunpack.c.l.b16 %v20
  %v162 = vunpack.c.l.b16 %v21
  %v163 = vunpack.c.l.b16 %v22
  %v164 = vunpack.c.l.b16 %v23
  %v165 = vunpack.c.l.b16 %v24
  %v166 = vunpack.c.l.b16 %v25
  %v167 = vunpack.c.l.b16 %v26
  %v168 = vunpack.c.l.b16 %v27
  %v169 = vunpack.c.l.b16 %v28
  %v170 = vunpack.c.l.b16 %v29
  %v171 = vunpack.c.l.b16 %v30
  %v172 = vunpack.c.l.b16 %v31
  %v173 = vunpack.c.l.b16 %v32
  %v174 = vunpack.c.l.b16 %v33
  %v175 = vunpack.c.l.b16 %v34
  %v176 = vunpack.c.l.b16 %v35
  %v177 = vunpack.c.l.b16 %v36
  %v178 = vunpack.c.l.b16 %v37
  %v179 = vunpack.c.l.b16 %v38
  %v180 = vunpack.c.l.b16 %v39
  %v181 = vunpack.c.l.b16 %v40
  %v182 = vunpack.c.l.b16 %v41
  %v183 = vunpack.c.l.b16 %v42
  %v184 = vunpack.c.l.b16 %v43
  %v185 = vunpack.c.l.b16 %v44
  %v186 = vunpack.c.l.b16 %v45
  %v187 = vunpack.c.l.b16 %v46
  %v188 = vunpack.c.l.b16 %v47
  %v189 = vunpack.c.l.b16 %v48
  %v190 = vunpack.c.l.b16 %v49
  %v191 = vunpack.c.l.b16 %v50
  %v192 = vunpack.c.l.b16 %v51
  %v193 = vunpack.c.l.b16 %v52
  %v194 = vunpack.c.l.b16 %v53
  %v195 = vunpack.c.l.b16 %v54
  %v196 = vunpack.c.l.b16 %v55
  %v197 = vunpack.c.l.b16 %v56
  %v198 = vunpack.c.l.b16 %v57
  %v199 = vunpack.c.l.b16 %v58
  %v200 = vunpack.c.l.b16 %v59
  %v201 = vunpack.c.l.b16 %v60
  %v202 = vunpack.c.l.b16 %v61
  %v203 = vunpack.c.l.b16 %v62
  %v204 = vunpack.c.l.b16 %v63
  %v205 = vunpack.c.l.b16 %v64
  %v206 = vunpack.c.l.b16 %v65
  %v207 = vunpack.c.l.b16 %v66
  %v208 = vunpack.c.l.b16 %v67
  %v209 = vunpack.c.l.b16 %v68
  %v210 = vunpack.c.l.b16 %v69
  %v211 = vunpack.c.l.b16 %v70
  %v212 = vunpack.c.l.b16 %v71
  %v213 = vunpack.c.l.b16 %v72
  %v214 = vunpack.c.l.b16 %v73
  %v215 = vunpack.c.l.b16 %v74
  %v216 = vunpack.c.l.b16 %v75
  %v217 = vunpack.c.l.b16 %v76
  %v218 = vunpack.c.l.b16 %v77
  %v219 = vunpack.c.l.b16 %v78
  %v220 = vpack.c.b16 %v157, %v156
  %v221 = vpack.c.b16 %v159, %v158
  %v222 = vpack.c.b16 %v161, %v160
  %v223 = vpack.c.b16 %v163, %v162
  %v224 = vpack.c.b16 %v165, %v164
  %v225 = vpack.c.b16 %v167, %v166
  %v226 = vpack.c.b16 %v169, %v168
  %v227 = vpack.c.b16 %v171, %v170
  %v228 = vpack.c.b16 %v173, %v172
  %v229 = vpack.c.b16 %v175, %v174
  %v230 = vpack.c.b16 %v177, %v176
  %v231 = vpack.c.b16 %v179, %v178
  %v232 = vpack.c.b16 %v181, %v180
  %v233 = vpack.c.b16 %v183, %v182
  %v234 = vpack.c.b16 %v185, %v184
  %v235 = vpack.c.b16 %v187, %v186
  %v236 = vpack.c.b16 %v189, %v188
  %v237 = vpack.c.b16 %v191, %v190
  %v238 = vpack.c.b16 %v193, %v192
  %v239 = vpack.c.b16 %v195, %v194
  %v240 = vpack.c.b16 %v197, %v196
  %v241 = vpack.c.b16 %v199, %v198
  %v242 = vpack.c.b16 %v201, %v200
  %v243 = vpack.c.b16 %v203, %v202
  %v244 = vpack.c.b16 %v205, %v204
  %v245 = vpack.c.b16 %v207, %v206
  %v246 = vpack.c.b16 %v209, %v208
  %v247 = vpack.c.b16 %v211, %v210
  %v248 = vpack.c.b16 %v213, %v212
  %v249 = vpack.c.b16 %v215, %v214
  %v250 = vpack.c.b16 %v217, %v216
  %v251 = vpack.c.b16 %v219, %v218
  %v261 = vunpack.c.l.b16 %v79
  %v262 = vunpack.c.l.b16 %v80
  %v263 = vunpack.c.l.b16 %v81
  %v264 = vunpack.c.l.b16 %v82
  %v265 = vunpack.c.l.b16 %v83
  %v266 = vunpack.c.l.b16 %v84
  %v267 = vunpack.c.l.b16 %v85
  %v268 = vunpack.c.l.b16 %v86
  %v269 = vunpack.c.l.b16 %v87
  %v270 = vpack.c.b16 %v262, %v261
  %v271 = vpack.c.b16 %v264, %v263
  %v272 = vpack.c.b16 %v266, %v265
  %v273 = vpack.c.b16 %v268, %v267
  %v274 = vpack.c.b16 %v269, %v269
  %vm279 = vcmask 588800
  %v281 = vsel %vm279, %v220, 0
  %v284 = vsel %vm279, %v221, 0
  %v287 = vsel %vm279, %v222, 0
  %v290 = vsel %vm279, %v223, 0
  %v293 = vsel %vm279, %v224, 0
  %v296 = vsel %vm279, %v225, 0
  %v299 = vsel %vm279, %v226, 0
  %v302 = vsel %vm279, %v227, 0
  %v305 = vsel %vm279, %v228, 0
  %v308 = vsel %vm279, %v229, 0
  %v311 = vsel %vm279, %v230, 0
  %v314 = vsel %vm279, %v231, 0
  %v317 = vsel %vm279, %v232, 0
  %v320 = vsel %vm279, %v233, 0
  %v323 = vsel %vm279, %v234, 0
  %v326 = vsel %vm279, %v235, 0
  %v329 = vsel %vm279, %v236, 0
  %v332 = vsel %vm279, %v237, 0
  %v335 = vsel %vm279, %v238, 0
  %v338 = vsel %vm279, %v239, 0
  %v341 = vsel %vm279, %v240, 0
  %v344 = vsel %vm279, %v241, 0
  %v347 = vsel %vm279, %v242, 0
  %v350 = vsel %vm279, %v243, 0
  %v353 = vsel %vm279, %v244, 0
  %v356 = vsel %vm279, %v245, 0
  %v359 = vsel %vm279, %v246, 0
  %v362 = vsel %vm279, %v247, 0
  %v365 = vsel %vm279, %v248, 0
  %v368 = vsel %vm279, %v249, 0
  %v371 = vsel %vm279, %v250, 0
  %v374 = vsel %vm279, %v251, 0
  %vm376 = vcmask 1043456
  %v378 = vsel %vm376, %v274, 0
  %380 = vmatpush.bf16.msra.mxu0 0
  %381 = vmatpush.bf16.msra.mxu0 0
  %382 = vmatpush.bf16.msra.mxu0 0
  %383 = vmatpush.bf16.msra.mxu0 %v378
  %384 = vmatpush.bf16.msra.mxu0 %v273
  %385 = vmatpush.bf16.msra.mxu0 %v272
  %386 = vmatpush.bf16.msra.mxu0 %v271
  %387 = vmatpush.bf16.msra.mxu0 %v270
  %388 = vmatmul.bf16.gmra.mxu0 %v281
  %v389 = vpop.f32.mrf.mxu0
  %v390 = vadd.f32 %v90, %v389
  %v391 = vpop.f32.mrf.mxu0
  %v392 = vadd.f32 %v90, %v391
  %393 = vmatmul.bf16.gmra.mxu0 %v284
  %v394 = vpop.f32.mrf.mxu0
  %v395 = vadd.f32 %v90, %v394
  %v396 = vpop.f32.mrf.mxu0
  %v397 = vadd.f32 %v90, %v396
  %398 = vmatmul.bf16.gmra.mxu0 %v287
  %v399 = vpop.f32.mrf.mxu0
  %v400 = vadd.f32 %v90, %v399
  %v401 = vpop.f32.mrf.mxu0
  %v402 = vadd.f32 %v90, %v401
  %403 = vmatmul.bf16.gmra.mxu0 %v290
  %v404 = vpop.f32.mrf.mxu0
  %v405 = vadd.f32 %v90, %v404
  %v406 = vpop.f32.mrf.mxu0
  %v407 = vadd.f32 %v90, %v406
  %408 = vmatmul.bf16.gmra.mxu0 %v293
  %v409 = vpop.f32.mrf.mxu0
  %v410 = vadd.f32 %v90, %v409
  %v411 = vpop.f32.mrf.mxu0
  %v412 = vadd.f32 %v90, %v411
  %413 = vmatmul.bf16.gmra.mxu0 %v296
  %v414 = vpop.f32.mrf.mxu0
  %v415 = vadd.f32 %v90, %v414
  %v416 = vpop.f32.mrf.mxu0
  %v417 = vadd.f32 %v90, %v416
  %418 = vmatmul.bf16.gmra.mxu0 %v299
  %v419 = vpop.f32.mrf.mxu0
  %v420 = vadd.f32 %v90, %v419
  %v421 = vpop.f32.mrf.mxu0
  %v422 = vadd.f32 %v90, %v421
  %423 = vmatmul.bf16.gmra.mxu0 %v302
  %v424 = vpop.f32.mrf.mxu0
  %v425 = vadd.f32 %v90, %v424
  %v426 = vpop.f32.mrf.mxu0
  %v427 = vadd.f32 %v90, %v426
  %428 = vmatmul.bf16.gmra.mxu0 %v305
  %v429 = vpop.f32.mrf.mxu0
  %v430 = vadd.f32 %v90, %v429
  %v431 = vpop.f32.mrf.mxu0
  %v432 = vadd.f32 %v90, %v431
  %433 = vmatmul.bf16.gmra.mxu0 %v308
  %v434 = vpop.f32.mrf.mxu0
  %v435 = vadd.f32 %v90, %v434
  %v436 = vpop.f32.mrf.mxu0
  %v437 = vadd.f32 %v90, %v436
  %438 = vmatmul.bf16.gmra.mxu0 %v311
  %v439 = vpop.f32.mrf.mxu0
  %v440 = vadd.f32 %v90, %v439
  %v441 = vpop.f32.mrf.mxu0
  %v442 = vadd.f32 %v90, %v441
  %443 = vmatmul.bf16.gmra.mxu0 %v314
  %v444 = vpop.f32.mrf.mxu0
  %v445 = vadd.f32 %v90, %v444
  %v446 = vpop.f32.mrf.mxu0
  %v447 = vadd.f32 %v90, %v446
  %448 = vmatmul.bf16.gmra.mxu0 %v317
  %v449 = vpop.f32.mrf.mxu0
  %v450 = vadd.f32 %v90, %v449
  %v451 = vpop.f32.mrf.mxu0
  %v452 = vadd.f32 %v90, %v451
  %453 = vmatmul.bf16.gmra.mxu0 %v320
  %v454 = vpop.f32.mrf.mxu0
  %v455 = vadd.f32 %v90, %v454
  %v456 = vpop.f32.mrf.mxu0
  %v457 = vadd.f32 %v90, %v456
  %458 = vmatmul.bf16.gmra.mxu0 %v323
  %v459 = vpop.f32.mrf.mxu0
  %v460 = vadd.f32 %v90, %v459
  %v461 = vpop.f32.mrf.mxu0
  %v462 = vadd.f32 %v90, %v461
  %463 = vmatmul.bf16.gmra.mxu0 %v326
  %v464 = vpop.f32.mrf.mxu0
  %v465 = vadd.f32 %v90, %v464
  %v466 = vpop.f32.mrf.mxu0
  %v467 = vadd.f32 %v90, %v466
  %468 = vmatmul.bf16.gmra.mxu0 %v329
  %v469 = vpop.f32.mrf.mxu0
  %v470 = vadd.f32 %v90, %v469
  %v471 = vpop.f32.mrf.mxu0
  %v472 = vadd.f32 %v90, %v471
  %473 = vmatmul.bf16.gmra.mxu0 %v332
  %v474 = vpop.f32.mrf.mxu0
  %v475 = vadd.f32 %v90, %v474
  %v476 = vpop.f32.mrf.mxu0
  %v477 = vadd.f32 %v90, %v476
  %478 = vmatmul.bf16.gmra.mxu0 %v335
  %v479 = vpop.f32.mrf.mxu0
  %v480 = vadd.f32 %v90, %v479
  %v481 = vpop.f32.mrf.mxu0
  %v482 = vadd.f32 %v90, %v481
  %483 = vmatmul.bf16.gmra.mxu0 %v338
  %v484 = vpop.f32.mrf.mxu0
  %v485 = vadd.f32 %v90, %v484
  %v486 = vpop.f32.mrf.mxu0
  %v487 = vadd.f32 %v90, %v486
  %488 = vmatmul.bf16.gmra.mxu0 %v341
  %v489 = vpop.f32.mrf.mxu0
  %v490 = vadd.f32 %v90, %v489
  %v491 = vpop.f32.mrf.mxu0
  %v492 = vadd.f32 %v90, %v491
  %493 = vmatmul.bf16.gmra.mxu0 %v344
  %v494 = vpop.f32.mrf.mxu0
  %v495 = vadd.f32 %v90, %v494
  %v496 = vpop.f32.mrf.mxu0
  %v497 = vadd.f32 %v90, %v496
  %498 = vmatmul.bf16.gmra.mxu0 %v347
  %v499 = vpop.f32.mrf.mxu0
  %v500 = vadd.f32 %v90, %v499
  %v501 = vpop.f32.mrf.mxu0
  %v502 = vadd.f32 %v90, %v501
  %503 = vmatmul.bf16.gmra.mxu0 %v350
  %v504 = vpop.f32.mrf.mxu0
  %v505 = vadd.f32 %v90, %v504
  %v506 = vpop.f32.mrf.mxu0
  %v507 = vadd.f32 %v90, %v506
  %508 = vmatmul.bf16.gmra.mxu0 %v353
  %v509 = vpop.f32.mrf.mxu0
  %v510 = vadd.f32 %v90, %v509
  %v511 = vpop.f32.mrf.mxu0
  %v512 = vadd.f32 %v90, %v511
  %513 = vmatmul.bf16.gmra.mxu0 %v356
  %v514 = vpop.f32.mrf.mxu0
  %v515 = vadd.f32 %v90, %v514
  %v516 = vpop.f32.mrf.mxu0
  %v517 = vadd.f32 %v90, %v516
  %518 = vmatmul.bf16.gmra.mxu0 %v359
  %v519 = vpop.f32.mrf.mxu0
  %v520 = vadd.f32 %v90, %v519
  %v521 = vpop.f32.mrf.mxu0
  %v522 = vadd.f32 %v90, %v521
  %523 = vmatmul.bf16.gmra.mxu0 %v362
  %v524 = vpop.f32.mrf.mxu0
  %v525 = vadd.f32 %v90, %v524
  %v526 = vpop.f32.mrf.mxu0
  %v527 = vadd.f32 %v90, %v526
  %528 = vmatmul.bf16.gmra.mxu0 %v365
  %v529 = vpop.f32.mrf.mxu0
  %v530 = vadd.f32 %v90, %v529
  %v531 = vpop.f32.mrf.mxu0
  %v532 = vadd.f32 %v90, %v531
  %533 = vmatmul.bf16.gmra.mxu0 %v368
  %v534 = vpop.f32.mrf.mxu0
  %v535 = vadd.f32 %v90, %v534
  %v536 = vpop.f32.mrf.mxu0
  %v537 = vadd.f32 %v90, %v536
  %538 = vmatmul.bf16.gmra.mxu0 %v371
  %v539 = vpop.f32.mrf.mxu0
  %v540 = vadd.f32 %v90, %v539
  %v541 = vpop.f32.mrf.mxu0
  %v542 = vadd.f32 %v90, %v541
  %543 = vmatmul.bf16.gmra.mxu0 %v374
  %v544 = vpop.f32.mrf.mxu0
  %v545 = vadd.f32 %v90, %v544
  %v546 = vpop.f32.mrf.mxu0
  %v547 = vadd.f32 %v90, %v546
  %548 = vdwg.mxu0
  %v549 = vtanh.pop %v390
  %v550 = vtanh.pop %v392
  %v551 = vtanh.pop %v395
  %v552 = vtanh.pop %v397
  %v553 = vtanh.pop %v400
  %v554 = vtanh.pop %v402
  %v555 = vtanh.pop %v405
  %v556 = vtanh.pop %v407
  %v557 = vtanh.pop %v410
  %v558 = vtanh.pop %v412
  %v559 = vtanh.pop %v415
  %v560 = vtanh.pop %v417
  %v561 = vtanh.pop %v420
  %v562 = vtanh.pop %v422
  %v563 = vtanh.pop %v425
  %v564 = vtanh.pop %v427
  %v565 = vtanh.pop %v430
  %v566 = vtanh.pop %v432
  %v567 = vtanh.pop %v435
  %v568 = vtanh.pop %v437
  %v569 = vtanh.pop %v440
  %v570 = vtanh.pop %v442
  %v571 = vtanh.pop %v445
  %v572 = vtanh.pop %v447
  %v573 = vtanh.pop %v450
  %v574 = vtanh.pop %v452
  %v575 = vtanh.pop %v455
  %v576 = vtanh.pop %v457
  %v577 = vtanh.pop %v460
  %v578 = vtanh.pop %v462
  %v579 = vtanh.pop %v465
  %v580 = vtanh.pop %v467
  %v581 = vtanh.pop %v470
  %v582 = vtanh.pop %v472
  %v583 = vtanh.pop %v475
  %v584 = vtanh.pop %v477
  %v585 = vtanh.pop %v480
  %v586 = vtanh.pop %v482
  %v587 = vtanh.pop %v485
  %v588 = vtanh.pop %v487
  %v589 = vtanh.pop %v490
  %v590 = vtanh.pop %v492
  %v591 = vtanh.pop %v495
  %v592 = vtanh.pop %v497
  %v593 = vtanh.pop %v500
  %v594 = vtanh.pop %v502
  %v595 = vtanh.pop %v505
  %v596 = vtanh.pop %v507
  %v597 = vtanh.pop %v510
  %v598 = vtanh.pop %v512
  %v599 = vtanh.pop %v515
  %v600 = vtanh.pop %v517
  %v601 = vtanh.pop %v520
  %v602 = vtanh.pop %v522
  %v603 = vtanh.pop %v525
  %v604 = vtanh.pop %v527
  %v605 = vtanh.pop %v530
  %v606 = vtanh.pop %v532
  %v607 = vtanh.pop %v535
  %v608 = vtanh.pop %v537
  %v609 = vtanh.pop %v540
  %v610 = vtanh.pop %v542
  %v611 = vtanh.pop %v545
  %v612 = vtanh.pop %v547
  %vm613 = vcmask 23552
  %614 = vst.msk [vmem:[%s3] sm:$0xff] %vm613, %v549
  %615 = vst.msk [vmem:[%s3 + $0x8] sm:$0xff] %vm613, %v550
  %616 = vst.msk [vmem:[%s3 + $0x10] sm:$0xff] %vm613, %v551
  %617 = vst.msk [vmem:[%s3 + $0x18] sm:$0xff] %vm613, %v552
  %618 = vst.msk [vmem:[%s3 + $0x20] sm:$0xff] %vm613, %v553
  %619 = vst.msk [vmem:[%s3 + $0x28] sm:$0xff] %vm613, %v554
  %620 = vst.msk [vmem:[%s3 + $0x30] sm:$0xff] %vm613, %v555
  %621 = vst.msk [vmem:[%s3 + $0x38] sm:$0xff] %vm613, %v556
  %622 = vst.msk [vmem:[%s3 + $0x40] sm:$0xff] %vm613, %v557
  %623 = vst.msk [vmem:[%s3 + $0x48] sm:$0xff] %vm613, %v558
  %624 = vst.msk [vmem:[%s3 + $0x50] sm:$0xff] %vm613, %v559
  %625 = vst.msk [vmem:[%s3 + $0x58] sm:$0xff] %vm613, %v560
  %626 = vst.msk [vmem:[%s3 + $0x60] sm:$0xff] %vm613, %v561
  %627 = vst.msk [vmem:[%s3 + $0x68] sm:$0xff] %vm613, %v562
  %628 = vst.msk [vmem:[%s3 + $0x70] sm:$0xff] %vm613, %v563
  %629 = vst.msk [vmem:[%s3 + $0x78] sm:$0xff] %vm613, %v564
  %630 = vst.msk [vmem:[%s3 + $0x80] sm:$0xff] %vm613, %v565
  %631 = vst.msk [vmem:[%s3 + $0x88] sm:$0xff] %vm613, %v566
  %632 = vst.msk [vmem:[%s3 + $0x90] sm:$0xff] %vm613, %v567
  %633 = vst.msk [vmem:[%s3 + $0x98] sm:$0xff] %vm613, %v568
  %634 = vst.msk [vmem:[%s3 + $0xa0] sm:$0xff] %vm613, %v569
  %635 = vst.msk [vmem:[%s3 + $0xa8] sm:$0xff] %vm613, %v570
  %636 = vst.msk [vmem:[%s3 + $0xb0] sm:$0xff] %vm613, %v571
  %637 = vst.msk [vmem:[%s3 + $0xb8] sm:$0xff] %vm613, %v572
  %638 = vst.msk [vmem:[%s3 + $0xc0] sm:$0xff] %vm613, %v573
  %639 = vst.msk [vmem:[%s3 + $0xc8] sm:$0xff] %vm613, %v574
  %640 = vst.msk [vmem:[%s3 + $0xd0] sm:$0xff] %vm613, %v575
  %641 = vst.msk [vmem:[%s3 + $0xd8] sm:$0xff] %vm613, %v576
  %642 = vst.msk [vmem:[%s3 + $0xe0] sm:$0xff] %vm613, %v577
  %643 = vst.msk [vmem:[%s3 + $0xe8] sm:$0xff] %vm613, %v578
  %644 = vst.msk [vmem:[%s3 + $0xf0] sm:$0xff] %vm613, %v579
  %645 = vst.msk [vmem:[%s3 + $0xf8] sm:$0xff] %vm613, %v580
  %646 = vst.msk [vmem:[%s3 + $0x100] sm:$0xff] %vm613, %v581
  %647 = vst.msk [vmem:[%s3 + $0x108] sm:$0xff] %vm613, %v582
  %648 = vst.msk [vmem:[%s3 + $0x110] sm:$0xff] %vm613, %v583
  %649 = vst.msk [vmem:[%s3 + $0x118] sm:$0xff] %vm613, %v584
  %650 = vst.msk [vmem:[%s3 + $0x120] sm:$0xff] %vm613, %v585
  %651 = vst.msk [vmem:[%s3 + $0x128] sm:$0xff] %vm613, %v586
  %652 = vst.msk [vmem:[%s3 + $0x130] sm:$0xff] %vm613, %v587
  %653 = vst.msk [vmem:[%s3 + $0x138] sm:$0xff] %vm613, %v588
  %654 = vst.msk [vmem:[%s3 + $0x140] sm:$0xff] %vm613, %v589
  %655 = vst.msk [vmem:[%s3 + $0x148] sm:$0xff] %vm613, %v590
  %656 = vst.msk [vmem:[%s3 + $0x150] sm:$0xff] %vm613, %v591
  %657 = vst.msk [vmem:[%s3 + $0x158] sm:$0xff] %vm613, %v592
  %658 = vst.msk [vmem:[%s3 + $0x160] sm:$0xff] %vm613, %v593
  %659 = vst.msk [vmem:[%s3 + $0x168] sm:$0xff] %vm613, %v594
  %660 = vst.msk [vmem:[%s3 + $0x170] sm:$0xff] %vm613, %v595
  %661 = vst.msk [vmem:[%s3 + $0x178] sm:$0xff] %vm613, %v596
  %662 = vst.msk [vmem:[%s3 + $0x180] sm:$0xff] %vm613, %v597
  %663 = vst.msk [vmem:[%s3 + $0x188] sm:$0xff] %vm613, %v598
  %664 = vst.msk [vmem:[%s3 + $0x190] sm:$0xff] %vm613, %v599
  %665 = vst.msk [vmem:[%s3 + $0x198] sm:$0xff] %vm613, %v600
  %666 = vst.msk [vmem:[%s3 + $0x1a0] sm:$0xff] %vm613, %v601
  %667 = vst.msk [vmem:[%s3 + $0x1a8] sm:$0xff] %vm613, %v602
  %668 = vst.msk [vmem:[%s3 + $0x1b0] sm:$0xff] %vm613, %v603
  %669 = vst.msk [vmem:[%s3 + $0x1b8] sm:$0xff] %vm613, %v604
  %670 = vst.msk [vmem:[%s3 + $0x1c0] sm:$0xff] %vm613, %v605
  %671 = vst.msk [vmem:[%s3 + $0x1c8] sm:$0xff] %vm613, %v606
  %672 = vst.msk [vmem:[%s3 + $0x1d0] sm:$0xff] %vm613, %v607
  %673 = vst.msk [vmem:[%s3 + $0x1d8] sm:$0xff] %vm613, %v608
  %674 = vst.msk [vmem:[%s3 + $0x1e0] sm:$0xff] %vm613, %v609
  %675 = vst.msk [vmem:[%s3 + $0x1e8] sm:$0xff] %vm613, %v610
  %676 = vst.msk [vmem:[%s3 + $0x1f0] sm:$0xff] %vm613, %v611
  %677 = vst.msk [vmem:[%s3 + $0x1f8] sm:$0xff] %vm613, %v612
  // Predicated region
  $region14: #{generator_forward.11} parent=0 // pred_check
    _
  $region15: #{generator_forward.11} parent=0 // pred_check_branch
    %679 = sbr.rel (0) target = $region17
  $region16: #{generator_forward.11} parent=0 // pred_region
    _
  $region17: #{generator_forward.11} parent=0 // pred_fallthru
    _
  // Predicated region
  $region18: #{generator_forward.11} parent=0 // pred_check
    _
  $region19: #{generator_forward.11} parent=0 // pred_check_branch
    %681 = sbr.rel (0) target = $region21
  $region20: #{generator_forward.11} parent=0 // pred_region
    _
  $region21: #{generator_forward.11} parent=0 // pred_fallthru
    _

</llo_original>
